<compile_context>
chip_gen: v6e
topology: v6e:2x2x1
jax: 0.10.0
libtpu: 0.0.40
codegen_flags: <defaults>
</compile_context>

<pallas_src>
import functools
import math

import jax
import jax.numpy as jnp
from jax.experimental import pallas as pl
from jax.experimental.pallas import tpu as pltpu


# ----------------------------------------------------------------------------
# Helpers
# ----------------------------------------------------------------------------
def _round_up(x, m):
    return (x + m - 1) // m * m


def _row_tile(rows, target=512):
    tr = min(target, rows)
    while tr > 8 and rows % tr:
        tr //= 2
    return tr


def _layernorm(x, gamma, beta, eps=1e-5):
    mu = jnp.mean(x, axis=-1, keepdims=True)
    var = jnp.mean((x - mu) ** 2, axis=-1, keepdims=True)
    return (x - mu) * jax.lax.rsqrt(var + eps) * gamma + beta


# ----------------------------------------------------------------------------
# Kernel 1: fused embedding + time conditioning + LN + Q/K/V projections
#           (rows = flattened B*N tokens, lane dim = 128-padded vocab/hidden)
# ----------------------------------------------------------------------------
def embed_qkv_kernel(x_ref, t_ref, w_in_ref, w_t_ref, ln1_g_ref, ln1_b_ref,
                     wq_ref, wk_ref, wv_ref,
                     h0_ref, q_ref, k_ref, v_ref, *, inv_sqrt_h):
    x = x_ref[...]                                    # (TR, Kpad) f32
    t = t_ref[...]                                    # (TR, 1)    f32

    # embedding projection (bf16 operands, f32 accumulation) + time conditioning
    h0 = jnp.dot(x.astype(jnp.bfloat16), w_in_ref[...],
                 preferred_element_type=jnp.float32)
    h0 = h0 + t * w_t_ref[...]                        # (TR,1)*(1,H) outer product

    hn = _layernorm(h0, ln1_g_ref[...], ln1_b_ref[...])
    hn_b = hn.astype(jnp.bfloat16)
    # fold 1/sqrt(H) into q once (N*H muls instead of N*N later)
    q = jnp.dot(hn_b, wq_ref[...], preferred_element_type=jnp.float32) * inv_sqrt_h
    k = jnp.dot(hn_b, wk_ref[...], preferred_element_type=jnp.float32)
    v = jnp.dot(hn_b, wv_ref[...], preferred_element_type=jnp.float32)

    h0_ref[...] = h0
    q_ref[...] = q
    k_ref[...] = k
    v_ref[...] = v


# ----------------------------------------------------------------------------
# Kernel 2: flash attention (online softmax over streamed KV tiles) fused with
#           residual + MLP + LM head on the last KV step.
# ----------------------------------------------------------------------------
def attn_mlp_head_kernel(q_ref, k_ref, v_ref, h0_ref, bias_ref,
                         wo_ref, ln2_g_ref, ln2_b_ref,
                         w1_ref, b1_ref, w2_ref, b2_ref,
                         lnf_g_ref, lnf_b_ref, w_head_ref, b_head_ref,
                         out_ref, m_sc, l_sc, acc_sc):
    ki = pl.program_id(2)

    @pl.when(ki == 0)
    def _():
        m_sc[...] = jnp.full_like(m_sc, -jnp.inf)
        l_sc[...] = jnp.zeros_like(l_sc)
        acc_sc[...] = jnp.zeros_like(acc_sc)

    q = q_ref[...].astype(jnp.bfloat16)               # (TQ, H), already /sqrt(H)
    k = k_ref[...].astype(jnp.bfloat16)               # (TK, H)
    s = jax.lax.dot_general(q, k, (((1,), (1,)), ((), ())),
                            preferred_element_type=jnp.float32)   # (TQ, TK)
    s = s + bias_ref[...]                             # (1, TK) additive mask bias

    m_prev = m_sc[...]
    m_new = jnp.maximum(m_prev, jnp.max(s, axis=-1, keepdims=True))
    alpha = jnp.exp(m_prev - m_new)
    p = jnp.exp(s - m_new)
    l_sc[...] = alpha * l_sc[...] + jnp.sum(p, axis=-1, keepdims=True)
    acc_sc[...] = alpha * acc_sc[...] + jnp.dot(
        p.astype(jnp.bfloat16), v_ref[...].astype(jnp.bfloat16),
        preferred_element_type=jnp.float32)
    m_sc[...] = m_new

    @pl.when(ki == pl.num_programs(2) - 1)
    def _():
        # normalize with EUP reciprocal (free slot vs. VALU divide)
        attn = acc_sc[...] * pl.reciprocal(l_sc[...], approx=True)
        ao = jnp.dot(attn.astype(jnp.bfloat16), wo_ref[...],
                     preferred_element_type=jnp.float32)
        h1 = h0_ref[...] + ao

        hn2 = _layernorm(h1, ln2_g_ref[...], ln2_b_ref[...])
        ff = jnp.dot(hn2.astype(jnp.bfloat16), w1_ref[...],
                     preferred_element_type=jnp.float32) + b1_ref[...]
        ff = jax.nn.gelu(ff, approximate=True)
        ff = jnp.dot(ff.astype(jnp.bfloat16), w2_ref[...],
                     preferred_element_type=jnp.float32) + b2_ref[...]
        h2 = h1 + ff

        hf = _layernorm(h2, lnf_g_ref[...], lnf_b_ref[...])
        logits = jnp.dot(hf.astype(jnp.bfloat16), w_head_ref[...],
                         preferred_element_type=jnp.float32) + b_head_ref[...]
        out_ref[...] = logits                          # (TQ, Kpad) lane-dense


# ----------------------------------------------------------------------------
# Kernel 3: discreteBayesianFlow — HBM-bound elementwise; large lane-dense rows
# ----------------------------------------------------------------------------
def bfn_flow_kernel(t_ref, x_ref, beta1_ref, eps_ref, mask_ref, theta_ref,
                    *, k_real, beta_time_order):
    t = t_ref[...]          # (TR, 1)
    x = x_ref[...]          # (TR, Kpad)
    beta1 = beta1_ref[...]  # (TR, 1)
    eps = eps_ref[...]      # (TR, Kpad)
    m = mask_ref[...]       # (TR, 1)

    beta = beta1 * t ** beta_time_order
    mean = beta * (k_real * x - 1.0)
    std = jnp.sqrt(beta * k_real)
    y = mean + std * eps
    # exclude the zero-padded vocab lanes from the softmax
    lane = jax.lax.broadcasted_iota(jnp.int32, y.shape, 1)
    y = jnp.where(lane < k_real, y, -1e30)
    y = y - jnp.max(y, axis=-1, keepdims=True)
    e = jnp.exp(y)
    theta = e * pl.reciprocal(jnp.sum(e, axis=-1, keepdims=True), approx=True)
    theta_ref[...] = theta * m + (1.0 - m) * x


# ----------------------------------------------------------------------------
# Wrappers
# ----------------------------------------------------------------------------
def profile_bfn_forward(t, inputs_embeds, attention_mask, params):
    """ProfileBFN.forward: (t [B,N], inputs_embeds [B,N,K], mask [B,N]) -> logits [B,N,K]."""
    B, N, K = inputs_embeds.shape
    H = params["wq"].shape[0]
    FF = params["w1"].shape[1]
    Kpad = _round_up(K, 128)
    bf16, f32 = jnp.bfloat16, jnp.float32

    # ----- weights: matmul operands in bf16, LN/bias/time params in f32 -----
    w_in = jnp.pad(params["w_in"].astype(f32), ((0, Kpad - K), (0, 0))).astype(bf16)
    wq, wk, wv, wo = (params[n].astype(bf16) for n in ("wq", "wk", "wv", "wo"))
    w1, w2 = params["w1"].astype(bf16), params["w2"].astype(bf16)
    w_head = jnp.pad(params["w_head"].astype(f32), ((0, 0), (0, Kpad - K))).astype(bf16)
    b_head = jnp.pad(params["b_head"].astype(f32), ((0, 0), (0, Kpad - K)))
    w_t = params["w_t"].astype(f32)
    ln1_g, ln1_b = params["ln1_g"].astype(f32), params["ln1_b"].astype(f32)
    ln2_g, ln2_b = params["ln2_g"].astype(f32), params["ln2_b"].astype(f32)
    lnf_g, lnf_b = params["lnf_g"].astype(f32), params["lnf_b"].astype(f32)
    b1, b2 = params["b1"].astype(f32), params["b2"].astype(f32)

    # ----- stage 1: fused embed + LN + Q/K/V over flattened, lane-padded rows -
    rows = B * N
    TR = _row_tile(rows)
    x_flat = jnp.pad(inputs_embeds.astype(f32),
                     ((0, 0), (0, 0), (0, Kpad - K))).reshape(rows, Kpad)
    t_flat = t.astype(f32).reshape(rows, 1)

    act = jax.ShapeDtypeStruct((rows, H), f32)
    row_in = pl.BlockSpec((TR, Kpad), lambda r: (r, 0))
    row_t = pl.BlockSpec((TR, 1), lambda r: (r, 0))
    row_out = pl.BlockSpec((TR, H), lambda r: (r, 0))
    w_spec = lambda shape: pl.BlockSpec(shape, lambda r: (0, 0))

    h0, q, k, v = pl.pallas_call(
        functools.partial(embed_qkv_kernel, inv_sqrt_h=1.0 / math.sqrt(H)),
        out_shape=(act, act, act, act),
        grid=(rows // TR,),
        in_specs=[row_in, row_t,
                  w_spec((Kpad, H)), w_spec((1, H)), w_spec((1, H)), w_spec((1, H)),
                  w_spec((H, H)), w_spec((H, H)), w_spec((H, H))],
        out_specs=(row_out, row_out, row_out, row_out),
        compiler_params=pltpu.CompilerParams(dimension_semantics=("parallel",)),
    )(x_flat, t_flat, w_in, w_t, ln1_g, ln1_b, wq, wk, wv)

    h0 = h0.reshape(B, N, H)
    q = q.reshape(B, N, H)
    k = k.reshape(B, N, H)
    v = v.reshape(B, N, H)

    # ----- stage 2: flash attention + MLP + head ----------------------------
    TQ = 128 if N % 128 == 0 else N
    TK = TQ
    bias = ((1.0 - attention_mask.astype(f32)) * -1e9).reshape(B, 1, N)

    q_spec = pl.BlockSpec((None, TQ, H), lambda b, qi, ki: (b, qi, 0))
    kv_spec = pl.BlockSpec((None, TK, H), lambda b, qi, ki: (b, ki, 0))
    bias_spec = pl.BlockSpec((None, 1, TK), lambda b, qi, ki: (b, 0, ki))
    rw = lambda shape: pl.BlockSpec(shape, lambda b, qi, ki: (0, 0))

    logits = pl.pallas_call(
        attn_mlp_head_kernel,
        out_shape=jax.ShapeDtypeStruct((B, N, Kpad), f32),
        grid=(B, N // TQ, N // TK),
        in_specs=[q_spec, kv_spec, kv_spec, q_spec, bias_spec,
                  rw((H, H)), rw((1, H)), rw((1, H)),
                  rw((H, FF)), rw((1, FF)), rw((FF, H)), rw((1, H)),
                  rw((1, H)), rw((1, H)), rw((H, Kpad)), rw((1, Kpad))],
        out_specs=pl.BlockSpec((None, TQ, Kpad), lambda b, qi, ki: (b, qi, 0)),
        scratch_shapes=[pltpu.VMEM((TQ, 1), f32),
                        pltpu.VMEM((TQ, 1), f32),
                        pltpu.VMEM((TQ, H), f32)],
        compiler_params=pltpu.CompilerParams(
            dimension_semantics=("parallel", "parallel", "arbitrary")),
    )(q, k, v, h0, bias,
      wo, ln2_g, ln2_b, w1, b1, w2, b2, lnf_g, lnf_b, w_head, b_head)

    return logits[:, :, :K]


def discrete_bayesian_flow(t, x, beta1, eps, mask, beta_time_order=2):
    """discreteBayesianFlow: t [B,N], x [B,N,K], beta1 [B,N], eps [B,N,K], mask [B,N]."""
    B, N, K = x.shape
    Kpad = _round_up(K, 128)
    rows = B * N
    TR = _row_tile(rows)
    f32 = jnp.float32
    pad = ((0, 0), (0, 0), (0, Kpad - K))

    x_f = jnp.pad(x.astype(f32), pad).reshape(rows, Kpad)
    e_f = jnp.pad(eps.astype(f32), pad).reshape(rows, Kpad)
    t_f = t.astype(f32).reshape(rows, 1)
    b_f = beta1.astype(f32).reshape(rows, 1)
    m_f = mask.astype(f32).reshape(rows, 1)

    wide = pl.BlockSpec((TR, Kpad), lambda r: (r, 0))
    thin = pl.BlockSpec((TR, 1), lambda r: (r, 0))

    theta = pl.pallas_call(
        functools.partial(bfn_flow_kernel, k_real=K,
                          beta_time_order=beta_time_order),
        out_shape=jax.ShapeDtypeStruct((rows, Kpad), f32),
        grid=(rows // TR,),
        in_specs=[thin, wide, thin, wide, thin],
        out_specs=wide,
        compiler_params=pltpu.CompilerParams(dimension_semantics=("parallel",)),
    )(t_f, x_f, b_f, e_f, m_f)

    return theta.reshape(B, N, Kpad)[:, :, :K]


# ----------------------------------------------------------------------------
# Pure-JAX references (mirror the kernel's bf16-operand / f32-accum numerics)
# ----------------------------------------------------------------------------
def forward_ref(t, x, mask, p):
    bf16, f32 = jnp.bfloat16, jnp.float32
    H = p["wq"].shape[0]
    dot = lambda a, b: jnp.dot(a.astype(bf16), b.astype(bf16),
                               preferred_element_type=f32)
    h0 = dot(x, p["w_in"]) + t[..., None] * p["w_t"]
    hn = _layernorm(h0, p["ln1_g"], p["ln1_b"])
    q = dot(hn, p["wq"]) * (1.0 / math.sqrt(H))
    k = dot(hn, p["wk"])
    v = dot(hn, p["wv"])
    s = jnp.einsum("bqh,bkh->bqk", q.astype(bf16), k.astype(bf16),
                   preferred_element_type=f32)
    s = s + (1.0 - mask[:, None, :]) * (-1e9)
    m = jnp.max(s, axis=-1, keepdims=True)
    e = jnp.exp(s - m)
    l = jnp.sum(e, axis=-1, keepdims=True)
    pv = jnp.einsum("bqk,bkh->bqh", e.astype(bf16), v.astype(bf16),
                    preferred_element_type=f32)
    ao = dot(pv / l, p["wo"])
    h1 = h0 + ao
    hn2 = _layernorm(h1, p["ln2_g"], p["ln2_b"])
    ff = jax.nn.gelu(dot(hn2, p["w1"]) + p["b1"], approximate=True)
    h2 = h1 + dot(ff, p["w2"]) + p["b2"]
    hf = _layernorm(h2, p["lnf_g"], p["lnf_b"])
    return dot(hf, p["w_head"]) + p["b_head"]


def bfn_flow_ref(t, x, beta1, eps, mask, beta_time_order=2):
    K = x.shape[-1]
    beta = (beta1 * t ** beta_time_order)[..., None]
    mean = beta * (K * x - 1.0)
    std = jnp.sqrt(beta * K)
    theta = jax.nn.softmax(mean + std * eps, axis=-1)
    return theta * mask[..., None] + (1.0 - mask[..., None]) * x


# ----------------------------------------------------------------------------
# Deterministic parameter init
# ----------------------------------------------------------------------------
def init_params(key, K, H, FF):
    ks = jax.random.split(key, 10)
    n = lambda k, shape, fan: jax.random.normal(k, shape, jnp.float32) / math.sqrt(fan)
    return {
        "w_in": n(ks[0], (K, H), K),
        "w_t": n(ks[1], (1, H), 1),
        "ln1_g": jnp.ones((1, H), jnp.float32), "ln1_b": jnp.zeros((1, H), jnp.float32),
        "wq": n(ks[2], (H, H), H), "wk": n(ks[3], (H, H), H),
        "wv": n(ks[4], (H, H), H), "wo": n(ks[5], (H, H), H),
        "ln2_g": jnp.ones((1, H), jnp.float32), "ln2_b": jnp.zeros((1, H), jnp.float32),
        "w1": n(ks[6], (H, FF), H), "b1": jnp.zeros((1, FF), jnp.float32),
        "w2": n(ks[7], (FF, H), FF), "b2": jnp.zeros((1, H), jnp.float32),
        "lnf_g": jnp.ones((1, H), jnp.float32), "lnf_b": jnp.zeros((1, H), jnp.float32),
        "w_head": n(ks[8], (H, K), H), "b_head": jnp.zeros((1, K), jnp.float32),
    }


# ----------------------------------------------------------------------------
if __name__ == "__main__":
    B, N, K, H, FF = 2, 256, 32, 128, 256
    key = jax.random.PRNGKey(0)
    k_param, k_x, k_eps = jax.random.split(key, 3)

    params = init_params(k_param, K, H, FF)

    # inputs: t in [0,1), inputs_embeds on the probability simplex, 0/1 mask
    t = jnp.full((B, N), 0.5, jnp.float32)
    inputs_embeds = jax.nn.softmax(
        jax.random.normal(k_x, (B, N, K), jnp.float32), axis=-1)
    attention_mask = jnp.ones((B, N), jnp.float32).at[1, -7:].set(0.0)

    # --- ProfileBFN.forward (Pallas) ---
    logits = profile_bfn_forward(t, inputs_embeds, attention_mask, params)
    logits_r = forward_ref(t, inputs_embeds, attention_mask, params)
    assert logits.shape == (B, N, K)
    assert jnp.allclose(logits, logits_r, rtol=2e-2, atol=2e-2), "forward mismatch"

    # --- discreteBayesianFlow (Pallas) ---
    beta1 = jnp.full((B, N), 1.5, jnp.float32)
    eps = jax.random.normal(k_eps, (B, N, K), jnp.float32)
    theta = discrete_bayesian_flow(t, inputs_embeds, beta1, eps, attention_mask,
                                   beta_time_order=2)
    theta_r = bfn_flow_ref(t, inputs_embeds, beta1, eps, attention_mask,
                           beta_time_order=2)
    assert theta.shape == (B, N, K)
    assert jnp.allclose(theta, theta_r, rtol=2e-2, atol=2e-2), "bfn flow mismatch"

    jax.block_until_ready((logits, theta))
    print("KERNEL_OK")
</pallas_src>

<mosaic_0001>
module attributes {stable_mosaic.version = 11 : i64} {
  func.func @embed_qkv_kernel(%arg0: i32, %arg1: memref<512x128xf32, #tpu.memory_space<vmem>>, %arg2: memref<512x1xf32, #tpu.memory_space<vmem>>, %arg3: memref<128x128xbf16, #tpu.memory_space<vmem>>, %arg4: memref<1x128xf32, #tpu.memory_space<vmem>>, %arg5: memref<1x128xf32, #tpu.memory_space<vmem>>, %arg6: memref<1x128xf32, #tpu.memory_space<vmem>>, %arg7: memref<128x128xbf16, #tpu.memory_space<vmem>>, %arg8: memref<128x128xbf16, #tpu.memory_space<vmem>>, %arg9: memref<128x128xbf16, #tpu.memory_space<vmem>>, %arg10: memref<512x128xf32, #tpu.memory_space<vmem>>, %arg11: memref<512x128xf32, #tpu.memory_space<vmem>>, %arg12: memref<512x128xf32, #tpu.memory_space<vmem>>, %arg13: memref<512x128xf32, #tpu.memory_space<vmem>>) attributes {dimension_semantics = [#tpu.dimension_semantics<parallel>], iteration_bounds = array<i64: 1>, scalar_prefetch = 0 : i64, scratch_operands = 0 : i64, tpu.core_type = #tpu.core_type<tc>, window_params = [{transform_indices = @transform_0, window_bounds = array<i64: 512, 128>}, {transform_indices = @transform_1, window_bounds = array<i64: 512, 1>}, {pipeline_mode = #tpu.pipeline_mode<synchronous>, transform_indices = @transform_2, window_bounds = array<i64: 128, 128>}, {pipeline_mode = #tpu.pipeline_mode<synchronous>, transform_indices = @transform_3, window_bounds = array<i64: 1, 128>}, {pipeline_mode = #tpu.pipeline_mode<synchronous>, transform_indices = @transform_4, window_bounds = array<i64: 1, 128>}, {pipeline_mode = #tpu.pipeline_mode<synchronous>, transform_indices = @transform_5, window_bounds = array<i64: 1, 128>}, {pipeline_mode = #tpu.pipeline_mode<synchronous>, transform_indices = @transform_6, window_bounds = array<i64: 128, 128>}, {pipeline_mode = #tpu.pipeline_mode<synchronous>, transform_indices = @transform_7, window_bounds = array<i64: 128, 128>}, {pipeline_mode = #tpu.pipeline_mode<synchronous>, transform_indices = @transform_8, window_bounds = array<i64: 128, 128>}, {transform_indices = @transform_9, window_bounds = array<i64: 512, 128>}, {transform_indices = @transform_10, window_bounds = array<i64: 512, 128>}, {transform_indices = @transform_11, window_bounds = array<i64: 512, 128>}, {transform_indices = @transform_12, window_bounds = array<i64: 512, 128>}]} {
    %c0 = arith.constant 0 : index
    %c0_0 = arith.constant 0 : index
    %0 = vector.load %arg1[%c0, %c0_0] : memref<512x128xf32, #tpu.memory_space<vmem>>, vector<512x128xf32>
    %c0_1 = arith.constant 0 : index
    %c0_2 = arith.constant 0 : index
    %1 = vector.load %arg2[%c0_1, %c0_2] : memref<512x1xf32, #tpu.memory_space<vmem>>, vector<512x1xf32>
    %2 = arith.truncf %0 : vector<512x128xf32> to vector<512x128xbf16>
    %c0_3 = arith.constant 0 : index
    %c0_4 = arith.constant 0 : index
    %3 = vector.load %arg3[%c0_3, %c0_4] : memref<128x128xbf16, #tpu.memory_space<vmem>>, vector<128x128xbf16>
    %cst = arith.constant dense<0.000000e+00> : vector<512x128xf32>
    %4 = tpu.matmul %2, %3, %cst {dimension_numbers = #tpu.dot_dimension_numbers<[1], [0], [0], [1], [0, 0, 1, 1], [], []>} : vector<512x128xbf16>, vector<128x128xbf16>, vector<512x128xf32> -> vector<512x128xf32>
    %c0_5 = arith.constant 0 : index
    %c0_6 = arith.constant 0 : index
    %5 = vector.load %arg4[%c0_5, %c0_6] : memref<1x128xf32, #tpu.memory_space<vmem>>, vector<1x128xf32>
    %6 = vector.broadcast %1 : vector<512x1xf32> to vector<512x128xf32>
    %7 = vector.broadcast %5 : vector<1x128xf32> to vector<512x128xf32>
    %8 = arith.mulf %6, %7 : vector<512x128xf32>
    %9 = arith.addf %4, %8 : vector<512x128xf32>
    %c0_7 = arith.constant 0 : index
    %c0_8 = arith.constant 0 : index
    %10 = vector.load %arg5[%c0_7, %c0_8] : memref<1x128xf32, #tpu.memory_space<vmem>>, vector<1x128xf32>
    %c0_9 = arith.constant 0 : index
    %c0_10 = arith.constant 0 : index
    %11 = vector.load %arg6[%c0_9, %c0_10] : memref<1x128xf32, #tpu.memory_space<vmem>>, vector<1x128xf32>
    %cst_11 = arith.constant dense<0.000000e+00> : vector<512xf32>
    %12 = vector.multi_reduction <add>, %9, %cst_11 [1] : vector<512x128xf32> to vector<512xf32>
    %13 = vector.shape_cast %12 : vector<512xf32> to vector<512x1xf32>
    %cst_12 = arith.constant 1.280000e+02 : f32
    %14 = vector.broadcast %cst_12 : f32 to vector<512x1xf32>
    %15 = arith.divf %13, %14 : vector<512x1xf32>
    %16 = vector.broadcast %15 : vector<512x1xf32> to vector<512x128xf32>
    %17 = arith.subf %9, %16 : vector<512x128xf32>
    %18 = arith.mulf %17, %17 : vector<512x128xf32>
    %cst_13 = arith.constant dense<0.000000e+00> : vector<512xf32>
    %19 = vector.multi_reduction <add>, %18, %cst_13 [1] : vector<512x128xf32> to vector<512xf32>
    %20 = vector.shape_cast %19 : vector<512xf32> to vector<512x1xf32>
    %cst_14 = arith.constant 1.280000e+02 : f32
    %21 = vector.broadcast %cst_14 : f32 to vector<512x1xf32>
    %22 = arith.divf %20, %21 : vector<512x1xf32>
    %23 = vector.broadcast %15 : vector<512x1xf32> to vector<512x128xf32>
    %24 = arith.subf %9, %23 : vector<512x128xf32>
    %cst_15 = arith.constant 9.99999974E-6 : f32
    %25 = vector.broadcast %cst_15 : f32 to vector<512x1xf32>
    %26 = arith.addf %22, %25 : vector<512x1xf32>
    %27 = math.rsqrt %26 : vector<512x1xf32>
    %28 = vector.broadcast %27 : vector<512x1xf32> to vector<512x128xf32>
    %29 = arith.mulf %24, %28 : vector<512x128xf32>
    %30 = vector.broadcast %10 : vector<1x128xf32> to vector<512x128xf32>
    %31 = arith.mulf %29, %30 : vector<512x128xf32>
    %32 = vector.broadcast %11 : vector<1x128xf32> to vector<512x128xf32>
    %33 = arith.addf %31, %32 : vector<512x128xf32>
    %34 = arith.truncf %33 : vector<512x128xf32> to vector<512x128xbf16>
    %c0_16 = arith.constant 0 : index
    %c0_17 = arith.constant 0 : index
    %35 = vector.load %arg7[%c0_16, %c0_17] : memref<128x128xbf16, #tpu.memory_space<vmem>>, vector<128x128xbf16>
    %cst_18 = arith.constant dense<0.000000e+00> : vector<512x128xf32>
    %36 = tpu.matmul %34, %35, %cst_18 {dimension_numbers = #tpu.dot_dimension_numbers<[1], [0], [0], [1], [0, 0, 1, 1], [], []>} : vector<512x128xbf16>, vector<128x128xbf16>, vector<512x128xf32> -> vector<512x128xf32>
    %cst_19 = arith.constant 0.0883883461 : f32
    %37 = vector.broadcast %cst_19 : f32 to vector<512x128xf32>
    %38 = arith.mulf %36, %37 : vector<512x128xf32>
    %c0_20 = arith.constant 0 : index
    %c0_21 = arith.constant 0 : index
    %39 = vector.load %arg8[%c0_20, %c0_21] : memref<128x128xbf16, #tpu.memory_space<vmem>>, vector<128x128xbf16>
    %cst_22 = arith.constant dense<0.000000e+00> : vector<512x128xf32>
    %40 = tpu.matmul %34, %39, %cst_22 {dimension_numbers = #tpu.dot_dimension_numbers<[1], [0], [0], [1], [0, 0, 1, 1], [], []>} : vector<512x128xbf16>, vector<128x128xbf16>, vector<512x128xf32> -> vector<512x128xf32>
    %c0_23 = arith.constant 0 : index
    %c0_24 = arith.constant 0 : index
    %41 = vector.load %arg9[%c0_23, %c0_24] : memref<128x128xbf16, #tpu.memory_space<vmem>>, vector<128x128xbf16>
    %cst_25 = arith.constant dense<0.000000e+00> : vector<512x128xf32>
    %42 = tpu.matmul %34, %41, %cst_25 {dimension_numbers = #tpu.dot_dimension_numbers<[1], [0], [0], [1], [0, 0, 1, 1], [], []>} : vector<512x128xbf16>, vector<128x128xbf16>, vector<512x128xf32> -> vector<512x128xf32>
    %c0_26 = arith.constant 0 : index
    %c0_27 = arith.constant 0 : index
    %43 = vector.load %arg10[%c0_26, %c0_27] : memref<512x128xf32, #tpu.memory_space<vmem>>, vector<512x128xf32>
    tpu.vector_store %arg10[%c0_26, %c0_27], %9 {strides = array<i32>} : memref<512x128xf32, #tpu.memory_space<vmem>>, vector<512x128xf32>,
    %c0_28 = arith.constant 0 : index
    %c0_29 = arith.constant 0 : index
    %44 = vector.load %arg11[%c0_28, %c0_29] : memref<512x128xf32, #tpu.memory_space<vmem>>, vector<512x128xf32>
    tpu.vector_store %arg11[%c0_28, %c0_29], %38 {strides = array<i32>} : memref<512x128xf32, #tpu.memory_space<vmem>>, vector<512x128xf32>,
    %c0_30 = arith.constant 0 : index
    %c0_31 = arith.constant 0 : index
    %45 = vector.load %arg12[%c0_30, %c0_31] : memref<512x128xf32, #tpu.memory_space<vmem>>, vector<512x128xf32>
    tpu.vector_store %arg12[%c0_30, %c0_31], %40 {strides = array<i32>} : memref<512x128xf32, #tpu.memory_space<vmem>>, vector<512x128xf32>,
    %c0_32 = arith.constant 0 : index
    %c0_33 = arith.constant 0 : index
    %46 = vector.load %arg13[%c0_32, %c0_33] : memref<512x128xf32, #tpu.memory_space<vmem>>, vector<512x128xf32>
    tpu.vector_store %arg13[%c0_32, %c0_33], %42 {strides = array<i32>} : memref<512x128xf32, #tpu.memory_space<vmem>>, vector<512x128xf32>,
    return
  }
  func.func @transform_0(%arg0: i32) -> (i32, i32) {
    %c0_i32 = arith.constant 0 : i32
    %c0_i32_0 = arith.constant 0 : i32
    return %arg0, %c0_i32 : i32, i32
  }
  func.func @transform_1(%arg0: i32) -> (i32, i32) {
    %c0_i32 = arith.constant 0 : i32
    %c0_i32_0 = arith.constant 0 : i32
    return %arg0, %c0_i32 : i32, i32
  }
  func.func @transform_2(%arg0: i32) -> (i32, i32) {
    %c0_i32 = arith.constant 0 : i32
    %c0_i32_0 = arith.constant 0 : i32
    %c0_i32_1 = arith.constant 0 : i32
    return %c0_i32, %c0_i32_0 : i32, i32
  }
  func.func @transform_3(%arg0: i32) -> (i32, i32) {
    %c0_i32 = arith.constant 0 : i32
    %c0_i32_0 = arith.constant 0 : i32
    %c0_i32_1 = arith.constant 0 : i32
    return %c0_i32, %c0_i32_0 : i32, i32
  }
  func.func @transform_4(%arg0: i32) -> (i32, i32) {
    %c0_i32 = arith.constant 0 : i32
    %c0_i32_0 = arith.constant 0 : i32
    %c0_i32_1 = arith.constant 0 : i32
    return %c0_i32, %c0_i32_0 : i32, i32
  }
  func.func @transform_5(%arg0: i32) -> (i32, i32) {
    %c0_i32 = arith.constant 0 : i32
    %c0_i32_0 = arith.constant 0 : i32
    %c0_i32_1 = arith.constant 0 : i32
    return %c0_i32, %c0_i32_0 : i32, i32
  }
  func.func @transform_6(%arg0: i32) -> (i32, i32) {
    %c0_i32 = arith.constant 0 : i32
    %c0_i32_0 = arith.constant 0 : i32
    %c0_i32_1 = arith.constant 0 : i32
    return %c0_i32, %c0_i32_0 : i32, i32
  }
  func.func @transform_7(%arg0: i32) -> (i32, i32) {
    %c0_i32 = arith.constant 0 : i32
    %c0_i32_0 = arith.constant 0 : i32
    %c0_i32_1 = arith.constant 0 : i32
    return %c0_i32, %c0_i32_0 : i32, i32
  }
  func.func @transform_8(%arg0: i32) -> (i32, i32) {
    %c0_i32 = arith.constant 0 : i32
    %c0_i32_0 = arith.constant 0 : i32
    %c0_i32_1 = arith.constant 0 : i32
    return %c0_i32, %c0_i32_0 : i32, i32
  }
  func.func @transform_9(%arg0: i32) -> (i32, i32) {
    %c0_i32 = arith.constant 0 : i32
    %c0_i32_0 = arith.constant 0 : i32
    return %arg0, %c0_i32 : i32, i32
  }
  func.func @transform_10(%arg0: i32) -> (i32, i32) {
    %c0_i32 = arith.constant 0 : i32
    %c0_i32_0 = arith.constant 0 : i32
    return %arg0, %c0_i32 : i32, i32
  }
  func.func @transform_11(%arg0: i32) -> (i32, i32) {
    %c0_i32 = arith.constant 0 : i32
    %c0_i32_0 = arith.constant 0 : i32
    return %arg0, %c0_i32 : i32, i32
  }
  func.func @transform_12(%arg0: i32) -> (i32, i32) {
    %c0_i32 = arith.constant 0 : i32
    %c0_i32_0 = arith.constant 0 : i32
    return %arg0, %c0_i32 : i32, i32
  }
}

</mosaic_0001>

<llo_original>
// kernel: tpu_custom_call.1
$region0: #{tpu_custom_call.1}
  #allocation0 [shape = 'u32[]', space=smem, size = 0x4, offset = 0x4, fixed_abs, tag = 'smem constant byte address 0x4 - core index']
  #allocation1 [shape = 'u32[144,128]{1,0:T(1,128)}', space=vmem, size = 0x12000, scoped, tag = 'internal scratch']
  %s0 = inlined_call_operand.vmem [shape: f32[512,128], index: 0, kind: input, shape index: {}]
  %s1 = inlined_call_operand.vmem [shape: f32[512,1], index: 1, kind: input, shape index: {}]
  %s2 = inlined_call_operand.hbm [shape: bf16[128,128], index: 2, kind: input, shape index: {}]
  %s3 = inlined_call_operand.vmem [shape: f32[1,128], index: 3, kind: input, shape index: {}]
  %s4 = inlined_call_operand.vmem [shape: f32[1,128], index: 4, kind: input, shape index: {}]
  %s5 = inlined_call_operand.vmem [shape: f32[1,128], index: 5, kind: input, shape index: {}]
  %s6 = inlined_call_operand.hbm [shape: bf16[128,128], index: 6, kind: input, shape index: {}]
  %s7 = inlined_call_operand.hbm [shape: bf16[128,128], index: 7, kind: input, shape index: {}]
  %s8 = inlined_call_operand.hbm [shape: bf16[128,128], index: 8, kind: input, shape index: {}]
  %s9 = inlined_call_operand.hbm [shape: f32[512,128], index: 9, kind: output, shape index: {0}]
  %s10 = inlined_call_operand.hbm [shape: f32[512,128], index: 10, kind: output, shape index: {1}]
  %s11 = inlined_call_operand.hbm [shape: f32[512,128], index: 11, kind: output, shape index: {2}]
  %s12 = inlined_call_operand.hbm [shape: f32[512,128], index: 12, kind: output, shape index: {3}]
  %13 = xla_tuple %s9, %s10, %s11, %s12
  %s14 = sld [smem:[#allocation0]]
  $region86: #{tpu_custom_call.1} parent=0
    _
  %s16 = ssub.s32 1, %s14
  %s17 = scalar_select 0, %s16, %s14
  $region1: #{tpu_custom_call.1} parent=0
    #allocation2 [shape = 'u8[32768]{0}', space=vmem, size = 0x8000, scoped, tag = 'input window, operand 2, single buffered']
    #allocation3 [shape = 's32[1]{0}', space=sflag, size = 0x4, scoped, tag = 'scoped memory for tpu_custom_call.1']
    #allocation4 [shape = 's32[1]{0}', space=sflag, size = 0x4, scoped, tag = 'scoped memory for tpu_custom_call.1']
    #allocation5 [shape = 'u8[32768]{0}', space=vmem, size = 0x8000, scoped, tag = 'input window, operand 6, single buffered']
    #allocation6 [shape = 's32[1]{0}', space=sflag, size = 0x4, scoped, tag = 'scoped memory for tpu_custom_call.1']
    #allocation7 [shape = 'u8[32768]{0}', space=vmem, size = 0x8000, scoped, tag = 'input window, operand 7, single buffered']
    #allocation8 [shape = 'u8[32768]{0}', space=vmem, size = 0x8000, scoped, tag = 'input window, operand 8, single buffered']
    #allocation9 [shape = 's32[1]{0}', space=sflag, size = 0x4, scoped, tag = 'scoped memory for tpu_custom_call.1']
    #allocation10 [shape = 'u8[262144]{0}', space=vmem, size = 0x40000, scoped, tag = 'output window, operand 0, single buffered']
    #allocation11 [shape = 'u8[262144]{0}', space=vmem, size = 0x40000, scoped, tag = 'output window, operand 1, single buffered']
    #allocation12 [shape = 's32[1]{0}', space=sflag, size = 0x4, scoped, tag = 'scoped memory for tpu_custom_call.1']
    #allocation13 [shape = 'u8[262144]{0}', space=vmem, size = 0x40000, scoped, tag = 'output window, operand 2, single buffered']
    #allocation14 [shape = 'u8[262144]{0}', space=vmem, size = 0x40000, scoped, tag = 'output window, operand 3, single buffered']
    #allocation15 [shape = 's32[1]{0}', space=sflag, size = 0x4, scoped, tag = 'scoped memory for tpu_custom_call.1']
    %18 = vsyncpa [#allocation3], 0
    %19 = vsyncpa [#allocation6], 0
    %20 = vsyncpa [#allocation9], 0
    %21 = vsyncpa [#allocation4], 0
    %22 = vsyncpa [#allocation12], 0
    %23 = vsyncpa [#allocation15], 0
    // Predicated region
    $region2: #{tpu_custom_call.1} parent=1 // pred_check
      _
    $region3: #{tpu_custom_call.1} parent=1 // pred_check_branch
      %25 = sbr.rel (0) target = $region5
    $region4: #{tpu_custom_call.1} parent=1 // pred_region
      _
    $region5: #{tpu_custom_call.1} parent=1 // pred_fallthru
      _
    // Predicated region
    $region6: #{tpu_custom_call.1} parent=1 // pred_check
      _
    $region7: #{tpu_custom_call.1} parent=1 // pred_check_branch
      %27 = sbr.rel (0) target = $region9
    $region8: #{tpu_custom_call.1} parent=1 // pred_region
      _
    $region9: #{tpu_custom_call.1} parent=1 // pred_fallthru
      _
    // Predicated region
    $region10: #{tpu_custom_call.1} parent=1 // pred_check
      _
    $region11: #{tpu_custom_call.1} parent=1 // pred_check_branch
      %29 = sbr.rel (0) target = $region13
    $region12: #{tpu_custom_call.1} parent=1 // pred_region
      %s31 = ssub.s32 1024, 1024
      %32 = vsyncadd [#allocation3], %s31
      %s33 = sshll.u32 [#allocation2], 4
      %s34 = int_to_ptr.vmem [resolvable:$true] %s33
      %39 = dma.hbm_to_vmem [thread:$0]  %s2, 1024, %s34, [#allocation3], 64, 64, 4
    $region13: #{tpu_custom_call.1} parent=1 // pred_fallthru
      _
    // Predicated region
    $region14: #{tpu_custom_call.1} parent=1 // pred_check
      _
    $region15: #{tpu_custom_call.1} parent=1 // pred_check_branch
      %41 = sbr.rel (0) target = $region17
    $region16: #{tpu_custom_call.1} parent=1 // pred_region
      _
    $region17: #{tpu_custom_call.1} parent=1 // pred_fallthru
      _
    // Predicated region
    $region18: #{tpu_custom_call.1} parent=1 // pred_check
      _
    $region19: #{tpu_custom_call.1} parent=1 // pred_check_branch
      %43 = sbr.rel (0) target = $region21
    $region20: #{tpu_custom_call.1} parent=1 // pred_region
      _
    $region21: #{tpu_custom_call.1} parent=1 // pred_fallthru
      _
    // Predicated region
    $region22: #{tpu_custom_call.1} parent=1 // pred_check
      _
    $region23: #{tpu_custom_call.1} parent=1 // pred_check_branch
      %45 = sbr.rel (0) target = $region25
    $region24: #{tpu_custom_call.1} parent=1 // pred_region
      _
    $region25: #{tpu_custom_call.1} parent=1 // pred_fallthru
      _
    // Predicated region
    $region26: #{tpu_custom_call.1} parent=1 // pred_check
      _
    $region27: #{tpu_custom_call.1} parent=1 // pred_check_branch
      %47 = sbr.rel (0) target = $region29
    $region28: #{tpu_custom_call.1} parent=1 // pred_region
      %s49 = ssub.s32 1024, 1024
      %50 = vsyncadd [#allocation6], %s49
      %s51 = sshll.u32 [#allocation5], 4
      %s52 = int_to_ptr.vmem [resolvable:$true] %s51
      %57 = dma.hbm_to_vmem [thread:$0]  %s6, 1024, %s52, [#allocation6], 64, 64, 4
    $region29: #{tpu_custom_call.1} parent=1 // pred_fallthru
      _
    // Predicated region
    $region30: #{tpu_custom_call.1} parent=1 // pred_check
      _
    $region31: #{tpu_custom_call.1} parent=1 // pred_check_branch
      %59 = sbr.rel (0) target = $region33
    $region32: #{tpu_custom_call.1} parent=1 // pred_region
      %s61 = ssub.s32 1024, 1024
      %62 = vsyncadd [#allocation6], %s61
      %s63 = sshll.u32 [#allocation7], 4
      %s64 = int_to_ptr.vmem [resolvable:$true] %s63
      %69 = dma.hbm_to_vmem [thread:$0]  %s7, 1024, %s64, [#allocation6], 64, 64, 4
    $region33: #{tpu_custom_call.1} parent=1 // pred_fallthru
      _
    // Predicated region
    $region34: #{tpu_custom_call.1} parent=1 // pred_check
      _
    $region35: #{tpu_custom_call.1} parent=1 // pred_check_branch
      %71 = sbr.rel (0) target = $region37
    $region36: #{tpu_custom_call.1} parent=1 // pred_region
      %s73 = ssub.s32 1024, 1024
      %74 = vsyncadd [#allocation9], %s73
      %s75 = sshll.u32 [#allocation8], 4
      %s76 = int_to_ptr.vmem [resolvable:$true] %s75
      %81 = dma.hbm_to_vmem [thread:$0]  %s8, 1024, %s76, [#allocation9], 64, 64, 4
    $region37: #{tpu_custom_call.1} parent=1 // pred_fallthru
      _
    // Predicated region
    $region38: #{tpu_custom_call.1} parent=1 // pred_check
      _
    $region39: #{tpu_custom_call.1} parent=1 // pred_check_branch
      %83 = sbr.rel (0) target = $region41
    $region40: #{tpu_custom_call.1} parent=1 // pred_region
      %84 = dma.done [#allocation3], 1024
    $region41: #{tpu_custom_call.1} parent=1 // pred_fallthru
      _
    // Predicated region
    $region42: #{tpu_custom_call.1} parent=1 // pred_check
      _
    $region43: #{tpu_custom_call.1} parent=1 // pred_check_branch
      %86 = sbr.rel (0) target = $region45
    $region44: #{tpu_custom_call.1} parent=1 // pred_region
      %87 = dma.done [#allocation6], 1024
    $region45: #{tpu_custom_call.1} parent=1 // pred_fallthru
      _
    // Predicated region
    $region46: #{tpu_custom_call.1} parent=1 // pred_check
      _
    $region47: #{tpu_custom_call.1} parent=1 // pred_check_branch
      %89 = sbr.rel (0) target = $region49
    $region48: #{tpu_custom_call.1} parent=1 // pred_region
      %90 = dma.done [#allocation6], 1024
    $region49: #{tpu_custom_call.1} parent=1 // pred_fallthru
      _
    // Predicated region
    $region50: #{tpu_custom_call.1} parent=1 // pred_check
      _
    $region51: #{tpu_custom_call.1} parent=1 // pred_check_branch
      %92 = sbr.rel (0) target = $region53
    $region52: #{tpu_custom_call.1} parent=1 // pred_region
      %93 = dma.done [#allocation9], 1024
    $region53: #{tpu_custom_call.1} parent=1 // pred_fallthru
      _
    %v95 = vld [vmem:[%s0] sm:$0xff]
    %v96 = vld [vmem:[%s0 + $0x8] sm:$0xff]
    %v97 = vld [vmem:[%s0 + $0x10] sm:$0xff]
    %v98 = vld [vmem:[%s0 + $0x18] sm:$0xff]
    %v99 = vld [vmem:[%s0 + $0x20] sm:$0xff]
    %v100 = vld [vmem:[%s0 + $0x28] sm:$0xff]
    %v101 = vld [vmem:[%s0 + $0x30] sm:$0xff]
    %v102 = vld [vmem:[%s0 + $0x38] sm:$0xff]
    %v103 = vld [vmem:[%s0 + $0x40] sm:$0xff]
    %v104 = vld [vmem:[%s0 + $0x48] sm:$0xff]
    %v105 = vld [vmem:[%s0 + $0x50] sm:$0xff]
    %v106 = vld [vmem:[%s0 + $0x58] sm:$0xff]
    %v107 = vld [vmem:[%s0 + $0x60] sm:$0xff]
    %v108 = vld [vmem:[%s0 + $0x68] sm:$0xff]
    %v109 = vld [vmem:[%s0 + $0x70] sm:$0xff]
    %v110 = vld [vmem:[%s0 + $0x78] sm:$0xff]
    %v111 = vld [vmem:[%s0 + $0x80] sm:$0xff]
    %v112 = vld [vmem:[%s0 + $0x88] sm:$0xff]
    %v113 = vld [vmem:[%s0 + $0x90] sm:$0xff]
    %v114 = vld [vmem:[%s0 + $0x98] sm:$0xff]
    %v115 = vld [vmem:[%s0 + $0xa0] sm:$0xff]
    %v116 = vld [vmem:[%s0 + $0xa8] sm:$0xff]
    %v117 = vld [vmem:[%s0 + $0xb0] sm:$0xff]
    %v118 = vld [vmem:[%s0 + $0xb8] sm:$0xff]
    %v119 = vld [vmem:[%s0 + $0xc0] sm:$0xff]
    %v120 = vld [vmem:[%s0 + $0xc8] sm:$0xff]
    %v121 = vld [vmem:[%s0 + $0xd0] sm:$0xff]
    %v122 = vld [vmem:[%s0 + $0xd8] sm:$0xff]
    %v123 = vld [vmem:[%s0 + $0xe0] sm:$0xff]
    %v124 = vld [vmem:[%s0 + $0xe8] sm:$0xff]
    %v125 = vld [vmem:[%s0 + $0xf0] sm:$0xff]
    %v126 = vld [vmem:[%s0 + $0xf8] sm:$0xff]
    %v127 = vld [vmem:[%s0 + $0x100] sm:$0xff]
    %v128 = vld [vmem:[%s0 + $0x108] sm:$0xff]
    %v129 = vld [vmem:[%s0 + $0x110] sm:$0xff]
    %v130 = vld [vmem:[%s0 + $0x118] sm:$0xff]
    %v131 = vld [vmem:[%s0 + $0x120] sm:$0xff]
    %v132 = vld [vmem:[%s0 + $0x128] sm:$0xff]
    %v133 = vld [vmem:[%s0 + $0x130] sm:$0xff]
    %v134 = vld [vmem:[%s0 + $0x138] sm:$0xff]
    %v135 = vld [vmem:[%s0 + $0x140] sm:$0xff]
    %v136 = vld [vmem:[%s0 + $0x148] sm:$0xff]
    %v137 = vld [vmem:[%s0 + $0x150] sm:$0xff]
    %v138 = vld [vmem:[%s0 + $0x158] sm:$0xff]
    %v139 = vld [vmem:[%s0 + $0x160] sm:$0xff]
    %v140 = vld [vmem:[%s0 + $0x168] sm:$0xff]
    %v141 = vld [vmem:[%s0 + $0x170] sm:$0xff]
    %v142 = vld [vmem:[%s0 + $0x178] sm:$0xff]
    %v143 = vld [vmem:[%s0 + $0x180] sm:$0xff]
    %v144 = vld [vmem:[%s0 + $0x188] sm:$0xff]
    %v145 = vld [vmem:[%s0 + $0x190] sm:$0xff]
    %v146 = vld [vmem:[%s0 + $0x198] sm:$0xff]
    %v147 = vld [vmem:[%s0 + $0x1a0] sm:$0xff]
    %v148 = vld [vmem:[%s0 + $0x1a8] sm:$0xff]
    %v149 = vld [vmem:[%s0 + $0x1b0] sm:$0xff]
    %v150 = vld [vmem:[%s0 + $0x1b8] sm:$0xff]
    %v151 = vld [vmem:[%s0 + $0x1c0] sm:$0xff]
    %v152 = vld [vmem:[%s0 + $0x1c8] sm:$0xff]
    %v153 = vld [vmem:[%s0 + $0x1d0] sm:$0xff]
    %v154 = vld [vmem:[%s0 + $0x1d8] sm:$0xff]
    %v155 = vld [vmem:[%s0 + $0x1e0] sm:$0xff]
    %v156 = vld [vmem:[%s0 + $0x1e8] sm:$0xff]
    %v157 = vld [vmem:[%s0 + $0x1f0] sm:$0xff]
    %v158 = vld [vmem:[%s0 + $0x1f8] sm:$0xff]
    %v159 = vld [vmem:[%s1] sm:$0xff]
    %v160 = vld [vmem:[%s1 + $0x8] sm:$0xff]
    %v161 = vld [vmem:[%s1 + $0x10] sm:$0xff]
    %v162 = vld [vmem:[%s1 + $0x18] sm:$0xff]
    %v163 = vld [vmem:[%s1 + $0x20] sm:$0xff]
    %v164 = vld [vmem:[%s1 + $0x28] sm:$0xff]
    %v165 = vld [vmem:[%s1 + $0x30] sm:$0xff]
    %v166 = vld [vmem:[%s1 + $0x38] sm:$0xff]
    %v167 = vld [vmem:[%s1 + $0x40] sm:$0xff]
    %v168 = vld [vmem:[%s1 + $0x48] sm:$0xff]
    %v169 = vld [vmem:[%s1 + $0x50] sm:$0xff]
    %v170 = vld [vmem:[%s1 + $0x58] sm:$0xff]
    %v171 = vld [vmem:[%s1 + $0x60] sm:$0xff]
    %v172 = vld [vmem:[%s1 + $0x68] sm:$0xff]
    %v173 = vld [vmem:[%s1 + $0x70] sm:$0xff]
    %v174 = vld [vmem:[%s1 + $0x78] sm:$0xff]
    %v175 = vld [vmem:[%s1 + $0x80] sm:$0xff]
    %v176 = vld [vmem:[%s1 + $0x88] sm:$0xff]
    %v177 = vld [vmem:[%s1 + $0x90] sm:$0xff]
    %v178 = vld [vmem:[%s1 + $0x98] sm:$0xff]
    %v179 = vld [vmem:[%s1 + $0xa0] sm:$0xff]
    %v180 = vld [vmem:[%s1 + $0xa8] sm:$0xff]
    %v181 = vld [vmem:[%s1 + $0xb0] sm:$0xff]
    %v182 = vld [vmem:[%s1 + $0xb8] sm:$0xff]
    %v183 = vld [vmem:[%s1 + $0xc0] sm:$0xff]
    %v184 = vld [vmem:[%s1 + $0xc8] sm:$0xff]
    %v185 = vld [vmem:[%s1 + $0xd0] sm:$0xff]
    %v186 = vld [vmem:[%s1 + $0xd8] sm:$0xff]
    %v187 = vld [vmem:[%s1 + $0xe0] sm:$0xff]
    %v188 = vld [vmem:[%s1 + $0xe8] sm:$0xff]
    %v189 = vld [vmem:[%s1 + $0xf0] sm:$0xff]
    %v190 = vld [vmem:[%s1 + $0xf8] sm:$0xff]
    %v191 = vld [vmem:[%s1 + $0x100] sm:$0xff]
    %v192 = vld [vmem:[%s1 + $0x108] sm:$0xff]
    %v193 = vld [vmem:[%s1 + $0x110] sm:$0xff]
    %v194 = vld [vmem:[%s1 + $0x118] sm:$0xff]
    %v195 = vld [vmem:[%s1 + $0x120] sm:$0xff]
    %v196 = vld [vmem:[%s1 + $0x128] sm:$0xff]
    %v197 = vld [vmem:[%s1 + $0x130] sm:$0xff]
    %v198 = vld [vmem:[%s1 + $0x138] sm:$0xff]
    %v199 = vld [vmem:[%s1 + $0x140] sm:$0xff]
    %v200 = vld [vmem:[%s1 + $0x148] sm:$0xff]
    %v201 = vld [vmem:[%s1 + $0x150] sm:$0xff]
    %v202 = vld [vmem:[%s1 + $0x158] sm:$0xff]
    %v203 = vld [vmem:[%s1 + $0x160] sm:$0xff]
    %v204 = vld [vmem:[%s1 + $0x168] sm:$0xff]
    %v205 = vld [vmem:[%s1 + $0x170] sm:$0xff]
    %v206 = vld [vmem:[%s1 + $0x178] sm:$0xff]
    %v207 = vld [vmem:[%s1 + $0x180] sm:$0xff]
    %v208 = vld [vmem:[%s1 + $0x188] sm:$0xff]
    %v209 = vld [vmem:[%s1 + $0x190] sm:$0xff]
    %v210 = vld [vmem:[%s1 + $0x198] sm:$0xff]
    %v211 = vld [vmem:[%s1 + $0x1a0] sm:$0xff]
    %v212 = vld [vmem:[%s1 + $0x1a8] sm:$0xff]
    %v213 = vld [vmem:[%s1 + $0x1b0] sm:$0xff]
    %v214 = vld [vmem:[%s1 + $0x1b8] sm:$0xff]
    %v215 = vld [vmem:[%s1 + $0x1c0] sm:$0xff]
    %v216 = vld [vmem:[%s1 + $0x1c8] sm:$0xff]
    %v217 = vld [vmem:[%s1 + $0x1d0] sm:$0xff]
    %v218 = vld [vmem:[%s1 + $0x1d8] sm:$0xff]
    %v219 = vld [vmem:[%s1 + $0x1e0] sm:$0xff]
    %v220 = vld [vmem:[%s1 + $0x1e8] sm:$0xff]
    %v221 = vld [vmem:[%s1 + $0x1f0] sm:$0xff]
    %v222 = vld [vmem:[%s1 + $0x1f8] sm:$0xff]
    %v223 = vpack.c.bf16 %v96, %v95
    %v224 = vpack.c.bf16 %v98, %v97
    %v225 = vpack.c.bf16 %v100, %v99
    %v226 = vpack.c.bf16 %v102, %v101
    %v227 = vpack.c.bf16 %v104, %v103
    %v228 = vpack.c.bf16 %v106, %v105
    %v229 = vpack.c.bf16 %v108, %v107
    %v230 = vpack.c.bf16 %v110, %v109
    %v231 = vpack.c.bf16 %v112, %v111
    %v232 = vpack.c.bf16 %v114, %v113
    %v233 = vpack.c.bf16 %v116, %v115
    %v234 = vpack.c.bf16 %v118, %v117
    %v235 = vpack.c.bf16 %v120, %v119
    %v236 = vpack.c.bf16 %v122, %v121
    %v237 = vpack.c.bf16 %v124, %v123
    %v238 = vpack.c.bf16 %v126, %v125
    %v239 = vpack.c.bf16 %v128, %v127
    %v240 = vpack.c.bf16 %v130, %v129
    %v241 = vpack.c.bf16 %v132, %v131
    %v242 = vpack.c.bf16 %v134, %v133
    %v243 = vpack.c.bf16 %v136, %v135
    %v244 = vpack.c.bf16 %v138, %v137
    %v245 = vpack.c.bf16 %v140, %v139
    %v246 = vpack.c.bf16 %v142, %v141
    %v247 = vpack.c.bf16 %v144, %v143
    %v248 = vpack.c.bf16 %v146, %v145
    %v249 = vpack.c.bf16 %v148, %v147
    %v250 = vpack.c.bf16 %v150, %v149
    %v251 = vpack.c.bf16 %v152, %v151
    %v252 = vpack.c.bf16 %v154, %v153
    %v253 = vpack.c.bf16 %v156, %v155
    %v254 = vpack.c.bf16 %v158, %v157
    %v255 = vld [vmem:[#allocation2] sm:$0xf]
    %v256 = vld [vmem:[#allocation2 + $0x4] sm:$0xf]
    %v257 = vld [vmem:[#allocation2 + $0x8] sm:$0xf]
    %v258 = vld [vmem:[#allocation2 + $0xc] sm:$0xf]
    %v259 = vld [vmem:[#allocation2 + $0x10] sm:$0xf]
    %v260 = vld [vmem:[#allocation2 + $0x14] sm:$0xf]
    %v261 = vld [vmem:[#allocation2 + $0x18] sm:$0xf]
    %v262 = vld [vmem:[#allocation2 + $0x1c] sm:$0xf]
    %v263 = vld [vmem:[#allocation2 + $0x20] sm:$0xf]
    %v264 = vld [vmem:[#allocation2 + $0x24] sm:$0xf]
    %v265 = vld [vmem:[#allocation2 + $0x28] sm:$0xf]
    %v266 = vld [vmem:[#allocation2 + $0x2c] sm:$0xf]
    %v267 = vld [vmem:[#allocation2 + $0x30] sm:$0xf]
    %v268 = vld [vmem:[#allocation2 + $0x34] sm:$0xf]
    %v269 = vld [vmem:[#allocation2 + $0x38] sm:$0xf]
    %v270 = vld [vmem:[#allocation2 + $0x3c] sm:$0xf]
    %v271 = vld [vmem:[%s3] sm:$0x1]
    %273 = vset.pattern.permute.xlu0 0
    %274 = vperm.xlu0 %273, %v159
    %v275 = vpop.permute.xlu0 %274
    %278 = vset.pattern.permute.xlu0 0
    %279 = vperm.xlu0 %278, %v160
    %v280 = vpop.permute.xlu0 %279
    %283 = vset.pattern.permute.xlu0 0
    %284 = vperm.xlu0 %283, %v161
    %v285 = vpop.permute.xlu0 %284
    %288 = vset.pattern.permute.xlu0 0
    %289 = vperm.xlu0 %288, %v162
    %v290 = vpop.permute.xlu0 %289
    %293 = vset.pattern.permute.xlu0 0
    %294 = vperm.xlu0 %293, %v163
    %v295 = vpop.permute.xlu0 %294
    %298 = vset.pattern.permute.xlu0 0
    %299 = vperm.xlu0 %298, %v164
    %v300 = vpop.permute.xlu0 %299
    %303 = vset.pattern.permute.xlu0 0
    %304 = vperm.xlu0 %303, %v165
    %v305 = vpop.permute.xlu0 %304
    %308 = vset.pattern.permute.xlu0 0
    %309 = vperm.xlu0 %308, %v166
    %v310 = vpop.permute.xlu0 %309
    %313 = vset.pattern.permute.xlu0 0
    %314 = vperm.xlu0 %313, %v167
    %v315 = vpop.permute.xlu0 %314
    %318 = vset.pattern.permute.xlu0 0
    %319 = vperm.xlu0 %318, %v168
    %v320 = vpop.permute.xlu0 %319
    %323 = vset.pattern.permute.xlu0 0
    %324 = vperm.xlu0 %323, %v169
    %v325 = vpop.permute.xlu0 %324
    %328 = vset.pattern.permute.xlu0 0
    %329 = vperm.xlu0 %328, %v170
    %v330 = vpop.permute.xlu0 %329
    %333 = vset.pattern.permute.xlu0 0
    %334 = vperm.xlu0 %333, %v171
    %v335 = vpop.permute.xlu0 %334
    %338 = vset.pattern.permute.xlu0 0
    %339 = vperm.xlu0 %338, %v172
    %v340 = vpop.permute.xlu0 %339
    %343 = vset.pattern.permute.xlu0 0
    %344 = vperm.xlu0 %343, %v173
    %v345 = vpop.permute.xlu0 %344
    %348 = vset.pattern.permute.xlu0 0
    %349 = vperm.xlu0 %348, %v174
    %v350 = vpop.permute.xlu0 %349
    %353 = vset.pattern.permute.xlu0 0
    %354 = vperm.xlu0 %353, %v175
    %v355 = vpop.permute.xlu0 %354
    %358 = vset.pattern.permute.xlu0 0
    %359 = vperm.xlu0 %358, %v176
    %v360 = vpop.permute.xlu0 %359
    %363 = vset.pattern.permute.xlu0 0
    %364 = vperm.xlu0 %363, %v177
    %v365 = vpop.permute.xlu0 %364
    %368 = vset.pattern.permute.xlu0 0
    %369 = vperm.xlu0 %368, %v178
    %v370 = vpop.permute.xlu0 %369
    %373 = vset.pattern.permute.xlu0 0
    %374 = vperm.xlu0 %373, %v179
    %v375 = vpop.permute.xlu0 %374
    %378 = vset.pattern.permute.xlu0 0
    %379 = vperm.xlu0 %378, %v180
    %v380 = vpop.permute.xlu0 %379
    %383 = vset.pattern.permute.xlu0 0
    %384 = vperm.xlu0 %383, %v181
    %v385 = vpop.permute.xlu0 %384
    %388 = vset.pattern.permute.xlu0 0
    %389 = vperm.xlu0 %388, %v182
    %v390 = vpop.permute.xlu0 %389
    %393 = vset.pattern.permute.xlu0 0
    %394 = vperm.xlu0 %393, %v183
    %v395 = vpop.permute.xlu0 %394
    %398 = vset.pattern.permute.xlu0 0
    %399 = vperm.xlu0 %398, %v184
    %v400 = vpop.permute.xlu0 %399
    %403 = vset.pattern.permute.xlu0 0
    %404 = vperm.xlu0 %403, %v185
    %v405 = vpop.permute.xlu0 %404
    %408 = vset.pattern.permute.xlu0 0
    %409 = vperm.xlu0 %408, %v186
    %v410 = vpop.permute.xlu0 %409
    %413 = vset.pattern.permute.xlu0 0
    %414 = vperm.xlu0 %413, %v187
    %v415 = vpop.permute.xlu0 %414
    %418 = vset.pattern.permute.xlu0 0
    %419 = vperm.xlu0 %418, %v188
    %v420 = vpop.permute.xlu0 %419
    %423 = vset.pattern.permute.xlu0 0
    %424 = vperm.xlu0 %423, %v189
    %v425 = vpop.permute.xlu0 %424
    %428 = vset.pattern.permute.xlu0 0
    %429 = vperm.xlu0 %428, %v190
    %v430 = vpop.permute.xlu0 %429
    %433 = vset.pattern.permute.xlu0 0
    %434 = vperm.xlu0 %433, %v191
    %v435 = vpop.permute.xlu0 %434
    %438 = vset.pattern.permute.xlu0 0
    %439 = vperm.xlu0 %438, %v192
    %v440 = vpop.permute.xlu0 %439
    %443 = vset.pattern.permute.xlu0 0
    %444 = vperm.xlu0 %443, %v193
    %v445 = vpop.permute.xlu0 %444
    %448 = vset.pattern.permute.xlu0 0
    %449 = vperm.xlu0 %448, %v194
    %v450 = vpop.permute.xlu0 %449
    %453 = vset.pattern.permute.xlu0 0
    %454 = vperm.xlu0 %453, %v195
    %v455 = vpop.permute.xlu0 %454
    %458 = vset.pattern.permute.xlu0 0
    %459 = vperm.xlu0 %458, %v196
    %v460 = vpop.permute.xlu0 %459
    %463 = vset.pattern.permute.xlu0 0
    %464 = vperm.xlu0 %463, %v197
    %v465 = vpop.permute.xlu0 %464
    %468 = vset.pattern.permute.xlu0 0
    %469 = vperm.xlu0 %468, %v198
    %v470 = vpop.permute.xlu0 %469
    %473 = vset.pattern.permute.xlu0 0
    %474 = vperm.xlu0 %473, %v199
    %v475 = vpop.permute.xlu0 %474
    %478 = vset.pattern.permute.xlu0 0
    %479 = vperm.xlu0 %478, %v200
    %v480 = vpop.permute.xlu0 %479
    %483 = vset.pattern.permute.xlu0 0
    %484 = vperm.xlu0 %483, %v201
    %v485 = vpop.permute.xlu0 %484
    %488 = vset.pattern.permute.xlu0 0
    %489 = vperm.xlu0 %488, %v202
    %v490 = vpop.permute.xlu0 %489
    %493 = vset.pattern.permute.xlu0 0
    %494 = vperm.xlu0 %493, %v203
    %v495 = vpop.permute.xlu0 %494
    %498 = vset.pattern.permute.xlu0 0
    %499 = vperm.xlu0 %498, %v204
    %v500 = vpop.permute.xlu0 %499
    %503 = vset.pattern.permute.xlu0 0
    %504 = vperm.xlu0 %503, %v205
    %v505 = vpop.permute.xlu0 %504
    %508 = vset.pattern.permute.xlu0 0
    %509 = vperm.xlu0 %508, %v206
    %v510 = vpop.permute.xlu0 %509
    %513 = vset.pattern.permute.xlu0 0
    %514 = vperm.xlu0 %513, %v207
    %v515 = vpop.permute.xlu0 %514
    %518 = vset.pattern.permute.xlu0 0
    %519 = vperm.xlu0 %518, %v208
    %v520 = vpop.permute.xlu0 %519
    %523 = vset.pattern.permute.xlu0 0
    %524 = vperm.xlu0 %523, %v209
    %v525 = vpop.permute.xlu0 %524
    %528 = vset.pattern.permute.xlu0 0
    %529 = vperm.xlu0 %528, %v210
    %v530 = vpop.permute.xlu0 %529
    %533 = vset.pattern.permute.xlu0 0
    %534 = vperm.xlu0 %533, %v211
    %v535 = vpop.permute.xlu0 %534
    %538 = vset.pattern.permute.xlu0 0
    %539 = vperm.xlu0 %538, %v212
    %v540 = vpop.permute.xlu0 %539
    %543 = vset.pattern.permute.xlu0 0
    %544 = vperm.xlu0 %543, %v213
    %v545 = vpop.permute.xlu0 %544
    %548 = vset.pattern.permute.xlu0 0
    %549 = vperm.xlu0 %548, %v214
    %v550 = vpop.permute.xlu0 %549
    %553 = vset.pattern.permute.xlu0 0
    %554 = vperm.xlu0 %553, %v215
    %v555 = vpop.permute.xlu0 %554
    %558 = vset.pattern.permute.xlu0 0
    %559 = vperm.xlu0 %558, %v216
    %v560 = vpop.permute.xlu0 %559
    %563 = vset.pattern.permute.xlu0 0
    %564 = vperm.xlu0 %563, %v217
    %v565 = vpop.permute.xlu0 %564
    %568 = vset.pattern.permute.xlu0 0
    %569 = vperm.xlu0 %568, %v218
    %v570 = vpop.permute.xlu0 %569
    %573 = vset.pattern.permute.xlu0 0
    %574 = vperm.xlu0 %573, %v219
    %v575 = vpop.permute.xlu0 %574
    %578 = vset.pattern.permute.xlu0 0
    %579 = vperm.xlu0 %578, %v220
    %v580 = vpop.permute.xlu0 %579
    %583 = vset.pattern.permute.xlu0 0
    %584 = vperm.xlu0 %583, %v221
    %v585 = vpop.permute.xlu0 %584
    %588 = vset.pattern.permute.xlu0 0
    %589 = vperm.xlu0 %588, %v222
    %v590 = vpop.permute.xlu0 %589
    %v593 = vlaneseq
    %v594 = vshrl.u32 %v593, 7
    %v595 = vsub.s32 0, %v594
    %v596 = vrot.slane %v271, %v595
    %v598 = vmul.f32 %v275, %v596
    %v599 = vmul.f32 %v280, %v596
    %v600 = vmul.f32 %v285, %v596
    %v601 = vmul.f32 %v290, %v596
    %v602 = vmul.f32 %v295, %v596
    %v603 = vmul.f32 %v300, %v596
    %v604 = vmul.f32 %v305, %v596
    %v605 = vmul.f32 %v310, %v596
    %v606 = vmul.f32 %v315, %v596
    %v607 = vmul.f32 %v320, %v596
    %v608 = vmul.f32 %v325, %v596
    %v609 = vmul.f32 %v330, %v596
    %v610 = vmul.f32 %v335, %v596
    %v611 = vmul.f32 %v340, %v596
    %v612 = vmul.f32 %v345, %v596
    %v613 = vmul.f32 %v350, %v596
    %v614 = vmul.f32 %v355, %v596
    %v615 = vmul.f32 %v360, %v596
    %v616 = vmul.f32 %v365, %v596
    %v617 = vmul.f32 %v370, %v596
    %v618 = vmul.f32 %v375, %v596
    %v619 = vmul.f32 %v380, %v596
    %v620 = vmul.f32 %v385, %v596
    %v621 = vmul.f32 %v390, %v596
    %v622 = vmul.f32 %v395, %v596
    %v623 = vmul.f32 %v400, %v596
    %v624 = vmul.f32 %v405, %v596
    %v625 = vmul.f32 %v410, %v596
    %v626 = vmul.f32 %v415, %v596
    %v627 = vmul.f32 %v420, %v596
    %v628 = vmul.f32 %v425, %v596
    %v629 = vmul.f32 %v430, %v596
    %v630 = vmul.f32 %v435, %v596
    %v631 = vmul.f32 %v440, %v596
    %v632 = vmul.f32 %v445, %v596
    %v633 = vmul.f32 %v450, %v596
    %v634 = vmul.f32 %v455, %v596
    %v635 = vmul.f32 %v460, %v596
    %v636 = vmul.f32 %v465, %v596
    %v637 = vmul.f32 %v470, %v596
    %v638 = vmul.f32 %v475, %v596
    %v639 = vmul.f32 %v480, %v596
    %v640 = vmul.f32 %v485, %v596
    %v641 = vmul.f32 %v490, %v596
    %v642 = vmul.f32 %v495, %v596
    %v643 = vmul.f32 %v500, %v596
    %v644 = vmul.f32 %v505, %v596
    %v645 = vmul.f32 %v510, %v596
    %v646 = vmul.f32 %v515, %v596
    %v647 = vmul.f32 %v520, %v596
    %v648 = vmul.f32 %v525, %v596
    %v649 = vmul.f32 %v530, %v596
    %v650 = vmul.f32 %v535, %v596
    %v651 = vmul.f32 %v540, %v596
    %v652 = vmul.f32 %v545, %v596
    %v653 = vmul.f32 %v550, %v596
    %v654 = vmul.f32 %v555, %v596
    %v655 = vmul.f32 %v560, %v596
    %v656 = vmul.f32 %v565, %v596
    %v657 = vmul.f32 %v570, %v596
    %v658 = vmul.f32 %v575, %v596
    %v659 = vmul.f32 %v580, %v596
    %v660 = vmul.f32 %v585, %v596
    %v661 = vmul.f32 %v590, %v596
    %v678 = vunpack.c.l.b16 %v255
    %v679 = vunpack.c.l.b16 %v256
    %v680 = vunpack.c.l.b16 %v257
    %v681 = vunpack.c.l.b16 %v258
    %v682 = vunpack.c.l.b16 %v259
    %v683 = vunpack.c.l.b16 %v260
    %v684 = vunpack.c.l.b16 %v261
    %v685 = vunpack.c.l.b16 %v262
    %v686 = vunpack.c.l.b16 %v263
    %v687 = vunpack.c.l.b16 %v264
    %v688 = vunpack.c.l.b16 %v265
    %v689 = vunpack.c.l.b16 %v266
    %v690 = vunpack.c.l.b16 %v267
    %v691 = vunpack.c.l.b16 %v268
    %v692 = vunpack.c.l.b16 %v269
    %v693 = vunpack.c.l.b16 %v270
    %v694 = vpack.c.b16 %v679, %v678
    %v695 = vpack.c.b16 %v681, %v680
    %v696 = vpack.c.b16 %v683, %v682
    %v697 = vpack.c.b16 %v685, %v684
    %v698 = vpack.c.b16 %v687, %v686
    %v699 = vpack.c.b16 %v689, %v688
    %v700 = vpack.c.b16 %v691, %v690
    %v701 = vpack.c.b16 %v693, %v692
    %710 = vmatprep.subr.bf16.mxu0 0
    %711 = vmatpush1.bf16.msra.mxu0 %v701
    %712 = vmatprep.subr.bf16.mxu0 0
    %713 = vmatpush1.bf16.msra.mxu0 %v700
    %714 = vmatprep.subr.bf16.mxu0 0
    %715 = vmatpush1.bf16.msra.mxu0 %v699
    %716 = vmatprep.subr.bf16.mxu0 0
    %717 = vmatpush1.bf16.msra.mxu0 %v698
    %718 = vmatprep.subr.bf16.mxu0 0
    %719 = vmatpush1.bf16.msra.mxu0 %v697
    %720 = vmatprep.subr.bf16.mxu0 0
    %721 = vmatpush1.bf16.msra.mxu0 %v696
    %722 = vmatprep.subr.bf16.mxu0 0
    %723 = vmatpush1.bf16.msra.mxu0 %v695
    %724 = vmatprep.subr.bf16.mxu0 0
    %725 = vmatpush1.bf16.msra.mxu0 %v694
    %726 = vmatprep.subr.bf16.mxu0 0
    %727 = vmatpush2.bf16.msra.mxu0 0
    %728 = vmatprep.subr.bf16.mxu0 0
    %729 = vmatpush2.bf16.msra.mxu0 0
    %730 = vmatprep.subr.bf16.mxu0 0
    %731 = vmatpush2.bf16.msra.mxu0 0
    %732 = vmatprep.subr.bf16.mxu0 0
    %733 = vmatpush2.bf16.msra.mxu0 0
    %734 = vmatprep.subr.bf16.mxu0 0
    %735 = vmatpush2.bf16.msra.mxu0 0
    %736 = vmatprep.subr.bf16.mxu0 0
    %737 = vmatpush2.bf16.msra.mxu0 0
    %738 = vmatprep.subr.bf16.mxu0 0
    %739 = vmatpush2.bf16.msra.mxu0 0
    %740 = vmatprep.subr.bf16.mxu0 0
    %741 = vmatpush2.bf16.msra.mxu0 0
    %742 = vmatprep.mubr.bf16.mxu0 0
    %743 = vmatmul.mubr.bf16.gmra.mxu0 %v223
    %v744 = vpop.f32.mrf.mxu0
    %v745 = vadd.f32 %v598, %v744
    %v746 = vpop.f32.mrf.mxu0
    %v747 = vpop.f32.mrf.mxu0
    %v748 = vadd.f32 %v599, %v747
    %v749 = vpop.f32.mrf.mxu0
    %750 = vmatprep.mubr.bf16.mxu0 0
    %751 = vmatmul.mubr.bf16.gmra.mxu0 %v224
    %v752 = vpop.f32.mrf.mxu0
    %v753 = vadd.f32 %v600, %v752
    %v754 = vpop.f32.mrf.mxu0
    %v755 = vpop.f32.mrf.mxu0
    %v756 = vadd.f32 %v601, %v755
    %v757 = vpop.f32.mrf.mxu0
    %758 = vmatprep.mubr.bf16.mxu0 0
    %759 = vmatmul.mubr.bf16.gmra.mxu0 %v225
    %v760 = vpop.f32.mrf.mxu0
    %v761 = vadd.f32 %v602, %v760
    %v762 = vpop.f32.mrf.mxu0
    %v763 = vpop.f32.mrf.mxu0
    %v764 = vadd.f32 %v603, %v763
    %v765 = vpop.f32.mrf.mxu0
    %766 = vmatprep.mubr.bf16.mxu0 0
    %767 = vmatmul.mubr.bf16.gmra.mxu0 %v226
    %v768 = vpop.f32.mrf.mxu0
    %v769 = vadd.f32 %v604, %v768
    %v770 = vpop.f32.mrf.mxu0
    %v771 = vpop.f32.mrf.mxu0
    %v772 = vadd.f32 %v605, %v771
    %v773 = vpop.f32.mrf.mxu0
    %774 = vmatprep.mubr.bf16.mxu0 0
    %775 = vmatmul.mubr.bf16.gmra.mxu0 %v227
    %v776 = vpop.f32.mrf.mxu0
    %v777 = vadd.f32 %v606, %v776
    %v778 = vpop.f32.mrf.mxu0
    %v779 = vpop.f32.mrf.mxu0
    %v780 = vadd.f32 %v607, %v779
    %v781 = vpop.f32.mrf.mxu0
    %782 = vmatprep.mubr.bf16.mxu0 0
    %783 = vmatmul.mubr.bf16.gmra.mxu0 %v228
    %v784 = vpop.f32.mrf.mxu0
    %v785 = vadd.f32 %v608, %v784
    %v786 = vpop.f32.mrf.mxu0
    %v787 = vpop.f32.mrf.mxu0
    %v788 = vadd.f32 %v609, %v787
    %v789 = vpop.f32.mrf.mxu0
    %790 = vmatprep.mubr.bf16.mxu0 0
    %791 = vmatmul.mubr.bf16.gmra.mxu0 %v229
    %v792 = vpop.f32.mrf.mxu0
    %v793 = vadd.f32 %v610, %v792
    %v794 = vpop.f32.mrf.mxu0
    %v795 = vpop.f32.mrf.mxu0
    %v796 = vadd.f32 %v611, %v795
    %v797 = vpop.f32.mrf.mxu0
    %798 = vmatprep.mubr.bf16.mxu0 0
    %799 = vmatmul.mubr.bf16.gmra.mxu0 %v230
    %v800 = vpop.f32.mrf.mxu0
    %v801 = vadd.f32 %v612, %v800
    %v802 = vpop.f32.mrf.mxu0
    %v803 = vpop.f32.mrf.mxu0
    %v804 = vadd.f32 %v613, %v803
    %v805 = vpop.f32.mrf.mxu0
    %806 = vmatprep.mubr.bf16.mxu0 0
    %807 = vmatmul.mubr.bf16.gmra.mxu0 %v231
    %v808 = vpop.f32.mrf.mxu0
    %v809 = vadd.f32 %v614, %v808
    %v810 = vpop.f32.mrf.mxu0
    %v811 = vpop.f32.mrf.mxu0
    %v812 = vadd.f32 %v615, %v811
    %v813 = vpop.f32.mrf.mxu0
    %814 = vmatprep.mubr.bf16.mxu0 0
    %815 = vmatmul.mubr.bf16.gmra.mxu0 %v232
    %v816 = vpop.f32.mrf.mxu0
    %v817 = vadd.f32 %v616, %v816
    %v818 = vpop.f32.mrf.mxu0
    %v819 = vpop.f32.mrf.mxu0
    %v820 = vadd.f32 %v617, %v819
    %v821 = vpop.f32.mrf.mxu0
    %822 = vmatprep.mubr.bf16.mxu0 0
    %823 = vmatmul.mubr.bf16.gmra.mxu0 %v233
    %v824 = vpop.f32.mrf.mxu0
    %v825 = vadd.f32 %v618, %v824
    %v826 = vpop.f32.mrf.mxu0
    %v827 = vpop.f32.mrf.mxu0
    %v828 = vadd.f32 %v619, %v827
    %v829 = vpop.f32.mrf.mxu0
    %830 = vmatprep.mubr.bf16.mxu0 0
    %831 = vmatmul.mubr.bf16.gmra.mxu0 %v234
    %v832 = vpop.f32.mrf.mxu0
    %v833 = vadd.f32 %v620, %v832
    %v834 = vpop.f32.mrf.mxu0
    %v835 = vpop.f32.mrf.mxu0
    %v836 = vadd.f32 %v621, %v835
    %v837 = vpop.f32.mrf.mxu0
    %838 = vmatprep.mubr.bf16.mxu0 0
    %839 = vmatmul.mubr.bf16.gmra.mxu0 %v235
    %v840 = vpop.f32.mrf.mxu0
    %v841 = vadd.f32 %v622, %v840
    %v842 = vpop.f32.mrf.mxu0
    %v843 = vpop.f32.mrf.mxu0
    %v844 = vadd.f32 %v623, %v843
    %v845 = vpop.f32.mrf.mxu0
    %846 = vmatprep.mubr.bf16.mxu0 0
    %847 = vmatmul.mubr.bf16.gmra.mxu0 %v236
    %v848 = vpop.f32.mrf.mxu0
    %v849 = vadd.f32 %v624, %v848
    %v850 = vpop.f32.mrf.mxu0
    %v851 = vpop.f32.mrf.mxu0
    %v852 = vadd.f32 %v625, %v851
    %v853 = vpop.f32.mrf.mxu0
    %854 = vmatprep.mubr.bf16.mxu0 0
    %855 = vmatmul.mubr.bf16.gmra.mxu0 %v237
    %v856 = vpop.f32.mrf.mxu0
    %v857 = vadd.f32 %v626, %v856
    %v858 = vpop.f32.mrf.mxu0
    %v859 = vpop.f32.mrf.mxu0
    %v860 = vadd.f32 %v627, %v859
    %v861 = vpop.f32.mrf.mxu0
    %862 = vmatprep.mubr.bf16.mxu0 0
    %863 = vmatmul.mubr.bf16.gmra.mxu0 %v238
    %v864 = vpop.f32.mrf.mxu0
    %v865 = vadd.f32 %v628, %v864
    %v866 = vpop.f32.mrf.mxu0
    %v867 = vpop.f32.mrf.mxu0
    %v868 = vadd.f32 %v629, %v867
    %v869 = vpop.f32.mrf.mxu0
    %870 = vmatprep.mubr.bf16.mxu0 0
    %871 = vmatmul.mubr.bf16.gmra.mxu0 %v239
    %v872 = vpop.f32.mrf.mxu0
    %v873 = vadd.f32 %v630, %v872
    %v874 = vpop.f32.mrf.mxu0
    %v875 = vpop.f32.mrf.mxu0
    %v876 = vadd.f32 %v631, %v875
    %v877 = vpop.f32.mrf.mxu0
    %878 = vmatprep.mubr.bf16.mxu0 0
    %879 = vmatmul.mubr.bf16.gmra.mxu0 %v240
    %v880 = vpop.f32.mrf.mxu0
    %v881 = vadd.f32 %v632, %v880
    %v882 = vpop.f32.mrf.mxu0
    %v883 = vpop.f32.mrf.mxu0
    %v884 = vadd.f32 %v633, %v883
    %v885 = vpop.f32.mrf.mxu0
    %886 = vmatprep.mubr.bf16.mxu0 0
    %887 = vmatmul.mubr.bf16.gmra.mxu0 %v241
    %v888 = vpop.f32.mrf.mxu0
    %v889 = vadd.f32 %v634, %v888
    %v890 = vpop.f32.mrf.mxu0
    %v891 = vpop.f32.mrf.mxu0
    %v892 = vadd.f32 %v635, %v891
    %v893 = vpop.f32.mrf.mxu0
    %894 = vmatprep.mubr.bf16.mxu0 0
    %895 = vmatmul.mubr.bf16.gmra.mxu0 %v242
    %v896 = vpop.f32.mrf.mxu0
    %v897 = vadd.f32 %v636, %v896
    %v898 = vpop.f32.mrf.mxu0
    %v899 = vpop.f32.mrf.mxu0
    %v900 = vadd.f32 %v637, %v899
    %v901 = vpop.f32.mrf.mxu0
    %902 = vmatprep.mubr.bf16.mxu0 0
    %903 = vmatmul.mubr.bf16.gmra.mxu0 %v243
    %v904 = vpop.f32.mrf.mxu0
    %v905 = vadd.f32 %v638, %v904
    %v906 = vpop.f32.mrf.mxu0
    %v907 = vpop.f32.mrf.mxu0
    %v908 = vadd.f32 %v639, %v907
    %v909 = vpop.f32.mrf.mxu0
    %910 = vmatprep.mubr.bf16.mxu0 0
    %911 = vmatmul.mubr.bf16.gmra.mxu0 %v244
    %v912 = vpop.f32.mrf.mxu0
    %v913 = vadd.f32 %v640, %v912
    %v914 = vpop.f32.mrf.mxu0
    %v915 = vpop.f32.mrf.mxu0
    %v916 = vadd.f32 %v641, %v915
    %v917 = vpop.f32.mrf.mxu0
    %918 = vmatprep.mubr.bf16.mxu0 0
    %919 = vmatmul.mubr.bf16.gmra.mxu0 %v245
    %v920 = vpop.f32.mrf.mxu0
    %v921 = vadd.f32 %v642, %v920
    %v922 = vpop.f32.mrf.mxu0
    %v923 = vpop.f32.mrf.mxu0
    %v924 = vadd.f32 %v643, %v923
    %v925 = vpop.f32.mrf.mxu0
    %926 = vmatprep.mubr.bf16.mxu0 0
    %927 = vmatmul.mubr.bf16.gmra.mxu0 %v246
    %v928 = vpop.f32.mrf.mxu0
    %v929 = vadd.f32 %v644, %v928
    %v930 = vpop.f32.mrf.mxu0
    %v931 = vpop.f32.mrf.mxu0
    %v932 = vadd.f32 %v645, %v931
    %v933 = vpop.f32.mrf.mxu0
    %934 = vmatprep.mubr.bf16.mxu0 0
    %935 = vmatmul.mubr.bf16.gmra.mxu0 %v247
    %v936 = vpop.f32.mrf.mxu0
    %v937 = vadd.f32 %v646, %v936
    %v938 = vpop.f32.mrf.mxu0
    %v939 = vpop.f32.mrf.mxu0
    %v940 = vadd.f32 %v647, %v939
    %v941 = vpop.f32.mrf.mxu0
    %942 = vmatprep.mubr.bf16.mxu0 0
    %943 = vmatmul.mubr.bf16.gmra.mxu0 %v248
    %v944 = vpop.f32.mrf.mxu0
    %v945 = vadd.f32 %v648, %v944
    %v946 = vpop.f32.mrf.mxu0
    %v947 = vpop.f32.mrf.mxu0
    %v948 = vadd.f32 %v649, %v947
    %v949 = vpop.f32.mrf.mxu0
    %950 = vmatprep.mubr.bf16.mxu0 0
    %951 = vmatmul.mubr.bf16.gmra.mxu0 %v249
    %v952 = vpop.f32.mrf.mxu0
    %v953 = vadd.f32 %v650, %v952
    %v954 = vpop.f32.mrf.mxu0
    %v955 = vpop.f32.mrf.mxu0
    %v956 = vadd.f32 %v651, %v955
    %v957 = vpop.f32.mrf.mxu0
    %958 = vmatprep.mubr.bf16.mxu0 0
    %959 = vmatmul.mubr.bf16.gmra.mxu0 %v250
    %v960 = vpop.f32.mrf.mxu0
    %v961 = vadd.f32 %v652, %v960
    %v962 = vpop.f32.mrf.mxu0
    %v963 = vpop.f32.mrf.mxu0
    %v964 = vadd.f32 %v653, %v963
    %v965 = vpop.f32.mrf.mxu0
    %966 = vmatprep.mubr.bf16.mxu0 0
    %967 = vmatmul.mubr.bf16.gmra.mxu0 %v251
    %v968 = vpop.f32.mrf.mxu0
    %v969 = vadd.f32 %v654, %v968
    %v970 = vpop.f32.mrf.mxu0
    %v971 = vpop.f32.mrf.mxu0
    %v972 = vadd.f32 %v655, %v971
    %v973 = vpop.f32.mrf.mxu0
    %974 = vmatprep.mubr.bf16.mxu0 0
    %975 = vmatmul.mubr.bf16.gmra.mxu0 %v252
    %v976 = vpop.f32.mrf.mxu0
    %v977 = vadd.f32 %v656, %v976
    %v978 = vpop.f32.mrf.mxu0
    %v979 = vpop.f32.mrf.mxu0
    %v980 = vadd.f32 %v657, %v979
    %v981 = vpop.f32.mrf.mxu0
    %982 = vmatprep.mubr.bf16.mxu0 0
    %983 = vmatmul.mubr.bf16.gmra.mxu0 %v253
    %v984 = vpop.f32.mrf.mxu0
    %v985 = vadd.f32 %v658, %v984
    %v986 = vpop.f32.mrf.mxu0
    %v987 = vpop.f32.mrf.mxu0
    %v988 = vadd.f32 %v659, %v987
    %v989 = vpop.f32.mrf.mxu0
    %990 = vmatprep.mubr.bf16.mxu0 0
    %991 = vmatmul.mubr.bf16.gmra.mxu0 %v254
    %v992 = vpop.f32.mrf.mxu0
    %v993 = vadd.f32 %v660, %v992
    %v994 = vpop.f32.mrf.mxu0
    %v995 = vpop.f32.mrf.mxu0
    %v996 = vadd.f32 %v661, %v995
    %v997 = vpop.f32.mrf.mxu0
    %998 = vdwg.mxu0
    %v999 = vld [vmem:[%s4] sm:$0x1]
    %v1000 = vld [vmem:[%s5] sm:$0x1]
    %1001 = vadd.xlane.f32.xlu0 %v745
    %v1002 = vpop.xlane.xlu0 %1001
    %1003 = vadd.xlane.f32.xlu0 %v748
    %v1004 = vpop.xlane.xlu0 %1003
    %1005 = vadd.xlane.f32.xlu0 %v753
    %v1006 = vpop.xlane.xlu0 %1005
    %1007 = vadd.xlane.f32.xlu0 %v756
    %v1008 = vpop.xlane.xlu0 %1007
    %1009 = vadd.xlane.f32.xlu0 %v761
    %v1010 = vpop.xlane.xlu0 %1009
    %1011 = vadd.xlane.f32.xlu0 %v764
    %v1012 = vpop.xlane.xlu0 %1011
    %1013 = vadd.xlane.f32.xlu0 %v769
    %v1014 = vpop.xlane.xlu0 %1013
    %1015 = vadd.xlane.f32.xlu0 %v772
    %v1016 = vpop.xlane.xlu0 %1015
    %1017 = vadd.xlane.f32.xlu0 %v777
    %v1018 = vpop.xlane.xlu0 %1017
    %1019 = vadd.xlane.f32.xlu0 %v780
    %v1020 = vpop.xlane.xlu0 %1019
    %1021 = vadd.xlane.f32.xlu0 %v785
    %v1022 = vpop.xlane.xlu0 %1021
    %1023 = vadd.xlane.f32.xlu0 %v788
    %v1024 = vpop.xlane.xlu0 %1023
    %1025 = vadd.xlane.f32.xlu0 %v793
    %v1026 = vpop.xlane.xlu0 %1025
    %1027 = vadd.xlane.f32.xlu0 %v796
    %v1028 = vpop.xlane.xlu0 %1027
    %1029 = vadd.xlane.f32.xlu0 %v801
    %v1030 = vpop.xlane.xlu0 %1029
    %1031 = vadd.xlane.f32.xlu0 %v804
    %v1032 = vpop.xlane.xlu0 %1031
    %1033 = vadd.xlane.f32.xlu0 %v809
    %v1034 = vpop.xlane.xlu0 %1033
    %1035 = vadd.xlane.f32.xlu0 %v812
    %v1036 = vpop.xlane.xlu0 %1035
    %1037 = vadd.xlane.f32.xlu0 %v817
    %v1038 = vpop.xlane.xlu0 %1037
    %1039 = vadd.xlane.f32.xlu0 %v820
    %v1040 = vpop.xlane.xlu0 %1039
    %1041 = vadd.xlane.f32.xlu0 %v825
    %v1042 = vpop.xlane.xlu0 %1041
    %1043 = vadd.xlane.f32.xlu0 %v828
    %v1044 = vpop.xlane.xlu0 %1043
    %1045 = vadd.xlane.f32.xlu0 %v833
    %v1046 = vpop.xlane.xlu0 %1045
    %1047 = vadd.xlane.f32.xlu0 %v836
    %v1048 = vpop.xlane.xlu0 %1047
    %1049 = vadd.xlane.f32.xlu0 %v841
    %v1050 = vpop.xlane.xlu0 %1049
    %1051 = vadd.xlane.f32.xlu0 %v844
    %v1052 = vpop.xlane.xlu0 %1051
    %1053 = vadd.xlane.f32.xlu0 %v849
    %v1054 = vpop.xlane.xlu0 %1053
    %1055 = vadd.xlane.f32.xlu0 %v852
    %v1056 = vpop.xlane.xlu0 %1055
    %1057 = vadd.xlane.f32.xlu0 %v857
    %v1058 = vpop.xlane.xlu0 %1057
    %1059 = vadd.xlane.f32.xlu0 %v860
    %v1060 = vpop.xlane.xlu0 %1059
    %1061 = vadd.xlane.f32.xlu0 %v865
    %v1062 = vpop.xlane.xlu0 %1061
    %1063 = vadd.xlane.f32.xlu0 %v868
    %v1064 = vpop.xlane.xlu0 %1063
    %1065 = vadd.xlane.f32.xlu0 %v873
    %v1066 = vpop.xlane.xlu0 %1065
    %1067 = vadd.xlane.f32.xlu0 %v876
    %v1068 = vpop.xlane.xlu0 %1067
    %1069 = vadd.xlane.f32.xlu0 %v881
    %v1070 = vpop.xlane.xlu0 %1069
    %1071 = vadd.xlane.f32.xlu0 %v884
    %v1072 = vpop.xlane.xlu0 %1071
    %1073 = vadd.xlane.f32.xlu0 %v889
    %v1074 = vpop.xlane.xlu0 %1073
    %1075 = vadd.xlane.f32.xlu0 %v892
    %v1076 = vpop.xlane.xlu0 %1075
    %1077 = vadd.xlane.f32.xlu0 %v897
    %v1078 = vpop.xlane.xlu0 %1077
    %1079 = vadd.xlane.f32.xlu0 %v900
    %v1080 = vpop.xlane.xlu0 %1079
    %1081 = vadd.xlane.f32.xlu0 %v905
    %v1082 = vpop.xlane.xlu0 %1081
    %1083 = vadd.xlane.f32.xlu0 %v908
    %v1084 = vpop.xlane.xlu0 %1083
    %1085 = vadd.xlane.f32.xlu0 %v913
    %v1086 = vpop.xlane.xlu0 %1085
    %1087 = vadd.xlane.f32.xlu0 %v916
    %v1088 = vpop.xlane.xlu0 %1087
    %1089 = vadd.xlane.f32.xlu0 %v921
    %v1090 = vpop.xlane.xlu0 %1089
    %1091 = vadd.xlane.f32.xlu0 %v924
    %v1092 = vpop.xlane.xlu0 %1091
    %1093 = vadd.xlane.f32.xlu0 %v929
    %v1094 = vpop.xlane.xlu0 %1093
    %1095 = vadd.xlane.f32.xlu0 %v932
    %v1096 = vpop.xlane.xlu0 %1095
    %1097 = vadd.xlane.f32.xlu0 %v937
    %v1098 = vpop.xlane.xlu0 %1097
    %1099 = vadd.xlane.f32.xlu0 %v940
    %v1100 = vpop.xlane.xlu0 %1099
    %1101 = vadd.xlane.f32.xlu0 %v945
    %v1102 = vpop.xlane.xlu0 %1101
    %1103 = vadd.xlane.f32.xlu0 %v948
    %v1104 = vpop.xlane.xlu0 %1103
    %1105 = vadd.xlane.f32.xlu0 %v953
    %v1106 = vpop.xlane.xlu0 %1105
    %1107 = vadd.xlane.f32.xlu0 %v956
    %v1108 = vpop.xlane.xlu0 %1107
    %1109 = vadd.xlane.f32.xlu0 %v961
    %v1110 = vpop.xlane.xlu0 %1109
    %1111 = vadd.xlane.f32.xlu0 %v964
    %v1112 = vpop.xlane.xlu0 %1111
    %1113 = vadd.xlane.f32.xlu0 %v969
    %v1114 = vpop.xlane.xlu0 %1113
    %1115 = vadd.xlane.f32.xlu0 %v972
    %v1116 = vpop.xlane.xlu0 %1115
    %1117 = vadd.xlane.f32.xlu0 %v977
    %v1118 = vpop.xlane.xlu0 %1117
    %1119 = vadd.xlane.f32.xlu0 %v980
    %v1120 = vpop.xlane.xlu0 %1119
    %1121 = vadd.xlane.f32.xlu0 %v985
    %v1122 = vpop.xlane.xlu0 %1121
    %1123 = vadd.xlane.f32.xlu0 %v988
    %v1124 = vpop.xlane.xlu0 %1123
    %1125 = vadd.xlane.f32.xlu0 %v993
    %v1126 = vpop.xlane.xlu0 %1125
    %1127 = vadd.xlane.f32.xlu0 %v996
    %v1128 = vpop.xlane.xlu0 %1127
    %v1129 = vrcp.pop 128.0
    %v1130 = vmul.f32 %v1002, %v1129
    %v1131 = vmul.f32 %v1004, %v1129
    %v1132 = vmul.f32 %v1006, %v1129
    %v1133 = vmul.f32 %v1008, %v1129
    %v1134 = vmul.f32 %v1010, %v1129
    %v1135 = vmul.f32 %v1012, %v1129
    %v1136 = vmul.f32 %v1014, %v1129
    %v1137 = vmul.f32 %v1016, %v1129
    %v1138 = vmul.f32 %v1018, %v1129
    %v1139 = vmul.f32 %v1020, %v1129
    %v1140 = vmul.f32 %v1022, %v1129
    %v1141 = vmul.f32 %v1024, %v1129
    %v1142 = vmul.f32 %v1026, %v1129
    %v1143 = vmul.f32 %v1028, %v1129
    %v1144 = vmul.f32 %v1030, %v1129
    %v1145 = vmul.f32 %v1032, %v1129
    %v1146 = vmul.f32 %v1034, %v1129
    %v1147 = vmul.f32 %v1036, %v1129
    %v1148 = vmul.f32 %v1038, %v1129
    %v1149 = vmul.f32 %v1040, %v1129
    %v1150 = vmul.f32 %v1042, %v1129
    %v1151 = vmul.f32 %v1044, %v1129
    %v1152 = vmul.f32 %v1046, %v1129
    %v1153 = vmul.f32 %v1048, %v1129
    %v1154 = vmul.f32 %v1050, %v1129
    %v1155 = vmul.f32 %v1052, %v1129
    %v1156 = vmul.f32 %v1054, %v1129
    %v1157 = vmul.f32 %v1056, %v1129
    %v1158 = vmul.f32 %v1058, %v1129
    %v1159 = vmul.f32 %v1060, %v1129
    %v1160 = vmul.f32 %v1062, %v1129
    %v1161 = vmul.f32 %v1064, %v1129
    %v1162 = vmul.f32 %v1066, %v1129
    %v1163 = vmul.f32 %v1068, %v1129
    %v1164 = vmul.f32 %v1070, %v1129
    %v1165 = vmul.f32 %v1072, %v1129
    %v1166 = vmul.f32 %v1074, %v1129
    %v1167 = vmul.f32 %v1076, %v1129
    %v1168 = vmul.f32 %v1078, %v1129
    %v1169 = vmul.f32 %v1080, %v1129
    %v1170 = vmul.f32 %v1082, %v1129
    %v1171 = vmul.f32 %v1084, %v1129
    %v1172 = vmul.f32 %v1086, %v1129
    %v1173 = vmul.f32 %v1088, %v1129
    %v1174 = vmul.f32 %v1090, %v1129
    %v1175 = vmul.f32 %v1092, %v1129
    %v1176 = vmul.f32 %v1094, %v1129
    %v1177 = vmul.f32 %v1096, %v1129
    %v1178 = vmul.f32 %v1098, %v1129
    %v1179 = vmul.f32 %v1100, %v1129
    %v1180 = vmul.f32 %v1102, %v1129
    %v1181 = vmul.f32 %v1104, %v1129
    %v1182 = vmul.f32 %v1106, %v1129
    %v1183 = vmul.f32 %v1108, %v1129
    %v1184 = vmul.f32 %v1110, %v1129
    %v1185 = vmul.f32 %v1112, %v1129
    %v1186 = vmul.f32 %v1114, %v1129
    %v1187 = vmul.f32 %v1116, %v1129
    %v1188 = vmul.f32 %v1118, %v1129
    %v1189 = vmul.f32 %v1120, %v1129
    %v1190 = vmul.f32 %v1122, %v1129
    %v1191 = vmul.f32 %v1124, %v1129
    %v1192 = vmul.f32 %v1126, %v1129
    %v1193 = vmul.f32 %v1128, %v1129
    %v1194 = vsub.f32 %v745, %v1130
    %v1195 = vsub.f32 %v748, %v1131
    %v1196 = vsub.f32 %v753, %v1132
    %v1197 = vsub.f32 %v756, %v1133
    %v1198 = vsub.f32 %v761, %v1134
    %v1199 = vsub.f32 %v764, %v1135
    %v1200 = vsub.f32 %v769, %v1136
    %v1201 = vsub.f32 %v772, %v1137
    %v1202 = vsub.f32 %v777, %v1138
    %v1203 = vsub.f32 %v780, %v1139
    %v1204 = vsub.f32 %v785, %v1140
    %v1205 = vsub.f32 %v788, %v1141
    %v1206 = vsub.f32 %v793, %v1142
    %v1207 = vsub.f32 %v796, %v1143
    %v1208 = vsub.f32 %v801, %v1144
    %v1209 = vsub.f32 %v804, %v1145
    %v1210 = vsub.f32 %v809, %v1146
    %v1211 = vsub.f32 %v812, %v1147
    %v1212 = vsub.f32 %v817, %v1148
    %v1213 = vsub.f32 %v820, %v1149
    %v1214 = vsub.f32 %v825, %v1150
    %v1215 = vsub.f32 %v828, %v1151
    %v1216 = vsub.f32 %v833, %v1152
    %v1217 = vsub.f32 %v836, %v1153
    %v1218 = vsub.f32 %v841, %v1154
    %v1219 = vsub.f32 %v844, %v1155
    %v1220 = vsub.f32 %v849, %v1156
    %v1221 = vsub.f32 %v852, %v1157
    %v1222 = vsub.f32 %v857, %v1158
    %v1223 = vsub.f32 %v860, %v1159
    %v1224 = vsub.f32 %v865, %v1160
    %v1225 = vsub.f32 %v868, %v1161
    %v1226 = vsub.f32 %v873, %v1162
    %v1227 = vsub.f32 %v876, %v1163
    %v1228 = vsub.f32 %v881, %v1164
    %v1229 = vsub.f32 %v884, %v1165
    %v1230 = vsub.f32 %v889, %v1166
    %v1231 = vsub.f32 %v892, %v1167
    %v1232 = vsub.f32 %v897, %v1168
    %v1233 = vsub.f32 %v900, %v1169
    %v1234 = vsub.f32 %v905, %v1170
    %v1235 = vsub.f32 %v908, %v1171
    %v1236 = vsub.f32 %v913, %v1172
    %v1237 = vsub.f32 %v916, %v1173
    %v1238 = vsub.f32 %v921, %v1174
    %v1239 = vsub.f32 %v924, %v1175
    %v1240 = vsub.f32 %v929, %v1176
    %v1241 = vsub.f32 %v932, %v1177
    %v1242 = vsub.f32 %v937, %v1178
    %v1243 = vsub.f32 %v940, %v1179
    %v1244 = vsub.f32 %v945, %v1180
    %v1245 = vsub.f32 %v948, %v1181
    %v1246 = vsub.f32 %v953, %v1182
    %v1247 = vsub.f32 %v956, %v1183
    %v1248 = vsub.f32 %v961, %v1184
    %v1249 = vsub.f32 %v964, %v1185
    %v1250 = vsub.f32 %v969, %v1186
    %v1251 = vsub.f32 %v972, %v1187
    %v1252 = vsub.f32 %v977, %v1188
    %v1253 = vsub.f32 %v980, %v1189
    %v1254 = vsub.f32 %v985, %v1190
    %v1255 = vsub.f32 %v988, %v1191
    %v1256 = vsub.f32 %v993, %v1192
    %v1257 = vsub.f32 %v996, %v1193
    %v1258 = vmul.f32 %v1194, %v1194
    %v1259 = vmul.f32 %v1195, %v1195
    %v1260 = vmul.f32 %v1196, %v1196
    %v1261 = vmul.f32 %v1197, %v1197
    %v1262 = vmul.f32 %v1198, %v1198
    %v1263 = vmul.f32 %v1199, %v1199
    %v1264 = vmul.f32 %v1200, %v1200
    %v1265 = vmul.f32 %v1201, %v1201
    %v1266 = vmul.f32 %v1202, %v1202
    %v1267 = vmul.f32 %v1203, %v1203
    %v1268 = vmul.f32 %v1204, %v1204
    %v1269 = vmul.f32 %v1205, %v1205
    %v1270 = vmul.f32 %v1206, %v1206
    %v1271 = vmul.f32 %v1207, %v1207
    %v1272 = vmul.f32 %v1208, %v1208
    %v1273 = vmul.f32 %v1209, %v1209
    %v1274 = vmul.f32 %v1210, %v1210
    %v1275 = vmul.f32 %v1211, %v1211
    %v1276 = vmul.f32 %v1212, %v1212
    %v1277 = vmul.f32 %v1213, %v1213
    %v1278 = vmul.f32 %v1214, %v1214
    %v1279 = vmul.f32 %v1215, %v1215
    %v1280 = vmul.f32 %v1216, %v1216
    %v1281 = vmul.f32 %v1217, %v1217
    %v1282 = vmul.f32 %v1218, %v1218
    %v1283 = vmul.f32 %v1219, %v1219
    %v1284 = vmul.f32 %v1220, %v1220
    %v1285 = vmul.f32 %v1221, %v1221
    %v1286 = vmul.f32 %v1222, %v1222
    %v1287 = vmul.f32 %v1223, %v1223
    %v1288 = vmul.f32 %v1224, %v1224
    %v1289 = vmul.f32 %v1225, %v1225
    %v1290 = vmul.f32 %v1226, %v1226
    %v1291 = vmul.f32 %v1227, %v1227
    %v1292 = vmul.f32 %v1228, %v1228
    %v1293 = vmul.f32 %v1229, %v1229
    %v1294 = vmul.f32 %v1230, %v1230
    %v1295 = vmul.f32 %v1231, %v1231
    %v1296 = vmul.f32 %v1232, %v1232
    %v1297 = vmul.f32 %v1233, %v1233
    %v1298 = vmul.f32 %v1234, %v1234
    %v1299 = vmul.f32 %v1235, %v1235
    %v1300 = vmul.f32 %v1236, %v1236
    %v1301 = vmul.f32 %v1237, %v1237
    %v1302 = vmul.f32 %v1238, %v1238
    %v1303 = vmul.f32 %v1239, %v1239
    %v1304 = vmul.f32 %v1240, %v1240
    %v1305 = vmul.f32 %v1241, %v1241
    %v1306 = vmul.f32 %v1242, %v1242
    %v1307 = vmul.f32 %v1243, %v1243
    %v1308 = vmul.f32 %v1244, %v1244
    %v1309 = vmul.f32 %v1245, %v1245
    %v1310 = vmul.f32 %v1246, %v1246
    %v1311 = vmul.f32 %v1247, %v1247
    %v1312 = vmul.f32 %v1248, %v1248
    %v1313 = vmul.f32 %v1249, %v1249
    %v1314 = vmul.f32 %v1250, %v1250
    %v1315 = vmul.f32 %v1251, %v1251
    %v1316 = vmul.f32 %v1252, %v1252
    %v1317 = vmul.f32 %v1253, %v1253
    %v1318 = vmul.f32 %v1254, %v1254
    %v1319 = vmul.f32 %v1255, %v1255
    %v1320 = vmul.f32 %v1256, %v1256
    %v1321 = vmul.f32 %v1257, %v1257
    %1322 = vadd.xlane.f32.xlu0 %v1258
    %v1323 = vpop.xlane.xlu0 %1322
    %1324 = vadd.xlane.f32.xlu0 %v1259
    %v1325 = vpop.xlane.xlu0 %1324
    %1326 = vadd.xlane.f32.xlu0 %v1260
    %v1327 = vpop.xlane.xlu0 %1326
    %1328 = vadd.xlane.f32.xlu0 %v1261
    %v1329 = vpop.xlane.xlu0 %1328
    %1330 = vadd.xlane.f32.xlu0 %v1262
    %v1331 = vpop.xlane.xlu0 %1330
    %1332 = vadd.xlane.f32.xlu0 %v1263
    %v1333 = vpop.xlane.xlu0 %1332
    %1334 = vadd.xlane.f32.xlu0 %v1264
    %v1335 = vpop.xlane.xlu0 %1334
    %1336 = vadd.xlane.f32.xlu0 %v1265
    %v1337 = vpop.xlane.xlu0 %1336
    %1338 = vadd.xlane.f32.xlu0 %v1266
    %v1339 = vpop.xlane.xlu0 %1338
    %1340 = vadd.xlane.f32.xlu0 %v1267
    %v1341 = vpop.xlane.xlu0 %1340
    %1342 = vadd.xlane.f32.xlu0 %v1268
    %v1343 = vpop.xlane.xlu0 %1342
    %1344 = vadd.xlane.f32.xlu0 %v1269
    %v1345 = vpop.xlane.xlu0 %1344
    %1346 = vadd.xlane.f32.xlu0 %v1270
    %v1347 = vpop.xlane.xlu0 %1346
    %1348 = vadd.xlane.f32.xlu0 %v1271
    %v1349 = vpop.xlane.xlu0 %1348
    %1350 = vadd.xlane.f32.xlu0 %v1272
    %v1351 = vpop.xlane.xlu0 %1350
    %1352 = vadd.xlane.f32.xlu0 %v1273
    %v1353 = vpop.xlane.xlu0 %1352
    %1354 = vadd.xlane.f32.xlu0 %v1274
    %v1355 = vpop.xlane.xlu0 %1354
    %1356 = vadd.xlane.f32.xlu0 %v1275
    %v1357 = vpop.xlane.xlu0 %1356
    %1358 = vadd.xlane.f32.xlu0 %v1276
    %v1359 = vpop.xlane.xlu0 %1358
    %1360 = vadd.xlane.f32.xlu0 %v1277
    %v1361 = vpop.xlane.xlu0 %1360
    %1362 = vadd.xlane.f32.xlu0 %v1278
    %v1363 = vpop.xlane.xlu0 %1362
    %1364 = vadd.xlane.f32.xlu0 %v1279
    %v1365 = vpop.xlane.xlu0 %1364
    %1366 = vadd.xlane.f32.xlu0 %v1280
    %v1367 = vpop.xlane.xlu0 %1366
    %1368 = vadd.xlane.f32.xlu0 %v1281
    %v1369 = vpop.xlane.xlu0 %1368
    %1370 = vadd.xlane.f32.xlu0 %v1282
    %v1371 = vpop.xlane.xlu0 %1370
    %1372 = vadd.xlane.f32.xlu0 %v1283
    %v1373 = vpop.xlane.xlu0 %1372
    %1374 = vadd.xlane.f32.xlu0 %v1284
    %v1375 = vpop.xlane.xlu0 %1374
    %1376 = vadd.xlane.f32.xlu0 %v1285
    %v1377 = vpop.xlane.xlu0 %1376
    %1378 = vadd.xlane.f32.xlu0 %v1286
    %v1379 = vpop.xlane.xlu0 %1378
    %1380 = vadd.xlane.f32.xlu0 %v1287
    %v1381 = vpop.xlane.xlu0 %1380
    %1382 = vadd.xlane.f32.xlu0 %v1288
    %v1383 = vpop.xlane.xlu0 %1382
    %1384 = vadd.xlane.f32.xlu0 %v1289
    %v1385 = vpop.xlane.xlu0 %1384
    %1386 = vadd.xlane.f32.xlu0 %v1290
    %v1387 = vpop.xlane.xlu0 %1386
    %1388 = vadd.xlane.f32.xlu0 %v1291
    %v1389 = vpop.xlane.xlu0 %1388
    %1390 = vadd.xlane.f32.xlu0 %v1292
    %v1391 = vpop.xlane.xlu0 %1390
    %1392 = vadd.xlane.f32.xlu0 %v1293
    %v1393 = vpop.xlane.xlu0 %1392
    %1394 = vadd.xlane.f32.xlu0 %v1294
    %v1395 = vpop.xlane.xlu0 %1394
    %1396 = vadd.xlane.f32.xlu0 %v1295
    %v1397 = vpop.xlane.xlu0 %1396
    %1398 = vadd.xlane.f32.xlu0 %v1296
    %v1399 = vpop.xlane.xlu0 %1398
    %1400 = vadd.xlane.f32.xlu0 %v1297
    %v1401 = vpop.xlane.xlu0 %1400
    %1402 = vadd.xlane.f32.xlu0 %v1298
    %v1403 = vpop.xlane.xlu0 %1402
    %1404 = vadd.xlane.f32.xlu0 %v1299
    %v1405 = vpop.xlane.xlu0 %1404
    %1406 = vadd.xlane.f32.xlu0 %v1300
    %v1407 = vpop.xlane.xlu0 %1406
    %1408 = vadd.xlane.f32.xlu0 %v1301
    %v1409 = vpop.xlane.xlu0 %1408
    %1410 = vadd.xlane.f32.xlu0 %v1302
    %v1411 = vpop.xlane.xlu0 %1410
    %1412 = vadd.xlane.f32.xlu0 %v1303
    %v1413 = vpop.xlane.xlu0 %1412
    %1414 = vadd.xlane.f32.xlu0 %v1304
    %v1415 = vpop.xlane.xlu0 %1414
    %1416 = vadd.xlane.f32.xlu0 %v1305
    %v1417 = vpop.xlane.xlu0 %1416
    %1418 = vadd.xlane.f32.xlu0 %v1306
    %v1419 = vpop.xlane.xlu0 %1418
    %1420 = vadd.xlane.f32.xlu0 %v1307
    %v1421 = vpop.xlane.xlu0 %1420
    %1422 = vadd.xlane.f32.xlu0 %v1308
    %v1423 = vpop.xlane.xlu0 %1422
    %1424 = vadd.xlane.f32.xlu0 %v1309
    %v1425 = vpop.xlane.xlu0 %1424
    %1426 = vadd.xlane.f32.xlu0 %v1310
    %v1427 = vpop.xlane.xlu0 %1426
    %1428 = vadd.xlane.f32.xlu0 %v1311
    %v1429 = vpop.xlane.xlu0 %1428
    %1430 = vadd.xlane.f32.xlu0 %v1312
    %v1431 = vpop.xlane.xlu0 %1430
    %1432 = vadd.xlane.f32.xlu0 %v1313
    %v1433 = vpop.xlane.xlu0 %1432
    %1434 = vadd.xlane.f32.xlu0 %v1314
    %v1435 = vpop.xlane.xlu0 %1434
    %1436 = vadd.xlane.f32.xlu0 %v1315
    %v1437 = vpop.xlane.xlu0 %1436
    %1438 = vadd.xlane.f32.xlu0 %v1316
    %v1439 = vpop.xlane.xlu0 %1438
    %1440 = vadd.xlane.f32.xlu0 %v1317
    %v1441 = vpop.xlane.xlu0 %1440
    %1442 = vadd.xlane.f32.xlu0 %v1318
    %v1443 = vpop.xlane.xlu0 %1442
    %1444 = vadd.xlane.f32.xlu0 %v1319
    %v1445 = vpop.xlane.xlu0 %1444
    %1446 = vadd.xlane.f32.xlu0 %v1320
    %v1447 = vpop.xlane.xlu0 %1446
    %1448 = vadd.xlane.f32.xlu0 %v1321
    %v1449 = vpop.xlane.xlu0 %1448
    %v1450 = vmul.f32 %v1323, %v1129
    %v1451 = vmul.f32 %v1325, %v1129
    %v1452 = vmul.f32 %v1327, %v1129
    %v1453 = vmul.f32 %v1329, %v1129
    %v1454 = vmul.f32 %v1331, %v1129
    %v1455 = vmul.f32 %v1333, %v1129
    %v1456 = vmul.f32 %v1335, %v1129
    %v1457 = vmul.f32 %v1337, %v1129
    %v1458 = vmul.f32 %v1339, %v1129
    %v1459 = vmul.f32 %v1341, %v1129
    %v1460 = vmul.f32 %v1343, %v1129
    %v1461 = vmul.f32 %v1345, %v1129
    %v1462 = vmul.f32 %v1347, %v1129
    %v1463 = vmul.f32 %v1349, %v1129
    %v1464 = vmul.f32 %v1351, %v1129
    %v1465 = vmul.f32 %v1353, %v1129
    %v1466 = vmul.f32 %v1355, %v1129
    %v1467 = vmul.f32 %v1357, %v1129
    %v1468 = vmul.f32 %v1359, %v1129
    %v1469 = vmul.f32 %v1361, %v1129
    %v1470 = vmul.f32 %v1363, %v1129
    %v1471 = vmul.f32 %v1365, %v1129
    %v1472 = vmul.f32 %v1367, %v1129
    %v1473 = vmul.f32 %v1369, %v1129
    %v1474 = vmul.f32 %v1371, %v1129
    %v1475 = vmul.f32 %v1373, %v1129
    %v1476 = vmul.f32 %v1375, %v1129
    %v1477 = vmul.f32 %v1377, %v1129
    %v1478 = vmul.f32 %v1379, %v1129
    %v1479 = vmul.f32 %v1381, %v1129
    %v1480 = vmul.f32 %v1383, %v1129
    %v1481 = vmul.f32 %v1385, %v1129
    %v1482 = vmul.f32 %v1387, %v1129
    %v1483 = vmul.f32 %v1389, %v1129
    %v1484 = vmul.f32 %v1391, %v1129
    %v1485 = vmul.f32 %v1393, %v1129
    %v1486 = vmul.f32 %v1395, %v1129
    %v1487 = vmul.f32 %v1397, %v1129
    %v1488 = vmul.f32 %v1399, %v1129
    %v1489 = vmul.f32 %v1401, %v1129
    %v1490 = vmul.f32 %v1403, %v1129
    %v1491 = vmul.f32 %v1405, %v1129
    %v1492 = vmul.f32 %v1407, %v1129
    %v1493 = vmul.f32 %v1409, %v1129
    %v1494 = vmul.f32 %v1411, %v1129
    %v1495 = vmul.f32 %v1413, %v1129
    %v1496 = vmul.f32 %v1415, %v1129
    %v1497 = vmul.f32 %v1417, %v1129
    %v1498 = vmul.f32 %v1419, %v1129
    %v1499 = vmul.f32 %v1421, %v1129
    %v1500 = vmul.f32 %v1423, %v1129
    %v1501 = vmul.f32 %v1425, %v1129
    %v1502 = vmul.f32 %v1427, %v1129
    %v1503 = vmul.f32 %v1429, %v1129
    %v1504 = vmul.f32 %v1431, %v1129
    %v1505 = vmul.f32 %v1433, %v1129
    %v1506 = vmul.f32 %v1435, %v1129
    %v1507 = vmul.f32 %v1437, %v1129
    %v1508 = vmul.f32 %v1439, %v1129
    %v1509 = vmul.f32 %v1441, %v1129
    %v1510 = vmul.f32 %v1443, %v1129
    %v1511 = vmul.f32 %v1445, %v1129
    %v1512 = vmul.f32 %v1447, %v1129
    %v1513 = vmul.f32 %v1449, %v1129
    %v1514 = vadd.f32 %v1450, 1e-05
    %v1515 = vadd.f32 %v1451, 1e-05
    %v1516 = vadd.f32 %v1452, 1e-05
    %v1517 = vadd.f32 %v1453, 1e-05
    %v1518 = vadd.f32 %v1454, 1e-05
    %v1519 = vadd.f32 %v1455, 1e-05
    %v1520 = vadd.f32 %v1456, 1e-05
    %v1521 = vadd.f32 %v1457, 1e-05
    %v1522 = vadd.f32 %v1458, 1e-05
    %v1523 = vadd.f32 %v1459, 1e-05
    %v1524 = vadd.f32 %v1460, 1e-05
    %v1525 = vadd.f32 %v1461, 1e-05
    %v1526 = vadd.f32 %v1462, 1e-05
    %v1527 = vadd.f32 %v1463, 1e-05
    %v1528 = vadd.f32 %v1464, 1e-05
    %v1529 = vadd.f32 %v1465, 1e-05
    %v1530 = vadd.f32 %v1466, 1e-05
    %v1531 = vadd.f32 %v1467, 1e-05
    %v1532 = vadd.f32 %v1468, 1e-05
    %v1533 = vadd.f32 %v1469, 1e-05
    %v1534 = vadd.f32 %v1470, 1e-05
    %v1535 = vadd.f32 %v1471, 1e-05
    %v1536 = vadd.f32 %v1472, 1e-05
    %v1537 = vadd.f32 %v1473, 1e-05
    %v1538 = vadd.f32 %v1474, 1e-05
    %v1539 = vadd.f32 %v1475, 1e-05
    %v1540 = vadd.f32 %v1476, 1e-05
    %v1541 = vadd.f32 %v1477, 1e-05
    %v1542 = vadd.f32 %v1478, 1e-05
    %v1543 = vadd.f32 %v1479, 1e-05
    %v1544 = vadd.f32 %v1480, 1e-05
    %v1545 = vadd.f32 %v1481, 1e-05
    %v1546 = vadd.f32 %v1482, 1e-05
    %v1547 = vadd.f32 %v1483, 1e-05
    %v1548 = vadd.f32 %v1484, 1e-05
    %v1549 = vadd.f32 %v1485, 1e-05
    %v1550 = vadd.f32 %v1486, 1e-05
    %v1551 = vadd.f32 %v1487, 1e-05
    %v1552 = vadd.f32 %v1488, 1e-05
    %v1553 = vadd.f32 %v1489, 1e-05
    %v1554 = vadd.f32 %v1490, 1e-05
    %v1555 = vadd.f32 %v1491, 1e-05
    %v1556 = vadd.f32 %v1492, 1e-05
    %v1557 = vadd.f32 %v1493, 1e-05
    %v1558 = vadd.f32 %v1494, 1e-05
    %v1559 = vadd.f32 %v1495, 1e-05
    %v1560 = vadd.f32 %v1496, 1e-05
    %v1561 = vadd.f32 %v1497, 1e-05
    %v1562 = vadd.f32 %v1498, 1e-05
    %v1563 = vadd.f32 %v1499, 1e-05
    %v1564 = vadd.f32 %v1500, 1e-05
    %v1565 = vadd.f32 %v1501, 1e-05
    %v1566 = vadd.f32 %v1502, 1e-05
    %v1567 = vadd.f32 %v1503, 1e-05
    %v1568 = vadd.f32 %v1504, 1e-05
    %v1569 = vadd.f32 %v1505, 1e-05
    %v1570 = vadd.f32 %v1506, 1e-05
    %v1571 = vadd.f32 %v1507, 1e-05
    %v1572 = vadd.f32 %v1508, 1e-05
    %v1573 = vadd.f32 %v1509, 1e-05
    %v1574 = vadd.f32 %v1510, 1e-05
    %v1575 = vadd.f32 %v1511, 1e-05
    %v1576 = vadd.f32 %v1512, 1e-05
    %v1577 = vadd.f32 %v1513, 1e-05
    %v1578 = vrsqrt.pop %v1514
    %v1579 = vrsqrt.pop %v1515
    %v1580 = vrsqrt.pop %v1516
    %v1581 = vrsqrt.pop %v1517
    %v1582 = vrsqrt.pop %v1518
    %v1583 = vrsqrt.pop %v1519
    %v1584 = vrsqrt.pop %v1520
    %v1585 = vrsqrt.pop %v1521
    %v1586 = vrsqrt.pop %v1522
    %v1587 = vrsqrt.pop %v1523
    %v1588 = vrsqrt.pop %v1524
    %v1589 = vrsqrt.pop %v1525
    %v1590 = vrsqrt.pop %v1526
    %v1591 = vrsqrt.pop %v1527
    %v1592 = vrsqrt.pop %v1528
    %v1593 = vrsqrt.pop %v1529
    %v1594 = vrsqrt.pop %v1530
    %v1595 = vrsqrt.pop %v1531
    %v1596 = vrsqrt.pop %v1532
    %v1597 = vrsqrt.pop %v1533
    %v1598 = vrsqrt.pop %v1534
    %v1599 = vrsqrt.pop %v1535
    %v1600 = vrsqrt.pop %v1536
    %v1601 = vrsqrt.pop %v1537
    %v1602 = vrsqrt.pop %v1538
    %v1603 = vrsqrt.pop %v1539
    %v1604 = vrsqrt.pop %v1540
    %v1605 = vrsqrt.pop %v1541
    %v1606 = vrsqrt.pop %v1542
    %v1607 = vrsqrt.pop %v1543
    %v1608 = vrsqrt.pop %v1544
    %v1609 = vrsqrt.pop %v1545
    %v1610 = vrsqrt.pop %v1546
    %v1611 = vrsqrt.pop %v1547
    %v1612 = vrsqrt.pop %v1548
    %v1613 = vrsqrt.pop %v1549
    %v1614 = vrsqrt.pop %v1550
    %v1615 = vrsqrt.pop %v1551
    %v1616 = vrsqrt.pop %v1552
    %v1617 = vrsqrt.pop %v1553
    %v1618 = vrsqrt.pop %v1554
    %v1619 = vrsqrt.pop %v1555
    %v1620 = vrsqrt.pop %v1556
    %v1621 = vrsqrt.pop %v1557
    %v1622 = vrsqrt.pop %v1558
    %v1623 = vrsqrt.pop %v1559
    %v1624 = vrsqrt.pop %v1560
    %v1625 = vrsqrt.pop %v1561
    %v1626 = vrsqrt.pop %v1562
    %v1627 = vrsqrt.pop %v1563
    %v1628 = vrsqrt.pop %v1564
    %v1629 = vrsqrt.pop %v1565
    %v1630 = vrsqrt.pop %v1566
    %v1631 = vrsqrt.pop %v1567
    %v1632 = vrsqrt.pop %v1568
    %v1633 = vrsqrt.pop %v1569
    %v1634 = vrsqrt.pop %v1570
    %v1635 = vrsqrt.pop %v1571
    %v1636 = vrsqrt.pop %v1572
    %v1637 = vrsqrt.pop %v1573
    %v1638 = vrsqrt.pop %v1574
    %v1639 = vrsqrt.pop %v1575
    %v1640 = vrsqrt.pop %v1576
    %v1641 = vrsqrt.pop %v1577
    %v1642 = vmul.f32 %v1194, %v1578
    %v1643 = vmul.f32 %v1195, %v1579
    %v1644 = vmul.f32 %v1196, %v1580
    %v1645 = vmul.f32 %v1197, %v1581
    %v1646 = vmul.f32 %v1198, %v1582
    %v1647 = vmul.f32 %v1199, %v1583
    %v1648 = vmul.f32 %v1200, %v1584
    %v1649 = vmul.f32 %v1201, %v1585
    %v1650 = vmul.f32 %v1202, %v1586
    %v1651 = vmul.f32 %v1203, %v1587
    %v1652 = vmul.f32 %v1204, %v1588
    %v1653 = vmul.f32 %v1205, %v1589
    %v1654 = vmul.f32 %v1206, %v1590
    %v1655 = vmul.f32 %v1207, %v1591
    %v1656 = vmul.f32 %v1208, %v1592
    %v1657 = vmul.f32 %v1209, %v1593
    %v1658 = vmul.f32 %v1210, %v1594
    %v1659 = vmul.f32 %v1211, %v1595
    %v1660 = vmul.f32 %v1212, %v1596
    %v1661 = vmul.f32 %v1213, %v1597
    %v1662 = vmul.f32 %v1214, %v1598
    %v1663 = vmul.f32 %v1215, %v1599
    %v1664 = vmul.f32 %v1216, %v1600
    %v1665 = vmul.f32 %v1217, %v1601
    %v1666 = vmul.f32 %v1218, %v1602
    %v1667 = vmul.f32 %v1219, %v1603
    %v1668 = vmul.f32 %v1220, %v1604
    %v1669 = vmul.f32 %v1221, %v1605
    %v1670 = vmul.f32 %v1222, %v1606
    %v1671 = vmul.f32 %v1223, %v1607
    %v1672 = vmul.f32 %v1224, %v1608
    %v1673 = vmul.f32 %v1225, %v1609
    %v1674 = vmul.f32 %v1226, %v1610
    %v1675 = vmul.f32 %v1227, %v1611
    %v1676 = vmul.f32 %v1228, %v1612
    %v1677 = vmul.f32 %v1229, %v1613
    %v1678 = vmul.f32 %v1230, %v1614
    %v1679 = vmul.f32 %v1231, %v1615
    %v1680 = vmul.f32 %v1232, %v1616
    %v1681 = vmul.f32 %v1233, %v1617
    %v1682 = vmul.f32 %v1234, %v1618
    %v1683 = vmul.f32 %v1235, %v1619
    %v1684 = vmul.f32 %v1236, %v1620
    %v1685 = vmul.f32 %v1237, %v1621
    %v1686 = vmul.f32 %v1238, %v1622
    %v1687 = vmul.f32 %v1239, %v1623
    %v1688 = vmul.f32 %v1240, %v1624
    %v1689 = vmul.f32 %v1241, %v1625
    %v1690 = vmul.f32 %v1242, %v1626
    %v1691 = vmul.f32 %v1243, %v1627
    %v1692 = vmul.f32 %v1244, %v1628
    %v1693 = vmul.f32 %v1245, %v1629
    %v1694 = vmul.f32 %v1246, %v1630
    %v1695 = vmul.f32 %v1247, %v1631
    %v1696 = vmul.f32 %v1248, %v1632
    %v1697 = vmul.f32 %v1249, %v1633
    %v1698 = vmul.f32 %v1250, %v1634
    %v1699 = vmul.f32 %v1251, %v1635
    %v1700 = vmul.f32 %v1252, %v1636
    %v1701 = vmul.f32 %v1253, %v1637
    %v1702 = vmul.f32 %v1254, %v1638
    %v1703 = vmul.f32 %v1255, %v1639
    %v1704 = vmul.f32 %v1256, %v1640
    %v1705 = vmul.f32 %v1257, %v1641
    %v1707 = vlaneseq
    %v1708 = vshrl.u32 %v1707, 7
    %v1709 = vsub.s32 0, %v1708
    %v1710 = vrot.slane %v999, %v1709
    %v1712 = vmul.f32 %v1642, %v1710
    %v1713 = vmul.f32 %v1643, %v1710
    %v1714 = vmul.f32 %v1644, %v1710
    %v1715 = vmul.f32 %v1645, %v1710
    %v1716 = vmul.f32 %v1646, %v1710
    %v1717 = vmul.f32 %v1647, %v1710
    %v1718 = vmul.f32 %v1648, %v1710
    %v1719 = vmul.f32 %v1649, %v1710
    %v1720 = vmul.f32 %v1650, %v1710
    %v1721 = vmul.f32 %v1651, %v1710
    %v1722 = vmul.f32 %v1652, %v1710
    %v1723 = vmul.f32 %v1653, %v1710
    %v1724 = vmul.f32 %v1654, %v1710
    %v1725 = vmul.f32 %v1655, %v1710
    %v1726 = vmul.f32 %v1656, %v1710
    %v1727 = vmul.f32 %v1657, %v1710
    %v1728 = vmul.f32 %v1658, %v1710
    %v1729 = vmul.f32 %v1659, %v1710
    %v1730 = vmul.f32 %v1660, %v1710
    %v1731 = vmul.f32 %v1661, %v1710
    %v1732 = vmul.f32 %v1662, %v1710
    %v1733 = vmul.f32 %v1663, %v1710
    %v1734 = vmul.f32 %v1664, %v1710
    %v1735 = vmul.f32 %v1665, %v1710
    %v1736 = vmul.f32 %v1666, %v1710
    %v1737 = vmul.f32 %v1667, %v1710
    %v1738 = vmul.f32 %v1668, %v1710
    %v1739 = vmul.f32 %v1669, %v1710
    %v1740 = vmul.f32 %v1670, %v1710
    %v1741 = vmul.f32 %v1671, %v1710
    %v1742 = vmul.f32 %v1672, %v1710
    %v1743 = vmul.f32 %v1673, %v1710
    %v1744 = vmul.f32 %v1674, %v1710
    %v1745 = vmul.f32 %v1675, %v1710
    %v1746 = vmul.f32 %v1676, %v1710
    %v1747 = vmul.f32 %v1677, %v1710
    %v1748 = vmul.f32 %v1678, %v1710
    %v1749 = vmul.f32 %v1679, %v1710
    %v1750 = vmul.f32 %v1680, %v1710
    %v1751 = vmul.f32 %v1681, %v1710
    %v1752 = vmul.f32 %v1682, %v1710
    %v1753 = vmul.f32 %v1683, %v1710
    %v1754 = vmul.f32 %v1684, %v1710
    %v1755 = vmul.f32 %v1685, %v1710
    %v1756 = vmul.f32 %v1686, %v1710
    %v1757 = vmul.f32 %v1687, %v1710
    %v1758 = vmul.f32 %v1688, %v1710
    %v1759 = vmul.f32 %v1689, %v1710
    %v1760 = vmul.f32 %v1690, %v1710
    %v1761 = vmul.f32 %v1691, %v1710
    %v1762 = vmul.f32 %v1692, %v1710
    %v1763 = vmul.f32 %v1693, %v1710
    %v1764 = vmul.f32 %v1694, %v1710
    %v1765 = vmul.f32 %v1695, %v1710
    %v1766 = vmul.f32 %v1696, %v1710
    %v1767 = vmul.f32 %v1697, %v1710
    %v1768 = vmul.f32 %v1698, %v1710
    %v1769 = vmul.f32 %v1699, %v1710
    %v1770 = vmul.f32 %v1700, %v1710
    %v1771 = vmul.f32 %v1701, %v1710
    %v1772 = vmul.f32 %v1702, %v1710
    %v1773 = vmul.f32 %v1703, %v1710
    %v1774 = vmul.f32 %v1704, %v1710
    %v1775 = vmul.f32 %v1705, %v1710
    %v1777 = vlaneseq
    %v1778 = vshrl.u32 %v1777, 7
    %v1779 = vsub.s32 0, %v1778
    %v1780 = vrot.slane %v1000, %v1779
    %v1782 = vadd.f32 %v1712, %v1780
    %v1783 = vadd.f32 %v1713, %v1780
    %v1784 = vadd.f32 %v1714, %v1780
    %v1785 = vadd.f32 %v1715, %v1780
    %v1786 = vadd.f32 %v1716, %v1780
    %v1787 = vadd.f32 %v1717, %v1780
    %v1788 = vadd.f32 %v1718, %v1780
    %v1789 = vadd.f32 %v1719, %v1780
    %v1790 = vadd.f32 %v1720, %v1780
    %v1791 = vadd.f32 %v1721, %v1780
    %v1792 = vadd.f32 %v1722, %v1780
    %v1793 = vadd.f32 %v1723, %v1780
    %v1794 = vadd.f32 %v1724, %v1780
    %v1795 = vadd.f32 %v1725, %v1780
    %v1796 = vadd.f32 %v1726, %v1780
    %v1797 = vadd.f32 %v1727, %v1780
    %v1798 = vadd.f32 %v1728, %v1780
    %v1799 = vadd.f32 %v1729, %v1780
    %v1800 = vadd.f32 %v1730, %v1780
    %v1801 = vadd.f32 %v1731, %v1780
    %v1802 = vadd.f32 %v1732, %v1780
    %v1803 = vadd.f32 %v1733, %v1780
    %v1804 = vadd.f32 %v1734, %v1780
    %v1805 = vadd.f32 %v1735, %v1780
    %v1806 = vadd.f32 %v1736, %v1780
    %v1807 = vadd.f32 %v1737, %v1780
    %v1808 = vadd.f32 %v1738, %v1780
    %v1809 = vadd.f32 %v1739, %v1780
    %v1810 = vadd.f32 %v1740, %v1780
    %v1811 = vadd.f32 %v1741, %v1780
    %v1812 = vadd.f32 %v1742, %v1780
    %v1813 = vadd.f32 %v1743, %v1780
    %v1814 = vadd.f32 %v1744, %v1780
    %v1815 = vadd.f32 %v1745, %v1780
    %v1816 = vadd.f32 %v1746, %v1780
    %v1817 = vadd.f32 %v1747, %v1780
    %v1818 = vadd.f32 %v1748, %v1780
    %v1819 = vadd.f32 %v1749, %v1780
    %v1820 = vadd.f32 %v1750, %v1780
    %v1821 = vadd.f32 %v1751, %v1780
    %v1822 = vadd.f32 %v1752, %v1780
    %v1823 = vadd.f32 %v1753, %v1780
    %v1824 = vadd.f32 %v1754, %v1780
    %v1825 = vadd.f32 %v1755, %v1780
    %v1826 = vadd.f32 %v1756, %v1780
    %v1827 = vadd.f32 %v1757, %v1780
    %v1828 = vadd.f32 %v1758, %v1780
    %v1829 = vadd.f32 %v1759, %v1780
    %v1830 = vadd.f32 %v1760, %v1780
    %v1831 = vadd.f32 %v1761, %v1780
    %v1832 = vadd.f32 %v1762, %v1780
    %v1833 = vadd.f32 %v1763, %v1780
    %v1834 = vadd.f32 %v1764, %v1780
    %v1835 = vadd.f32 %v1765, %v1780
    %v1836 = vadd.f32 %v1766, %v1780
    %v1837 = vadd.f32 %v1767, %v1780
    %v1838 = vadd.f32 %v1768, %v1780
    %v1839 = vadd.f32 %v1769, %v1780
    %v1840 = vadd.f32 %v1770, %v1780
    %v1841 = vadd.f32 %v1771, %v1780
    %v1842 = vadd.f32 %v1772, %v1780
    %v1843 = vadd.f32 %v1773, %v1780
    %v1844 = vadd.f32 %v1774, %v1780
    %v1845 = vadd.f32 %v1775, %v1780
    %v1846 = vpack.c.bf16 %v1783, %v1782
    %v1847 = vpack.c.bf16 %v1785, %v1784
    %v1848 = vpack.c.bf16 %v1787, %v1786
    %v1849 = vpack.c.bf16 %v1789, %v1788
    %v1850 = vpack.c.bf16 %v1791, %v1790
    %v1851 = vpack.c.bf16 %v1793, %v1792
    %v1852 = vpack.c.bf16 %v1795, %v1794
    %v1853 = vpack.c.bf16 %v1797, %v1796
    %v1854 = vpack.c.bf16 %v1799, %v1798
    %v1855 = vpack.c.bf16 %v1801, %v1800
    %v1856 = vpack.c.bf16 %v1803, %v1802
    %v1857 = vpack.c.bf16 %v1805, %v1804
    %v1858 = vpack.c.bf16 %v1807, %v1806
    %v1859 = vpack.c.bf16 %v1809, %v1808
    %v1860 = vpack.c.bf16 %v1811, %v1810
    %v1861 = vpack.c.bf16 %v1813, %v1812
    %v1862 = vpack.c.bf16 %v1815, %v1814
    %v1863 = vpack.c.bf16 %v1817, %v1816
    %v1864 = vpack.c.bf16 %v1819, %v1818
    %v1865 = vpack.c.bf16 %v1821, %v1820
    %v1866 = vpack.c.bf16 %v1823, %v1822
    %v1867 = vpack.c.bf16 %v1825, %v1824
    %v1868 = vpack.c.bf16 %v1827, %v1826
    %v1869 = vpack.c.bf16 %v1829, %v1828
    %v1870 = vpack.c.bf16 %v1831, %v1830
    %v1871 = vpack.c.bf16 %v1833, %v1832
    %v1872 = vpack.c.bf16 %v1835, %v1834
    %v1873 = vpack.c.bf16 %v1837, %v1836
    %v1874 = vpack.c.bf16 %v1839, %v1838
    %v1875 = vpack.c.bf16 %v1841, %v1840
    %v1876 = vpack.c.bf16 %v1843, %v1842
    %v1877 = vpack.c.bf16 %v1845, %v1844
    %v1878 = vld [vmem:[#allocation5] sm:$0xf]
    %v1879 = vld [vmem:[#allocation5 + $0x4] sm:$0xf]
    %v1880 = vld [vmem:[#allocation5 + $0x8] sm:$0xf]
    %v1881 = vld [vmem:[#allocation5 + $0xc] sm:$0xf]
    %v1882 = vld [vmem:[#allocation5 + $0x10] sm:$0xf]
    %v1883 = vld [vmem:[#allocation5 + $0x14] sm:$0xf]
    %v1884 = vld [vmem:[#allocation5 + $0x18] sm:$0xf]
    %v1885 = vld [vmem:[#allocation5 + $0x1c] sm:$0xf]
    %v1886 = vld [vmem:[#allocation5 + $0x20] sm:$0xf]
    %v1887 = vld [vmem:[#allocation5 + $0x24] sm:$0xf]
    %v1888 = vld [vmem:[#allocation5 + $0x28] sm:$0xf]
    %v1889 = vld [vmem:[#allocation5 + $0x2c] sm:$0xf]
    %v1890 = vld [vmem:[#allocation5 + $0x30] sm:$0xf]
    %v1891 = vld [vmem:[#allocation5 + $0x34] sm:$0xf]
    %v1892 = vld [vmem:[#allocation5 + $0x38] sm:$0xf]
    %v1893 = vld [vmem:[#allocation5 + $0x3c] sm:$0xf]
    %v1910 = vunpack.c.l.b16 %v1878
    %v1911 = vunpack.c.l.b16 %v1879
    %v1912 = vunpack.c.l.b16 %v1880
    %v1913 = vunpack.c.l.b16 %v1881
    %v1914 = vunpack.c.l.b16 %v1882
    %v1915 = vunpack.c.l.b16 %v1883
    %v1916 = vunpack.c.l.b16 %v1884
    %v1917 = vunpack.c.l.b16 %v1885
    %v1918 = vunpack.c.l.b16 %v1886
    %v1919 = vunpack.c.l.b16 %v1887
    %v1920 = vunpack.c.l.b16 %v1888
    %v1921 = vunpack.c.l.b16 %v1889
    %v1922 = vunpack.c.l.b16 %v1890
    %v1923 = vunpack.c.l.b16 %v1891
    %v1924 = vunpack.c.l.b16 %v1892
    %v1925 = vunpack.c.l.b16 %v1893
    %v1926 = vpack.c.b16 %v1911, %v1910
    %v1927 = vpack.c.b16 %v1913, %v1912
    %v1928 = vpack.c.b16 %v1915, %v1914
    %v1929 = vpack.c.b16 %v1917, %v1916
    %v1930 = vpack.c.b16 %v1919, %v1918
    %v1931 = vpack.c.b16 %v1921, %v1920
    %v1932 = vpack.c.b16 %v1923, %v1922
    %v1933 = vpack.c.b16 %v1925, %v1924
    %1942 = vmatprep.subr.bf16.mxu0 0
    %1943 = vmatpush1.bf16.msra.mxu0 %v1933
    %1944 = vmatprep.subr.bf16.mxu0 0
    %1945 = vmatpush1.bf16.msra.mxu0 %v1932
    %1946 = vmatprep.subr.bf16.mxu0 0
    %1947 = vmatpush1.bf16.msra.mxu0 %v1931
    %1948 = vmatprep.subr.bf16.mxu0 0
    %1949 = vmatpush1.bf16.msra.mxu0 %v1930
    %1950 = vmatprep.subr.bf16.mxu0 0
    %1951 = vmatpush1.bf16.msra.mxu0 %v1929
    %1952 = vmatprep.subr.bf16.mxu0 0
    %1953 = vmatpush1.bf16.msra.mxu0 %v1928
    %1954 = vmatprep.subr.bf16.mxu0 0
    %1955 = vmatpush1.bf16.msra.mxu0 %v1927
    %1956 = vmatprep.subr.bf16.mxu0 0
    %1957 = vmatpush1.bf16.msra.mxu0 %v1926
    %1958 = vmatprep.subr.bf16.mxu0 0
    %1959 = vmatpush2.bf16.msra.mxu0 0
    %1960 = vmatprep.subr.bf16.mxu0 0
    %1961 = vmatpush2.bf16.msra.mxu0 0
    %1962 = vmatprep.subr.bf16.mxu0 0
    %1963 = vmatpush2.bf16.msra.mxu0 0
    %1964 = vmatprep.subr.bf16.mxu0 0
    %1965 = vmatpush2.bf16.msra.mxu0 0
    %1966 = vmatprep.subr.bf16.mxu0 0
    %1967 = vmatpush2.bf16.msra.mxu0 0
    %1968 = vmatprep.subr.bf16.mxu0 0
    %1969 = vmatpush2.bf16.msra.mxu0 0
    %1970 = vmatprep.subr.bf16.mxu0 0
    %1971 = vmatpush2.bf16.msra.mxu0 0
    %1972 = vmatprep.subr.bf16.mxu0 0
    %1973 = vmatpush2.bf16.msra.mxu0 0
    %1974 = vmatprep.mubr.bf16.mxu0 0
    %1975 = vmatmul.mubr.bf16.gmra.mxu0 %v1846
    %v1976 = vpop.f32.mrf.mxu0
    %v1977 = vadd.f32 0.0, %v1976
    %v1978 = vpop.f32.mrf.mxu0
    %v1979 = vpop.f32.mrf.mxu0
    %v1980 = vadd.f32 0.0, %v1979
    %v1981 = vpop.f32.mrf.mxu0
    %1982 = vmatprep.mubr.bf16.mxu0 0
    %1983 = vmatmul.mubr.bf16.gmra.mxu0 %v1847
    %v1984 = vpop.f32.mrf.mxu0
    %v1985 = vadd.f32 0.0, %v1984
    %v1986 = vpop.f32.mrf.mxu0
    %v1987 = vpop.f32.mrf.mxu0
    %v1988 = vadd.f32 0.0, %v1987
    %v1989 = vpop.f32.mrf.mxu0
    %1990 = vmatprep.mubr.bf16.mxu0 0
    %1991 = vmatmul.mubr.bf16.gmra.mxu0 %v1848
    %v1992 = vpop.f32.mrf.mxu0
    %v1993 = vadd.f32 0.0, %v1992
    %v1994 = vpop.f32.mrf.mxu0
    %v1995 = vpop.f32.mrf.mxu0
    %v1996 = vadd.f32 0.0, %v1995
    %v1997 = vpop.f32.mrf.mxu0
    %1998 = vmatprep.mubr.bf16.mxu0 0
    %1999 = vmatmul.mubr.bf16.gmra.mxu0 %v1849
    %v2000 = vpop.f32.mrf.mxu0
    %v2001 = vadd.f32 0.0, %v2000
    %v2002 = vpop.f32.mrf.mxu0
    %v2003 = vpop.f32.mrf.mxu0
    %v2004 = vadd.f32 0.0, %v2003
    %v2005 = vpop.f32.mrf.mxu0
    %2006 = vmatprep.mubr.bf16.mxu0 0
    %2007 = vmatmul.mubr.bf16.gmra.mxu0 %v1850
    %v2008 = vpop.f32.mrf.mxu0
    %v2009 = vadd.f32 0.0, %v2008
    %v2010 = vpop.f32.mrf.mxu0
    %v2011 = vpop.f32.mrf.mxu0
    %v2012 = vadd.f32 0.0, %v2011
    %v2013 = vpop.f32.mrf.mxu0
    %2014 = vmatprep.mubr.bf16.mxu0 0
    %2015 = vmatmul.mubr.bf16.gmra.mxu0 %v1851
    %v2016 = vpop.f32.mrf.mxu0
    %v2017 = vadd.f32 0.0, %v2016
    %v2018 = vpop.f32.mrf.mxu0
    %v2019 = vpop.f32.mrf.mxu0
    %v2020 = vadd.f32 0.0, %v2019
    %v2021 = vpop.f32.mrf.mxu0
    %2022 = vmatprep.mubr.bf16.mxu0 0
    %2023 = vmatmul.mubr.bf16.gmra.mxu0 %v1852
    %v2024 = vpop.f32.mrf.mxu0
    %v2025 = vadd.f32 0.0, %v2024
    %v2026 = vpop.f32.mrf.mxu0
    %v2027 = vpop.f32.mrf.mxu0
    %v2028 = vadd.f32 0.0, %v2027
    %v2029 = vpop.f32.mrf.mxu0
    %2030 = vmatprep.mubr.bf16.mxu0 0
    %2031 = vmatmul.mubr.bf16.gmra.mxu0 %v1853
    %v2032 = vpop.f32.mrf.mxu0
    %v2033 = vadd.f32 0.0, %v2032
    %v2034 = vpop.f32.mrf.mxu0
    %v2035 = vpop.f32.mrf.mxu0
    %v2036 = vadd.f32 0.0, %v2035
    %v2037 = vpop.f32.mrf.mxu0
    %2038 = vmatprep.mubr.bf16.mxu0 0
    %2039 = vmatmul.mubr.bf16.gmra.mxu0 %v1854
    %v2040 = vpop.f32.mrf.mxu0
    %v2041 = vadd.f32 0.0, %v2040
    %v2042 = vpop.f32.mrf.mxu0
    %v2043 = vpop.f32.mrf.mxu0
    %v2044 = vadd.f32 0.0, %v2043
    %v2045 = vpop.f32.mrf.mxu0
    %2046 = vmatprep.mubr.bf16.mxu0 0
    %2047 = vmatmul.mubr.bf16.gmra.mxu0 %v1855
    %v2048 = vpop.f32.mrf.mxu0
    %v2049 = vadd.f32 0.0, %v2048
    %v2050 = vpop.f32.mrf.mxu0
    %v2051 = vpop.f32.mrf.mxu0
    %v2052 = vadd.f32 0.0, %v2051
    %v2053 = vpop.f32.mrf.mxu0
    %2054 = vmatprep.mubr.bf16.mxu0 0
    %2055 = vmatmul.mubr.bf16.gmra.mxu0 %v1856
    %v2056 = vpop.f32.mrf.mxu0
    %v2057 = vadd.f32 0.0, %v2056
    %v2058 = vpop.f32.mrf.mxu0
    %v2059 = vpop.f32.mrf.mxu0
    %v2060 = vadd.f32 0.0, %v2059
    %v2061 = vpop.f32.mrf.mxu0
    %2062 = vmatprep.mubr.bf16.mxu0 0
    %2063 = vmatmul.mubr.bf16.gmra.mxu0 %v1857
    %v2064 = vpop.f32.mrf.mxu0
    %v2065 = vadd.f32 0.0, %v2064
    %v2066 = vpop.f32.mrf.mxu0
    %v2067 = vpop.f32.mrf.mxu0
    %v2068 = vadd.f32 0.0, %v2067
    %v2069 = vpop.f32.mrf.mxu0
    %2070 = vmatprep.mubr.bf16.mxu0 0
    %2071 = vmatmul.mubr.bf16.gmra.mxu0 %v1858
    %v2072 = vpop.f32.mrf.mxu0
    %v2073 = vadd.f32 0.0, %v2072
    %v2074 = vpop.f32.mrf.mxu0
    %v2075 = vpop.f32.mrf.mxu0
    %v2076 = vadd.f32 0.0, %v2075
    %v2077 = vpop.f32.mrf.mxu0
    %2078 = vmatprep.mubr.bf16.mxu0 0
    %2079 = vmatmul.mubr.bf16.gmra.mxu0 %v1859
    %v2080 = vpop.f32.mrf.mxu0
    %v2081 = vadd.f32 0.0, %v2080
    %v2082 = vpop.f32.mrf.mxu0
    %v2083 = vpop.f32.mrf.mxu0
    %v2084 = vadd.f32 0.0, %v2083
    %v2085 = vpop.f32.mrf.mxu0
    %2086 = vmatprep.mubr.bf16.mxu0 0
    %2087 = vmatmul.mubr.bf16.gmra.mxu0 %v1860
    %v2088 = vpop.f32.mrf.mxu0
    %v2089 = vadd.f32 0.0, %v2088
    %v2090 = vpop.f32.mrf.mxu0
    %v2091 = vpop.f32.mrf.mxu0
    %v2092 = vadd.f32 0.0, %v2091
    %v2093 = vpop.f32.mrf.mxu0
    %2094 = vmatprep.mubr.bf16.mxu0 0
    %2095 = vmatmul.mubr.bf16.gmra.mxu0 %v1861
    %v2096 = vpop.f32.mrf.mxu0
    %v2097 = vadd.f32 0.0, %v2096
    %v2098 = vpop.f32.mrf.mxu0
    %v2099 = vpop.f32.mrf.mxu0
    %v2100 = vadd.f32 0.0, %v2099
    %v2101 = vpop.f32.mrf.mxu0
    %2102 = vmatprep.mubr.bf16.mxu0 0
    %2103 = vmatmul.mubr.bf16.gmra.mxu0 %v1862
    %v2104 = vpop.f32.mrf.mxu0
    %v2105 = vadd.f32 0.0, %v2104
    %v2106 = vpop.f32.mrf.mxu0
    %v2107 = vpop.f32.mrf.mxu0
    %v2108 = vadd.f32 0.0, %v2107
    %v2109 = vpop.f32.mrf.mxu0
    %2110 = vmatprep.mubr.bf16.mxu0 0
    %2111 = vmatmul.mubr.bf16.gmra.mxu0 %v1863
    %v2112 = vpop.f32.mrf.mxu0
    %v2113 = vadd.f32 0.0, %v2112
    %v2114 = vpop.f32.mrf.mxu0
    %v2115 = vpop.f32.mrf.mxu0
    %v2116 = vadd.f32 0.0, %v2115
    %v2117 = vpop.f32.mrf.mxu0
    %2118 = vmatprep.mubr.bf16.mxu0 0
    %2119 = vmatmul.mubr.bf16.gmra.mxu0 %v1864
    %v2120 = vpop.f32.mrf.mxu0
    %v2121 = vadd.f32 0.0, %v2120
    %v2122 = vpop.f32.mrf.mxu0
    %v2123 = vpop.f32.mrf.mxu0
    %v2124 = vadd.f32 0.0, %v2123
    %v2125 = vpop.f32.mrf.mxu0
    %2126 = vmatprep.mubr.bf16.mxu0 0
    %2127 = vmatmul.mubr.bf16.gmra.mxu0 %v1865
    %v2128 = vpop.f32.mrf.mxu0
    %v2129 = vadd.f32 0.0, %v2128
    %v2130 = vpop.f32.mrf.mxu0
    %v2131 = vpop.f32.mrf.mxu0
    %v2132 = vadd.f32 0.0, %v2131
    %v2133 = vpop.f32.mrf.mxu0
    %2134 = vmatprep.mubr.bf16.mxu0 0
    %2135 = vmatmul.mubr.bf16.gmra.mxu0 %v1866
    %v2136 = vpop.f32.mrf.mxu0
    %v2137 = vadd.f32 0.0, %v2136
    %v2138 = vpop.f32.mrf.mxu0
    %v2139 = vpop.f32.mrf.mxu0
    %v2140 = vadd.f32 0.0, %v2139
    %v2141 = vpop.f32.mrf.mxu0
    %2142 = vmatprep.mubr.bf16.mxu0 0
    %2143 = vmatmul.mubr.bf16.gmra.mxu0 %v1867
    %v2144 = vpop.f32.mrf.mxu0
    %v2145 = vadd.f32 0.0, %v2144
    %v2146 = vpop.f32.mrf.mxu0
    %v2147 = vpop.f32.mrf.mxu0
    %v2148 = vadd.f32 0.0, %v2147
    %v2149 = vpop.f32.mrf.mxu0
    %2150 = vmatprep.mubr.bf16.mxu0 0
    %2151 = vmatmul.mubr.bf16.gmra.mxu0 %v1868
    %v2152 = vpop.f32.mrf.mxu0
    %v2153 = vadd.f32 0.0, %v2152
    %v2154 = vpop.f32.mrf.mxu0
    %v2155 = vpop.f32.mrf.mxu0
    %v2156 = vadd.f32 0.0, %v2155
    %v2157 = vpop.f32.mrf.mxu0
    %2158 = vmatprep.mubr.bf16.mxu0 0
    %2159 = vmatmul.mubr.bf16.gmra.mxu0 %v1869
    %v2160 = vpop.f32.mrf.mxu0
    %v2161 = vadd.f32 0.0, %v2160
    %v2162 = vpop.f32.mrf.mxu0
    %v2163 = vpop.f32.mrf.mxu0
    %v2164 = vadd.f32 0.0, %v2163
    %v2165 = vpop.f32.mrf.mxu0
    %2166 = vmatprep.mubr.bf16.mxu0 0
    %2167 = vmatmul.mubr.bf16.gmra.mxu0 %v1870
    %v2168 = vpop.f32.mrf.mxu0
    %v2169 = vadd.f32 0.0, %v2168
    %v2170 = vpop.f32.mrf.mxu0
    %v2171 = vpop.f32.mrf.mxu0
    %v2172 = vadd.f32 0.0, %v2171
    %v2173 = vpop.f32.mrf.mxu0
    %2174 = vmatprep.mubr.bf16.mxu0 0
    %2175 = vmatmul.mubr.bf16.gmra.mxu0 %v1871
    %v2176 = vpop.f32.mrf.mxu0
    %v2177 = vadd.f32 0.0, %v2176
    %v2178 = vpop.f32.mrf.mxu0
    %v2179 = vpop.f32.mrf.mxu0
    %v2180 = vadd.f32 0.0, %v2179
    %v2181 = vpop.f32.mrf.mxu0
    %2182 = vmatprep.mubr.bf16.mxu0 0
    %2183 = vmatmul.mubr.bf16.gmra.mxu0 %v1872
    %v2184 = vpop.f32.mrf.mxu0
    %v2185 = vadd.f32 0.0, %v2184
    %v2186 = vpop.f32.mrf.mxu0
    %v2187 = vpop.f32.mrf.mxu0
    %v2188 = vadd.f32 0.0, %v2187
    %v2189 = vpop.f32.mrf.mxu0
    %2190 = vmatprep.mubr.bf16.mxu0 0
    %2191 = vmatmul.mubr.bf16.gmra.mxu0 %v1873
    %v2192 = vpop.f32.mrf.mxu0
    %v2193 = vadd.f32 0.0, %v2192
    %v2194 = vpop.f32.mrf.mxu0
    %v2195 = vpop.f32.mrf.mxu0
    %v2196 = vadd.f32 0.0, %v2195
    %v2197 = vpop.f32.mrf.mxu0
    %2198 = vmatprep.mubr.bf16.mxu0 0
    %2199 = vmatmul.mubr.bf16.gmra.mxu0 %v1874
    %v2200 = vpop.f32.mrf.mxu0
    %v2201 = vadd.f32 0.0, %v2200
    %v2202 = vpop.f32.mrf.mxu0
    %v2203 = vpop.f32.mrf.mxu0
    %v2204 = vadd.f32 0.0, %v2203
    %v2205 = vpop.f32.mrf.mxu0
    %2206 = vmatprep.mubr.bf16.mxu0 0
    %2207 = vmatmul.mubr.bf16.gmra.mxu0 %v1875
    %v2208 = vpop.f32.mrf.mxu0
    %v2209 = vadd.f32 0.0, %v2208
    %v2210 = vpop.f32.mrf.mxu0
    %v2211 = vpop.f32.mrf.mxu0
    %v2212 = vadd.f32 0.0, %v2211
    %v2213 = vpop.f32.mrf.mxu0
    %2214 = vmatprep.mubr.bf16.mxu0 0
    %2215 = vmatmul.mubr.bf16.gmra.mxu0 %v1876
    %v2216 = vpop.f32.mrf.mxu0
    %v2217 = vadd.f32 0.0, %v2216
    %v2218 = vpop.f32.mrf.mxu0
    %v2219 = vpop.f32.mrf.mxu0
    %v2220 = vadd.f32 0.0, %v2219
    %v2221 = vpop.f32.mrf.mxu0
    %2222 = vmatprep.mubr.bf16.mxu0 0
    %2223 = vmatmul.mubr.bf16.gmra.mxu0 %v1877
    %v2224 = vpop.f32.mrf.mxu0
    %v2225 = vadd.f32 0.0, %v2224
    %v2226 = vpop.f32.mrf.mxu0
    %v2227 = vpop.f32.mrf.mxu0
    %v2228 = vadd.f32 0.0, %v2227
    %v2229 = vpop.f32.mrf.mxu0
    %2230 = vdwg.mxu0
    %v2231 = vmul.f32 %v1977, 0.088388346
    %v2232 = vmul.f32 %v1980, 0.088388346
    %v2233 = vmul.f32 %v1985, 0.088388346
    %v2234 = vmul.f32 %v1988, 0.088388346
    %v2235 = vmul.f32 %v1993, 0.088388346
    %v2236 = vmul.f32 %v1996, 0.088388346
    %v2237 = vmul.f32 %v2001, 0.088388346
    %v2238 = vmul.f32 %v2004, 0.088388346
    %v2239 = vmul.f32 %v2009, 0.088388346
    %v2240 = vmul.f32 %v2012, 0.088388346
    %v2241 = vmul.f32 %v2017, 0.088388346
    %v2242 = vmul.f32 %v2020, 0.088388346
    %v2243 = vmul.f32 %v2025, 0.088388346
    %v2244 = vmul.f32 %v2028, 0.088388346
    %v2245 = vmul.f32 %v2033, 0.088388346
    %v2246 = vmul.f32 %v2036, 0.088388346
    %v2247 = vmul.f32 %v2041, 0.088388346
    %v2248 = vmul.f32 %v2044, 0.088388346
    %v2249 = vmul.f32 %v2049, 0.088388346
    %v2250 = vmul.f32 %v2052, 0.088388346
    %v2251 = vmul.f32 %v2057, 0.088388346
    %v2252 = vmul.f32 %v2060, 0.088388346
    %v2253 = vmul.f32 %v2065, 0.088388346
    %v2254 = vmul.f32 %v2068, 0.088388346
    %v2255 = vmul.f32 %v2073, 0.088388346
    %v2256 = vmul.f32 %v2076, 0.088388346
    %v2257 = vmul.f32 %v2081, 0.088388346
    %v2258 = vmul.f32 %v2084, 0.088388346
    %v2259 = vmul.f32 %v2089, 0.088388346
    %v2260 = vmul.f32 %v2092, 0.088388346
    %v2261 = vmul.f32 %v2097, 0.088388346
    %v2262 = vmul.f32 %v2100, 0.088388346
    %v2263 = vmul.f32 %v2105, 0.088388346
    %v2264 = vmul.f32 %v2108, 0.088388346
    %v2265 = vmul.f32 %v2113, 0.088388346
    %v2266 = vmul.f32 %v2116, 0.088388346
    %v2267 = vmul.f32 %v2121, 0.088388346
    %v2268 = vmul.f32 %v2124, 0.088388346
    %v2269 = vmul.f32 %v2129, 0.088388346
    %v2270 = vmul.f32 %v2132, 0.088388346
    %v2271 = vmul.f32 %v2137, 0.088388346
    %v2272 = vmul.f32 %v2140, 0.088388346
    %v2273 = vmul.f32 %v2145, 0.088388346
    %v2274 = vmul.f32 %v2148, 0.088388346
    %v2275 = vmul.f32 %v2153, 0.088388346
    %v2276 = vmul.f32 %v2156, 0.088388346
    %v2277 = vmul.f32 %v2161, 0.088388346
    %v2278 = vmul.f32 %v2164, 0.088388346
    %v2279 = vmul.f32 %v2169, 0.088388346
    %v2280 = vmul.f32 %v2172, 0.088388346
    %v2281 = vmul.f32 %v2177, 0.088388346
    %v2282 = vmul.f32 %v2180, 0.088388346
    %v2283 = vmul.f32 %v2185, 0.088388346
    %v2284 = vmul.f32 %v2188, 0.088388346
    %v2285 = vmul.f32 %v2193, 0.088388346
    %v2286 = vmul.f32 %v2196, 0.088388346
    %v2287 = vmul.f32 %v2201, 0.088388346
    %v2288 = vmul.f32 %v2204, 0.088388346
    %v2289 = vmul.f32 %v2209, 0.088388346
    %v2290 = vmul.f32 %v2212, 0.088388346
    %v2291 = vmul.f32 %v2217, 0.088388346
    %v2292 = vmul.f32 %v2220, 0.088388346
    %v2293 = vmul.f32 %v2225, 0.088388346
    %v2294 = vmul.f32 %v2228, 0.088388346
    %v2295 = vld [vmem:[#allocation7] sm:$0xf]
    %v2296 = vld [vmem:[#allocation7 + $0x4] sm:$0xf]
    %v2297 = vld [vmem:[#allocation7 + $0x8] sm:$0xf]
    %v2298 = vld [vmem:[#allocation7 + $0xc] sm:$0xf]
    %v2299 = vld [vmem:[#allocation7 + $0x10] sm:$0xf]
    %v2300 = vld [vmem:[#allocation7 + $0x14] sm:$0xf]
    %v2301 = vld [vmem:[#allocation7 + $0x18] sm:$0xf]
    %v2302 = vld [vmem:[#allocation7 + $0x1c] sm:$0xf]
    %v2303 = vld [vmem:[#allocation7 + $0x20] sm:$0xf]
    %v2304 = vld [vmem:[#allocation7 + $0x24] sm:$0xf]
    %v2305 = vld [vmem:[#allocation7 + $0x28] sm:$0xf]
    %v2306 = vld [vmem:[#allocation7 + $0x2c] sm:$0xf]
    %v2307 = vld [vmem:[#allocation7 + $0x30] sm:$0xf]
    %v2308 = vld [vmem:[#allocation7 + $0x34] sm:$0xf]
    %v2309 = vld [vmem:[#allocation7 + $0x38] sm:$0xf]
    %v2310 = vld [vmem:[#allocation7 + $0x3c] sm:$0xf]
    %v2327 = vunpack.c.l.b16 %v2295
    %v2328 = vunpack.c.l.b16 %v2296
    %v2329 = vunpack.c.l.b16 %v2297
    %v2330 = vunpack.c.l.b16 %v2298
    %v2331 = vunpack.c.l.b16 %v2299
    %v2332 = vunpack.c.l.b16 %v2300
    %v2333 = vunpack.c.l.b16 %v2301
    %v2334 = vunpack.c.l.b16 %v2302
    %v2335 = vunpack.c.l.b16 %v2303
    %v2336 = vunpack.c.l.b16 %v2304
    %v2337 = vunpack.c.l.b16 %v2305
    %v2338 = vunpack.c.l.b16 %v2306
    %v2339 = vunpack.c.l.b16 %v2307
    %v2340 = vunpack.c.l.b16 %v2308
    %v2341 = vunpack.c.l.b16 %v2309
    %v2342 = vunpack.c.l.b16 %v2310
    %v2343 = vpack.c.b16 %v2328, %v2327
    %v2344 = vpack.c.b16 %v2330, %v2329
    %v2345 = vpack.c.b16 %v2332, %v2331
    %v2346 = vpack.c.b16 %v2334, %v2333
    %v2347 = vpack.c.b16 %v2336, %v2335
    %v2348 = vpack.c.b16 %v2338, %v2337
    %v2349 = vpack.c.b16 %v2340, %v2339
    %v2350 = vpack.c.b16 %v2342, %v2341
    %2359 = vmatprep.subr.bf16.mxu0 0
    %2360 = vmatpush1.bf16.msra.mxu0 %v2350
    %2361 = vmatprep.subr.bf16.mxu0 0
    %2362 = vmatpush1.bf16.msra.mxu0 %v2349
    %2363 = vmatprep.subr.bf16.mxu0 0
    %2364 = vmatpush1.bf16.msra.mxu0 %v2348
    %2365 = vmatprep.subr.bf16.mxu0 0
    %2366 = vmatpush1.bf16.msra.mxu0 %v2347
    %2367 = vmatprep.subr.bf16.mxu0 0
    %2368 = vmatpush1.bf16.msra.mxu0 %v2346
    %2369 = vmatprep.subr.bf16.mxu0 0
    %2370 = vmatpush1.bf16.msra.mxu0 %v2345
    %2371 = vmatprep.subr.bf16.mxu0 0
    %2372 = vmatpush1.bf16.msra.mxu0 %v2344
    %2373 = vmatprep.subr.bf16.mxu0 0
    %2374 = vmatpush1.bf16.msra.mxu0 %v2343
    %2375 = vmatprep.subr.bf16.mxu0 0
    %2376 = vmatpush2.bf16.msra.mxu0 0
    %2377 = vmatprep.subr.bf16.mxu0 0
    %2378 = vmatpush2.bf16.msra.mxu0 0
    %2379 = vmatprep.subr.bf16.mxu0 0
    %2380 = vmatpush2.bf16.msra.mxu0 0
    %2381 = vmatprep.subr.bf16.mxu0 0
    %2382 = vmatpush2.bf16.msra.mxu0 0
    %2383 = vmatprep.subr.bf16.mxu0 0
    %2384 = vmatpush2.bf16.msra.mxu0 0
    %2385 = vmatprep.subr.bf16.mxu0 0
    %2386 = vmatpush2.bf16.msra.mxu0 0
    %2387 = vmatprep.subr.bf16.mxu0 0
    %2388 = vmatpush2.bf16.msra.mxu0 0
    %2389 = vmatprep.subr.bf16.mxu0 0
    %2390 = vmatpush2.bf16.msra.mxu0 0
    %2391 = vmatprep.mubr.bf16.mxu0 0
    %2392 = vmatmul.mubr.bf16.gmra.mxu0 %v1846
    %v2393 = vpop.f32.mrf.mxu0
    %v2394 = vadd.f32 0.0, %v2393
    %v2395 = vpop.f32.mrf.mxu0
    %v2396 = vpop.f32.mrf.mxu0
    %v2397 = vadd.f32 0.0, %v2396
    %v2398 = vpop.f32.mrf.mxu0
    %2399 = vmatprep.mubr.bf16.mxu0 0
    %2400 = vmatmul.mubr.bf16.gmra.mxu0 %v1847
    %v2401 = vpop.f32.mrf.mxu0
    %v2402 = vadd.f32 0.0, %v2401
    %v2403 = vpop.f32.mrf.mxu0
    %v2404 = vpop.f32.mrf.mxu0
    %v2405 = vadd.f32 0.0, %v2404
    %v2406 = vpop.f32.mrf.mxu0
    %2407 = vmatprep.mubr.bf16.mxu0 0
    %2408 = vmatmul.mubr.bf16.gmra.mxu0 %v1848
    %v2409 = vpop.f32.mrf.mxu0
    %v2410 = vadd.f32 0.0, %v2409
    %v2411 = vpop.f32.mrf.mxu0
    %v2412 = vpop.f32.mrf.mxu0
    %v2413 = vadd.f32 0.0, %v2412
    %v2414 = vpop.f32.mrf.mxu0
    %2415 = vmatprep.mubr.bf16.mxu0 0
    %2416 = vmatmul.mubr.bf16.gmra.mxu0 %v1849
    %v2417 = vpop.f32.mrf.mxu0
    %v2418 = vadd.f32 0.0, %v2417
    %v2419 = vpop.f32.mrf.mxu0
    %v2420 = vpop.f32.mrf.mxu0
    %v2421 = vadd.f32 0.0, %v2420
    %v2422 = vpop.f32.mrf.mxu0
    %2423 = vmatprep.mubr.bf16.mxu0 0
    %2424 = vmatmul.mubr.bf16.gmra.mxu0 %v1850
    %v2425 = vpop.f32.mrf.mxu0
    %v2426 = vadd.f32 0.0, %v2425
    %v2427 = vpop.f32.mrf.mxu0
    %v2428 = vpop.f32.mrf.mxu0
    %v2429 = vadd.f32 0.0, %v2428
    %v2430 = vpop.f32.mrf.mxu0
    %2431 = vmatprep.mubr.bf16.mxu0 0
    %2432 = vmatmul.mubr.bf16.gmra.mxu0 %v1851
    %v2433 = vpop.f32.mrf.mxu0
    %v2434 = vadd.f32 0.0, %v2433
    %v2435 = vpop.f32.mrf.mxu0
    %v2436 = vpop.f32.mrf.mxu0
    %v2437 = vadd.f32 0.0, %v2436
    %v2438 = vpop.f32.mrf.mxu0
    %2439 = vmatprep.mubr.bf16.mxu0 0
    %2440 = vmatmul.mubr.bf16.gmra.mxu0 %v1852
    %v2441 = vpop.f32.mrf.mxu0
    %v2442 = vadd.f32 0.0, %v2441
    %v2443 = vpop.f32.mrf.mxu0
    %v2444 = vpop.f32.mrf.mxu0
    %v2445 = vadd.f32 0.0, %v2444
    %v2446 = vpop.f32.mrf.mxu0
    %2447 = vmatprep.mubr.bf16.mxu0 0
    %2448 = vmatmul.mubr.bf16.gmra.mxu0 %v1853
    %v2449 = vpop.f32.mrf.mxu0
    %v2450 = vadd.f32 0.0, %v2449
    %v2451 = vpop.f32.mrf.mxu0
    %v2452 = vpop.f32.mrf.mxu0
    %v2453 = vadd.f32 0.0, %v2452
    %v2454 = vpop.f32.mrf.mxu0
    %2455 = vmatprep.mubr.bf16.mxu0 0
    %2456 = vmatmul.mubr.bf16.gmra.mxu0 %v1854
    %v2457 = vpop.f32.mrf.mxu0
    %v2458 = vadd.f32 0.0, %v2457
    %v2459 = vpop.f32.mrf.mxu0
    %v2460 = vpop.f32.mrf.mxu0
    %v2461 = vadd.f32 0.0, %v2460
    %v2462 = vpop.f32.mrf.mxu0
    %2463 = vmatprep.mubr.bf16.mxu0 0
    %2464 = vmatmul.mubr.bf16.gmra.mxu0 %v1855
    %v2465 = vpop.f32.mrf.mxu0
    %v2466 = vadd.f32 0.0, %v2465
    %v2467 = vpop.f32.mrf.mxu0
    %v2468 = vpop.f32.mrf.mxu0
    %v2469 = vadd.f32 0.0, %v2468
    %v2470 = vpop.f32.mrf.mxu0
    %2471 = vmatprep.mubr.bf16.mxu0 0
    %2472 = vmatmul.mubr.bf16.gmra.mxu0 %v1856
    %v2473 = vpop.f32.mrf.mxu0
    %v2474 = vadd.f32 0.0, %v2473
    %v2475 = vpop.f32.mrf.mxu0
    %v2476 = vpop.f32.mrf.mxu0
    %v2477 = vadd.f32 0.0, %v2476
    %v2478 = vpop.f32.mrf.mxu0
    %2479 = vmatprep.mubr.bf16.mxu0 0
    %2480 = vmatmul.mubr.bf16.gmra.mxu0 %v1857
    %v2481 = vpop.f32.mrf.mxu0
    %v2482 = vadd.f32 0.0, %v2481
    %v2483 = vpop.f32.mrf.mxu0
    %v2484 = vpop.f32.mrf.mxu0
    %v2485 = vadd.f32 0.0, %v2484
    %v2486 = vpop.f32.mrf.mxu0
    %2487 = vmatprep.mubr.bf16.mxu0 0
    %2488 = vmatmul.mubr.bf16.gmra.mxu0 %v1858
    %v2489 = vpop.f32.mrf.mxu0
    %v2490 = vadd.f32 0.0, %v2489
    %v2491 = vpop.f32.mrf.mxu0
    %v2492 = vpop.f32.mrf.mxu0
    %v2493 = vadd.f32 0.0, %v2492
    %v2494 = vpop.f32.mrf.mxu0
    %2495 = vmatprep.mubr.bf16.mxu0 0
    %2496 = vmatmul.mubr.bf16.gmra.mxu0 %v1859
    %v2497 = vpop.f32.mrf.mxu0
    %v2498 = vadd.f32 0.0, %v2497
    %v2499 = vpop.f32.mrf.mxu0
    %v2500 = vpop.f32.mrf.mxu0
    %v2501 = vadd.f32 0.0, %v2500
    %v2502 = vpop.f32.mrf.mxu0
    %2503 = vmatprep.mubr.bf16.mxu0 0
    %2504 = vmatmul.mubr.bf16.gmra.mxu0 %v1860
    %v2505 = vpop.f32.mrf.mxu0
    %v2506 = vadd.f32 0.0, %v2505
    %v2507 = vpop.f32.mrf.mxu0
    %v2508 = vpop.f32.mrf.mxu0
    %v2509 = vadd.f32 0.0, %v2508
    %v2510 = vpop.f32.mrf.mxu0
    %2511 = vmatprep.mubr.bf16.mxu0 0
    %2512 = vmatmul.mubr.bf16.gmra.mxu0 %v1861
    %v2513 = vpop.f32.mrf.mxu0
    %v2514 = vadd.f32 0.0, %v2513
    %v2515 = vpop.f32.mrf.mxu0
    %v2516 = vpop.f32.mrf.mxu0
    %v2517 = vadd.f32 0.0, %v2516
    %v2518 = vpop.f32.mrf.mxu0
    %2519 = vmatprep.mubr.bf16.mxu0 0
    %2520 = vmatmul.mubr.bf16.gmra.mxu0 %v1862
    %v2521 = vpop.f32.mrf.mxu0
    %v2522 = vadd.f32 0.0, %v2521
    %v2523 = vpop.f32.mrf.mxu0
    %v2524 = vpop.f32.mrf.mxu0
    %v2525 = vadd.f32 0.0, %v2524
    %v2526 = vpop.f32.mrf.mxu0
    %2527 = vmatprep.mubr.bf16.mxu0 0
    %2528 = vmatmul.mubr.bf16.gmra.mxu0 %v1863
    %v2529 = vpop.f32.mrf.mxu0
    %v2530 = vadd.f32 0.0, %v2529
    %v2531 = vpop.f32.mrf.mxu0
    %v2532 = vpop.f32.mrf.mxu0
    %v2533 = vadd.f32 0.0, %v2532
    %v2534 = vpop.f32.mrf.mxu0
    %2535 = vmatprep.mubr.bf16.mxu0 0
    %2536 = vmatmul.mubr.bf16.gmra.mxu0 %v1864
    %v2537 = vpop.f32.mrf.mxu0
    %v2538 = vadd.f32 0.0, %v2537
    %v2539 = vpop.f32.mrf.mxu0
    %v2540 = vpop.f32.mrf.mxu0
    %v2541 = vadd.f32 0.0, %v2540
    %v2542 = vpop.f32.mrf.mxu0
    %2543 = vmatprep.mubr.bf16.mxu0 0
    %2544 = vmatmul.mubr.bf16.gmra.mxu0 %v1865
    %v2545 = vpop.f32.mrf.mxu0
    %v2546 = vadd.f32 0.0, %v2545
    %v2547 = vpop.f32.mrf.mxu0
    %v2548 = vpop.f32.mrf.mxu0
    %v2549 = vadd.f32 0.0, %v2548
    %v2550 = vpop.f32.mrf.mxu0
    %2551 = vmatprep.mubr.bf16.mxu0 0
    %2552 = vmatmul.mubr.bf16.gmra.mxu0 %v1866
    %v2553 = vpop.f32.mrf.mxu0
    %v2554 = vadd.f32 0.0, %v2553
    %v2555 = vpop.f32.mrf.mxu0
    %v2556 = vpop.f32.mrf.mxu0
    %v2557 = vadd.f32 0.0, %v2556
    %v2558 = vpop.f32.mrf.mxu0
    %2559 = vmatprep.mubr.bf16.mxu0 0
    %2560 = vmatmul.mubr.bf16.gmra.mxu0 %v1867
    %v2561 = vpop.f32.mrf.mxu0
    %v2562 = vadd.f32 0.0, %v2561
    %v2563 = vpop.f32.mrf.mxu0
    %v2564 = vpop.f32.mrf.mxu0
    %v2565 = vadd.f32 0.0, %v2564
    %v2566 = vpop.f32.mrf.mxu0
    %2567 = vmatprep.mubr.bf16.mxu0 0
    %2568 = vmatmul.mubr.bf16.gmra.mxu0 %v1868
    %v2569 = vpop.f32.mrf.mxu0
    %v2570 = vadd.f32 0.0, %v2569
    %v2571 = vpop.f32.mrf.mxu0
    %v2572 = vpop.f32.mrf.mxu0
    %v2573 = vadd.f32 0.0, %v2572
    %v2574 = vpop.f32.mrf.mxu0
    %2575 = vmatprep.mubr.bf16.mxu0 0
    %2576 = vmatmul.mubr.bf16.gmra.mxu0 %v1869
    %v2577 = vpop.f32.mrf.mxu0
    %v2578 = vadd.f32 0.0, %v2577
    %v2579 = vpop.f32.mrf.mxu0
    %v2580 = vpop.f32.mrf.mxu0
    %v2581 = vadd.f32 0.0, %v2580
    %v2582 = vpop.f32.mrf.mxu0
    %2583 = vmatprep.mubr.bf16.mxu0 0
    %2584 = vmatmul.mubr.bf16.gmra.mxu0 %v1870
    %v2585 = vpop.f32.mrf.mxu0
    %v2586 = vadd.f32 0.0, %v2585
    %v2587 = vpop.f32.mrf.mxu0
    %v2588 = vpop.f32.mrf.mxu0
    %v2589 = vadd.f32 0.0, %v2588
    %v2590 = vpop.f32.mrf.mxu0
    %2591 = vmatprep.mubr.bf16.mxu0 0
    %2592 = vmatmul.mubr.bf16.gmra.mxu0 %v1871
    %v2593 = vpop.f32.mrf.mxu0
    %v2594 = vadd.f32 0.0, %v2593
    %v2595 = vpop.f32.mrf.mxu0
    %v2596 = vpop.f32.mrf.mxu0
    %v2597 = vadd.f32 0.0, %v2596
    %v2598 = vpop.f32.mrf.mxu0
    %2599 = vmatprep.mubr.bf16.mxu0 0
    %2600 = vmatmul.mubr.bf16.gmra.mxu0 %v1872
    %v2601 = vpop.f32.mrf.mxu0
    %v2602 = vadd.f32 0.0, %v2601
    %v2603 = vpop.f32.mrf.mxu0
    %v2604 = vpop.f32.mrf.mxu0
    %v2605 = vadd.f32 0.0, %v2604
    %v2606 = vpop.f32.mrf.mxu0
    %2607 = vmatprep.mubr.bf16.mxu0 0
    %2608 = vmatmul.mubr.bf16.gmra.mxu0 %v1873
    %v2609 = vpop.f32.mrf.mxu0
    %v2610 = vadd.f32 0.0, %v2609
    %v2611 = vpop.f32.mrf.mxu0
    %v2612 = vpop.f32.mrf.mxu0
    %v2613 = vadd.f32 0.0, %v2612
    %v2614 = vpop.f32.mrf.mxu0
    %2615 = vmatprep.mubr.bf16.mxu0 0
    %2616 = vmatmul.mubr.bf16.gmra.mxu0 %v1874
    %v2617 = vpop.f32.mrf.mxu0
    %v2618 = vadd.f32 0.0, %v2617
    %v2619 = vpop.f32.mrf.mxu0
    %v2620 = vpop.f32.mrf.mxu0
    %v2621 = vadd.f32 0.0, %v2620
    %v2622 = vpop.f32.mrf.mxu0
    %2623 = vmatprep.mubr.bf16.mxu0 0
    %2624 = vmatmul.mubr.bf16.gmra.mxu0 %v1875
    %v2625 = vpop.f32.mrf.mxu0
    %v2626 = vadd.f32 0.0, %v2625
    %v2627 = vpop.f32.mrf.mxu0
    %v2628 = vpop.f32.mrf.mxu0
    %v2629 = vadd.f32 0.0, %v2628
    %v2630 = vpop.f32.mrf.mxu0
    %2631 = vmatprep.mubr.bf16.mxu0 0
    %2632 = vmatmul.mubr.bf16.gmra.mxu0 %v1876
    %v2633 = vpop.f32.mrf.mxu0
    %v2634 = vadd.f32 0.0, %v2633
    %v2635 = vpop.f32.mrf.mxu0
    %v2636 = vpop.f32.mrf.mxu0
    %v2637 = vadd.f32 0.0, %v2636
    %v2638 = vpop.f32.mrf.mxu0
    %2639 = vmatprep.mubr.bf16.mxu0 0
    %2640 = vmatmul.mubr.bf16.gmra.mxu0 %v1877
    %v2641 = vpop.f32.mrf.mxu0
    %v2642 = vadd.f32 0.0, %v2641
    %v2643 = vpop.f32.mrf.mxu0
    %v2644 = vpop.f32.mrf.mxu0
    %v2645 = vadd.f32 0.0, %v2644
    %v2646 = vpop.f32.mrf.mxu0
    %2647 = vdwg.mxu0
    %v2648 = vld [vmem:[#allocation8] sm:$0xf]
    %v2649 = vld [vmem:[#allocation8 + $0x4] sm:$0xf]
    %v2650 = vld [vmem:[#allocation8 + $0x8] sm:$0xf]
    %v2651 = vld [vmem:[#allocation8 + $0xc] sm:$0xf]
    %v2652 = vld [vmem:[#allocation8 + $0x10] sm:$0xf]
    %v2653 = vld [vmem:[#allocation8 + $0x14] sm:$0xf]
    %v2654 = vld [vmem:[#allocation8 + $0x18] sm:$0xf]
    %v2655 = vld [vmem:[#allocation8 + $0x1c] sm:$0xf]
    %v2656 = vld [vmem:[#allocation8 + $0x20] sm:$0xf]
    %v2657 = vld [vmem:[#allocation8 + $0x24] sm:$0xf]
    %v2658 = vld [vmem:[#allocation8 + $0x28] sm:$0xf]
    %v2659 = vld [vmem:[#allocation8 + $0x2c] sm:$0xf]
    %v2660 = vld [vmem:[#allocation8 + $0x30] sm:$0xf]
    %v2661 = vld [vmem:[#allocation8 + $0x34] sm:$0xf]
    %v2662 = vld [vmem:[#allocation8 + $0x38] sm:$0xf]
    %v2663 = vld [vmem:[#allocation8 + $0x3c] sm:$0xf]
    %v2680 = vunpack.c.l.b16 %v2648
    %v2681 = vunpack.c.l.b16 %v2649
    %v2682 = vunpack.c.l.b16 %v2650
    %v2683 = vunpack.c.l.b16 %v2651
    %v2684 = vunpack.c.l.b16 %v2652
    %v2685 = vunpack.c.l.b16 %v2653
    %v2686 = vunpack.c.l.b16 %v2654
    %v2687 = vunpack.c.l.b16 %v2655
    %v2688 = vunpack.c.l.b16 %v2656
    %v2689 = vunpack.c.l.b16 %v2657
    %v2690 = vunpack.c.l.b16 %v2658
    %v2691 = vunpack.c.l.b16 %v2659
    %v2692 = vunpack.c.l.b16 %v2660
    %v2693 = vunpack.c.l.b16 %v2661
    %v2694 = vunpack.c.l.b16 %v2662
    %v2695 = vunpack.c.l.b16 %v2663
    %v2696 = vpack.c.b16 %v2681, %v2680
    %v2697 = vpack.c.b16 %v2683, %v2682
    %v2698 = vpack.c.b16 %v2685, %v2684
    %v2699 = vpack.c.b16 %v2687, %v2686
    %v2700 = vpack.c.b16 %v2689, %v2688
    %v2701 = vpack.c.b16 %v2691, %v2690
    %v2702 = vpack.c.b16 %v2693, %v2692
    %v2703 = vpack.c.b16 %v2695, %v2694
    %2712 = vmatprep.subr.bf16.mxu0 0
    %2713 = vmatpush1.bf16.msra.mxu0 %v2703
    %2714 = vmatprep.subr.bf16.mxu0 0
    %2715 = vmatpush1.bf16.msra.mxu0 %v2702
    %2716 = vmatprep.subr.bf16.mxu0 0
    %2717 = vmatpush1.bf16.msra.mxu0 %v2701
    %2718 = vmatprep.subr.bf16.mxu0 0
    %2719 = vmatpush1.bf16.msra.mxu0 %v2700
    %2720 = vmatprep.subr.bf16.mxu0 0
    %2721 = vmatpush1.bf16.msra.mxu0 %v2699
    %2722 = vmatprep.subr.bf16.mxu0 0
    %2723 = vmatpush1.bf16.msra.mxu0 %v2698
    %2724 = vmatprep.subr.bf16.mxu0 0
    %2725 = vmatpush1.bf16.msra.mxu0 %v2697
    %2726 = vmatprep.subr.bf16.mxu0 0
    %2727 = vmatpush1.bf16.msra.mxu0 %v2696
    %2728 = vmatprep.subr.bf16.mxu0 0
    %2729 = vmatpush2.bf16.msra.mxu0 0
    %2730 = vmatprep.subr.bf16.mxu0 0
    %2731 = vmatpush2.bf16.msra.mxu0 0
    %2732 = vmatprep.subr.bf16.mxu0 0
    %2733 = vmatpush2.bf16.msra.mxu0 0
    %2734 = vmatprep.subr.bf16.mxu0 0
    %2735 = vmatpush2.bf16.msra.mxu0 0
    %2736 = vmatprep.subr.bf16.mxu0 0
    %2737 = vmatpush2.bf16.msra.mxu0 0
    %2738 = vmatprep.subr.bf16.mxu0 0
    %2739 = vmatpush2.bf16.msra.mxu0 0
    %2740 = vmatprep.subr.bf16.mxu0 0
    %2741 = vmatpush2.bf16.msra.mxu0 0
    %2742 = vmatprep.subr.bf16.mxu0 0
    %2743 = vmatpush2.bf16.msra.mxu0 0
    %2744 = vmatprep.mubr.bf16.mxu0 0
    %2745 = vmatmul.mubr.bf16.gmra.mxu0 %v1846
    %v2746 = vpop.f32.mrf.mxu0
    %v2747 = vadd.f32 0.0, %v2746
    %v2748 = vpop.f32.mrf.mxu0
    %v2749 = vpop.f32.mrf.mxu0
    %v2750 = vadd.f32 0.0, %v2749
    %v2751 = vpop.f32.mrf.mxu0
    %2752 = vmatprep.mubr.bf16.mxu0 0
    %2753 = vmatmul.mubr.bf16.gmra.mxu0 %v1847
    %v2754 = vpop.f32.mrf.mxu0
    %v2755 = vadd.f32 0.0, %v2754
    %v2756 = vpop.f32.mrf.mxu0
    %v2757 = vpop.f32.mrf.mxu0
    %v2758 = vadd.f32 0.0, %v2757
    %v2759 = vpop.f32.mrf.mxu0
    %2760 = vmatprep.mubr.bf16.mxu0 0
    %2761 = vmatmul.mubr.bf16.gmra.mxu0 %v1848
    %v2762 = vpop.f32.mrf.mxu0
    %v2763 = vadd.f32 0.0, %v2762
    %v2764 = vpop.f32.mrf.mxu0
    %v2765 = vpop.f32.mrf.mxu0
    %v2766 = vadd.f32 0.0, %v2765
    %v2767 = vpop.f32.mrf.mxu0
    %2768 = vmatprep.mubr.bf16.mxu0 0
    %2769 = vmatmul.mubr.bf16.gmra.mxu0 %v1849
    %v2770 = vpop.f32.mrf.mxu0
    %v2771 = vadd.f32 0.0, %v2770
    %v2772 = vpop.f32.mrf.mxu0
    %v2773 = vpop.f32.mrf.mxu0
    %v2774 = vadd.f32 0.0, %v2773
    %v2775 = vpop.f32.mrf.mxu0
    %2776 = vmatprep.mubr.bf16.mxu0 0
    %2777 = vmatmul.mubr.bf16.gmra.mxu0 %v1850
    %v2778 = vpop.f32.mrf.mxu0
    %v2779 = vadd.f32 0.0, %v2778
    %v2780 = vpop.f32.mrf.mxu0
    %v2781 = vpop.f32.mrf.mxu0
    %v2782 = vadd.f32 0.0, %v2781
    %v2783 = vpop.f32.mrf.mxu0
    %2784 = vmatprep.mubr.bf16.mxu0 0
    %2785 = vmatmul.mubr.bf16.gmra.mxu0 %v1851
    %v2786 = vpop.f32.mrf.mxu0
    %v2787 = vadd.f32 0.0, %v2786
    %v2788 = vpop.f32.mrf.mxu0
    %v2789 = vpop.f32.mrf.mxu0
    %v2790 = vadd.f32 0.0, %v2789
    %v2791 = vpop.f32.mrf.mxu0
    %2792 = vmatprep.mubr.bf16.mxu0 0
    %2793 = vmatmul.mubr.bf16.gmra.mxu0 %v1852
    %v2794 = vpop.f32.mrf.mxu0
    %v2795 = vadd.f32 0.0, %v2794
    %v2796 = vpop.f32.mrf.mxu0
    %v2797 = vpop.f32.mrf.mxu0
    %v2798 = vadd.f32 0.0, %v2797
    %v2799 = vpop.f32.mrf.mxu0
    %2800 = vmatprep.mubr.bf16.mxu0 0
    %2801 = vmatmul.mubr.bf16.gmra.mxu0 %v1853
    %v2802 = vpop.f32.mrf.mxu0
    %v2803 = vadd.f32 0.0, %v2802
    %v2804 = vpop.f32.mrf.mxu0
    %v2805 = vpop.f32.mrf.mxu0
    %v2806 = vadd.f32 0.0, %v2805
    %v2807 = vpop.f32.mrf.mxu0
    %2808 = vmatprep.mubr.bf16.mxu0 0
    %2809 = vmatmul.mubr.bf16.gmra.mxu0 %v1854
    %v2810 = vpop.f32.mrf.mxu0
    %v2811 = vadd.f32 0.0, %v2810
    %v2812 = vpop.f32.mrf.mxu0
    %v2813 = vpop.f32.mrf.mxu0
    %v2814 = vadd.f32 0.0, %v2813
    %v2815 = vpop.f32.mrf.mxu0
    %2816 = vmatprep.mubr.bf16.mxu0 0
    %2817 = vmatmul.mubr.bf16.gmra.mxu0 %v1855
    %v2818 = vpop.f32.mrf.mxu0
    %v2819 = vadd.f32 0.0, %v2818
    %v2820 = vpop.f32.mrf.mxu0
    %v2821 = vpop.f32.mrf.mxu0
    %v2822 = vadd.f32 0.0, %v2821
    %v2823 = vpop.f32.mrf.mxu0
    %2824 = vmatprep.mubr.bf16.mxu0 0
    %2825 = vmatmul.mubr.bf16.gmra.mxu0 %v1856
    %v2826 = vpop.f32.mrf.mxu0
    %v2827 = vadd.f32 0.0, %v2826
    %v2828 = vpop.f32.mrf.mxu0
    %v2829 = vpop.f32.mrf.mxu0
    %v2830 = vadd.f32 0.0, %v2829
    %v2831 = vpop.f32.mrf.mxu0
    %2832 = vmatprep.mubr.bf16.mxu0 0
    %2833 = vmatmul.mubr.bf16.gmra.mxu0 %v1857
    %v2834 = vpop.f32.mrf.mxu0
    %v2835 = vadd.f32 0.0, %v2834
    %v2836 = vpop.f32.mrf.mxu0
    %v2837 = vpop.f32.mrf.mxu0
    %v2838 = vadd.f32 0.0, %v2837
    %v2839 = vpop.f32.mrf.mxu0
    %2840 = vmatprep.mubr.bf16.mxu0 0
    %2841 = vmatmul.mubr.bf16.gmra.mxu0 %v1858
    %v2842 = vpop.f32.mrf.mxu0
    %v2843 = vadd.f32 0.0, %v2842
    %v2844 = vpop.f32.mrf.mxu0
    %v2845 = vpop.f32.mrf.mxu0
    %v2846 = vadd.f32 0.0, %v2845
    %v2847 = vpop.f32.mrf.mxu0
    %2848 = vmatprep.mubr.bf16.mxu0 0
    %2849 = vmatmul.mubr.bf16.gmra.mxu0 %v1859
    %v2850 = vpop.f32.mrf.mxu0
    %v2851 = vadd.f32 0.0, %v2850
    %v2852 = vpop.f32.mrf.mxu0
    %v2853 = vpop.f32.mrf.mxu0
    %v2854 = vadd.f32 0.0, %v2853
    %v2855 = vpop.f32.mrf.mxu0
    %2856 = vmatprep.mubr.bf16.mxu0 0
    %2857 = vmatmul.mubr.bf16.gmra.mxu0 %v1860
    %v2858 = vpop.f32.mrf.mxu0
    %v2859 = vadd.f32 0.0, %v2858
    %v2860 = vpop.f32.mrf.mxu0
    %v2861 = vpop.f32.mrf.mxu0
    %v2862 = vadd.f32 0.0, %v2861
    %v2863 = vpop.f32.mrf.mxu0
    %2864 = vmatprep.mubr.bf16.mxu0 0
    %2865 = vmatmul.mubr.bf16.gmra.mxu0 %v1861
    %v2866 = vpop.f32.mrf.mxu0
    %v2867 = vadd.f32 0.0, %v2866
    %v2868 = vpop.f32.mrf.mxu0
    %v2869 = vpop.f32.mrf.mxu0
    %v2870 = vadd.f32 0.0, %v2869
    %v2871 = vpop.f32.mrf.mxu0
    %2872 = vmatprep.mubr.bf16.mxu0 0
    %2873 = vmatmul.mubr.bf16.gmra.mxu0 %v1862
    %v2874 = vpop.f32.mrf.mxu0
    %v2875 = vadd.f32 0.0, %v2874
    %v2876 = vpop.f32.mrf.mxu0
    %v2877 = vpop.f32.mrf.mxu0
    %v2878 = vadd.f32 0.0, %v2877
    %v2879 = vpop.f32.mrf.mxu0
    %2880 = vmatprep.mubr.bf16.mxu0 0
    %2881 = vmatmul.mubr.bf16.gmra.mxu0 %v1863
    %v2882 = vpop.f32.mrf.mxu0
    %v2883 = vadd.f32 0.0, %v2882
    %v2884 = vpop.f32.mrf.mxu0
    %v2885 = vpop.f32.mrf.mxu0
    %v2886 = vadd.f32 0.0, %v2885
    %v2887 = vpop.f32.mrf.mxu0
    %2888 = vmatprep.mubr.bf16.mxu0 0
    %2889 = vmatmul.mubr.bf16.gmra.mxu0 %v1864
    %v2890 = vpop.f32.mrf.mxu0
    %v2891 = vadd.f32 0.0, %v2890
    %v2892 = vpop.f32.mrf.mxu0
    %v2893 = vpop.f32.mrf.mxu0
    %v2894 = vadd.f32 0.0, %v2893
    %v2895 = vpop.f32.mrf.mxu0
    %2896 = vmatprep.mubr.bf16.mxu0 0
    %2897 = vmatmul.mubr.bf16.gmra.mxu0 %v1865
    %v2898 = vpop.f32.mrf.mxu0
    %v2899 = vadd.f32 0.0, %v2898
    %v2900 = vpop.f32.mrf.mxu0
    %v2901 = vpop.f32.mrf.mxu0
    %v2902 = vadd.f32 0.0, %v2901
    %v2903 = vpop.f32.mrf.mxu0
    %2904 = vmatprep.mubr.bf16.mxu0 0
    %2905 = vmatmul.mubr.bf16.gmra.mxu0 %v1866
    %v2906 = vpop.f32.mrf.mxu0
    %v2907 = vadd.f32 0.0, %v2906
    %v2908 = vpop.f32.mrf.mxu0
    %v2909 = vpop.f32.mrf.mxu0
    %v2910 = vadd.f32 0.0, %v2909
    %v2911 = vpop.f32.mrf.mxu0
    %2912 = vmatprep.mubr.bf16.mxu0 0
    %2913 = vmatmul.mubr.bf16.gmra.mxu0 %v1867
    %v2914 = vpop.f32.mrf.mxu0
    %v2915 = vadd.f32 0.0, %v2914
    %v2916 = vpop.f32.mrf.mxu0
    %v2917 = vpop.f32.mrf.mxu0
    %v2918 = vadd.f32 0.0, %v2917
    %v2919 = vpop.f32.mrf.mxu0
    %2920 = vmatprep.mubr.bf16.mxu0 0
    %2921 = vmatmul.mubr.bf16.gmra.mxu0 %v1868
    %v2922 = vpop.f32.mrf.mxu0
    %v2923 = vadd.f32 0.0, %v2922
    %v2924 = vpop.f32.mrf.mxu0
    %v2925 = vpop.f32.mrf.mxu0
    %v2926 = vadd.f32 0.0, %v2925
    %v2927 = vpop.f32.mrf.mxu0
    %2928 = vmatprep.mubr.bf16.mxu0 0
    %2929 = vmatmul.mubr.bf16.gmra.mxu0 %v1869
    %v2930 = vpop.f32.mrf.mxu0
    %v2931 = vadd.f32 0.0, %v2930
    %v2932 = vpop.f32.mrf.mxu0
    %v2933 = vpop.f32.mrf.mxu0
    %v2934 = vadd.f32 0.0, %v2933
    %v2935 = vpop.f32.mrf.mxu0
    %2936 = vmatprep.mubr.bf16.mxu0 0
    %2937 = vmatmul.mubr.bf16.gmra.mxu0 %v1870
    %v2938 = vpop.f32.mrf.mxu0
    %v2939 = vadd.f32 0.0, %v2938
    %v2940 = vpop.f32.mrf.mxu0
    %v2941 = vpop.f32.mrf.mxu0
    %v2942 = vadd.f32 0.0, %v2941
    %v2943 = vpop.f32.mrf.mxu0
    %2944 = vmatprep.mubr.bf16.mxu0 0
    %2945 = vmatmul.mubr.bf16.gmra.mxu0 %v1871
    %v2946 = vpop.f32.mrf.mxu0
    %v2947 = vadd.f32 0.0, %v2946
    %v2948 = vpop.f32.mrf.mxu0
    %v2949 = vpop.f32.mrf.mxu0
    %v2950 = vadd.f32 0.0, %v2949
    %v2951 = vpop.f32.mrf.mxu0
    %2952 = vmatprep.mubr.bf16.mxu0 0
    %2953 = vmatmul.mubr.bf16.gmra.mxu0 %v1872
    %v2954 = vpop.f32.mrf.mxu0
    %v2955 = vadd.f32 0.0, %v2954
    %v2956 = vpop.f32.mrf.mxu0
    %v2957 = vpop.f32.mrf.mxu0
    %v2958 = vadd.f32 0.0, %v2957
    %v2959 = vpop.f32.mrf.mxu0
    %2960 = vmatprep.mubr.bf16.mxu0 0
    %2961 = vmatmul.mubr.bf16.gmra.mxu0 %v1873
    %v2962 = vpop.f32.mrf.mxu0
    %v2963 = vadd.f32 0.0, %v2962
    %v2964 = vpop.f32.mrf.mxu0
    %v2965 = vpop.f32.mrf.mxu0
    %v2966 = vadd.f32 0.0, %v2965
    %v2967 = vpop.f32.mrf.mxu0
    %2968 = vmatprep.mubr.bf16.mxu0 0
    %2969 = vmatmul.mubr.bf16.gmra.mxu0 %v1874
    %v2970 = vpop.f32.mrf.mxu0
    %v2971 = vadd.f32 0.0, %v2970
    %v2972 = vpop.f32.mrf.mxu0
    %v2973 = vpop.f32.mrf.mxu0
    %v2974 = vadd.f32 0.0, %v2973
    %v2975 = vpop.f32.mrf.mxu0
    %2976 = vmatprep.mubr.bf16.mxu0 0
    %2977 = vmatmul.mubr.bf16.gmra.mxu0 %v1875
    %v2978 = vpop.f32.mrf.mxu0
    %v2979 = vadd.f32 0.0, %v2978
    %v2980 = vpop.f32.mrf.mxu0
    %v2981 = vpop.f32.mrf.mxu0
    %v2982 = vadd.f32 0.0, %v2981
    %v2983 = vpop.f32.mrf.mxu0
    %2984 = vmatprep.mubr.bf16.mxu0 0
    %2985 = vmatmul.mubr.bf16.gmra.mxu0 %v1876
    %v2986 = vpop.f32.mrf.mxu0
    %v2987 = vadd.f32 0.0, %v2986
    %v2988 = vpop.f32.mrf.mxu0
    %v2989 = vpop.f32.mrf.mxu0
    %v2990 = vadd.f32 0.0, %v2989
    %v2991 = vpop.f32.mrf.mxu0
    %2992 = vmatprep.mubr.bf16.mxu0 0
    %2993 = vmatmul.mubr.bf16.gmra.mxu0 %v1877
    %v2994 = vpop.f32.mrf.mxu0
    %v2995 = vadd.f32 0.0, %v2994
    %v2996 = vpop.f32.mrf.mxu0
    %v2997 = vpop.f32.mrf.mxu0
    %v2998 = vadd.f32 0.0, %v2997
    %v2999 = vpop.f32.mrf.mxu0
    %3000 = vdwg.mxu0
    %3001 = vst [vmem:[#allocation10] sm:$0xff] %v745
    %3002 = vst [vmem:[#allocation10 + $0x8] sm:$0xff] %v748
    %3003 = vst [vmem:[#allocation10 + $0x10] sm:$0xff] %v753
    %3004 = vst [vmem:[#allocation10 + $0x18] sm:$0xff] %v756
    %3005 = vst [vmem:[#allocation10 + $0x20] sm:$0xff] %v761
    %3006 = vst [vmem:[#allocation10 + $0x28] sm:$0xff] %v764
    %3007 = vst [vmem:[#allocation10 + $0x30] sm:$0xff] %v769
    %3008 = vst [vmem:[#allocation10 + $0x38] sm:$0xff] %v772
    %3009 = vst [vmem:[#allocation10 + $0x40] sm:$0xff] %v777
    %3010 = vst [vmem:[#allocation10 + $0x48] sm:$0xff] %v780
    %3011 = vst [vmem:[#allocation10 + $0x50] sm:$0xff] %v785
    %3012 = vst [vmem:[#allocation10 + $0x58] sm:$0xff] %v788
    %3013 = vst [vmem:[#allocation10 + $0x60] sm:$0xff] %v793
    %3014 = vst [vmem:[#allocation10 + $0x68] sm:$0xff] %v796
    %3015 = vst [vmem:[#allocation10 + $0x70] sm:$0xff] %v801
    %3016 = vst [vmem:[#allocation10 + $0x78] sm:$0xff] %v804
    %3017 = vst [vmem:[#allocation10 + $0x80] sm:$0xff] %v809
    %3018 = vst [vmem:[#allocation10 + $0x88] sm:$0xff] %v812
    %3019 = vst [vmem:[#allocation10 + $0x90] sm:$0xff] %v817
    %3020 = vst [vmem:[#allocation10 + $0x98] sm:$0xff] %v820
    %3021 = vst [vmem:[#allocation10 + $0xa0] sm:$0xff] %v825
    %3022 = vst [vmem:[#allocation10 + $0xa8] sm:$0xff] %v828
    %3023 = vst [vmem:[#allocation10 + $0xb0] sm:$0xff] %v833
    %3024 = vst [vmem:[#allocation10 + $0xb8] sm:$0xff] %v836
    %3025 = vst [vmem:[#allocation10 + $0xc0] sm:$0xff] %v841
    %3026 = vst [vmem:[#allocation10 + $0xc8] sm:$0xff] %v844
    %3027 = vst [vmem:[#allocation10 + $0xd0] sm:$0xff] %v849
    %3028 = vst [vmem:[#allocation10 + $0xd8] sm:$0xff] %v852
    %3029 = vst [vmem:[#allocation10 + $0xe0] sm:$0xff] %v857
    %3030 = vst [vmem:[#allocation10 + $0xe8] sm:$0xff] %v860
    %3031 = vst [vmem:[#allocation10 + $0xf0] sm:$0xff] %v865
    %3032 = vst [vmem:[#allocation10 + $0xf8] sm:$0xff] %v868
    %3033 = vst [vmem:[#allocation10 + $0x100] sm:$0xff] %v873
    %3034 = vst [vmem:[#allocation10 + $0x108] sm:$0xff] %v876
    %3035 = vst [vmem:[#allocation10 + $0x110] sm:$0xff] %v881
    %3036 = vst [vmem:[#allocation10 + $0x118] sm:$0xff] %v884
    %3037 = vst [vmem:[#allocation10 + $0x120] sm:$0xff] %v889
    %3038 = vst [vmem:[#allocation10 + $0x128] sm:$0xff] %v892
    %3039 = vst [vmem:[#allocation10 + $0x130] sm:$0xff] %v897
    %3040 = vst [vmem:[#allocation10 + $0x138] sm:$0xff] %v900
    %3041 = vst [vmem:[#allocation10 + $0x140] sm:$0xff] %v905
    %3042 = vst [vmem:[#allocation10 + $0x148] sm:$0xff] %v908
    %3043 = vst [vmem:[#allocation10 + $0x150] sm:$0xff] %v913
    %3044 = vst [vmem:[#allocation10 + $0x158] sm:$0xff] %v916
    %3045 = vst [vmem:[#allocation10 + $0x160] sm:$0xff] %v921
    %3046 = vst [vmem:[#allocation10 + $0x168] sm:$0xff] %v924
    %3047 = vst [vmem:[#allocation10 + $0x170] sm:$0xff] %v929
    %3048 = vst [vmem:[#allocation10 + $0x178] sm:$0xff] %v932
    %3049 = vst [vmem:[#allocation10 + $0x180] sm:$0xff] %v937
    %3050 = vst [vmem:[#allocation10 + $0x188] sm:$0xff] %v940
    %3051 = vst [vmem:[#allocation10 + $0x190] sm:$0xff] %v945
    %3052 = vst [vmem:[#allocation10 + $0x198] sm:$0xff] %v948
    %3053 = vst [vmem:[#allocation10 + $0x1a0] sm:$0xff] %v953
    %3054 = vst [vmem:[#allocation10 + $0x1a8] sm:$0xff] %v956
    %3055 = vst [vmem:[#allocation10 + $0x1b0] sm:$0xff] %v961
    %3056 = vst [vmem:[#allocation10 + $0x1b8] sm:$0xff] %v964
    %3057 = vst [vmem:[#allocation10 + $0x1c0] sm:$0xff] %v969
    %3058 = vst [vmem:[#allocation10 + $0x1c8] sm:$0xff] %v972
    %3059 = vst [vmem:[#allocation10 + $0x1d0] sm:$0xff] %v977
    %3060 = vst [vmem:[#allocation10 + $0x1d8] sm:$0xff] %v980
    %3061 = vst [vmem:[#allocation10 + $0x1e0] sm:$0xff] %v985
    %3062 = vst [vmem:[#allocation10 + $0x1e8] sm:$0xff] %v988
    %3063 = vst [vmem:[#allocation10 + $0x1f0] sm:$0xff] %v993
    %3064 = vst [vmem:[#allocation10 + $0x1f8] sm:$0xff] %v996
    %3065 = vst [vmem:[#allocation11] sm:$0xff] %v2231
    %3066 = vst [vmem:[#allocation11 + $0x8] sm:$0xff] %v2232
    %3067 = vst [vmem:[#allocation11 + $0x10] sm:$0xff] %v2233
    %3068 = vst [vmem:[#allocation11 + $0x18] sm:$0xff] %v2234
    %3069 = vst [vmem:[#allocation11 + $0x20] sm:$0xff] %v2235
    %3070 = vst [vmem:[#allocation11 + $0x28] sm:$0xff] %v2236
    %3071 = vst [vmem:[#allocation11 + $0x30] sm:$0xff] %v2237
    %3072 = vst [vmem:[#allocation11 + $0x38] sm:$0xff] %v2238
    %3073 = vst [vmem:[#allocation11 + $0x40] sm:$0xff] %v2239
    %3074 = vst [vmem:[#allocation11 + $0x48] sm:$0xff] %v2240
    %3075 = vst [vmem:[#allocation11 + $0x50] sm:$0xff] %v2241
    %3076 = vst [vmem:[#allocation11 + $0x58] sm:$0xff] %v2242
    %3077 = vst [vmem:[#allocation11 + $0x60] sm:$0xff] %v2243
    %3078 = vst [vmem:[#allocation11 + $0x68] sm:$0xff] %v2244
    %3079 = vst [vmem:[#allocation11 + $0x70] sm:$0xff] %v2245
    %3080 = vst [vmem:[#allocation11 + $0x78] sm:$0xff] %v2246
    %3081 = vst [vmem:[#allocation11 + $0x80] sm:$0xff] %v2247
    %3082 = vst [vmem:[#allocation11 + $0x88] sm:$0xff] %v2248
    %3083 = vst [vmem:[#allocation11 + $0x90] sm:$0xff] %v2249
    %3084 = vst [vmem:[#allocation11 + $0x98] sm:$0xff] %v2250
    %3085 = vst [vmem:[#allocation11 + $0xa0] sm:$0xff] %v2251
    %3086 = vst [vmem:[#allocation11 + $0xa8] sm:$0xff] %v2252
    %3087 = vst [vmem:[#allocation11 + $0xb0] sm:$0xff] %v2253
    %3088 = vst [vmem:[#allocation11 + $0xb8] sm:$0xff] %v2254
    %3089 = vst [vmem:[#allocation11 + $0xc0] sm:$0xff] %v2255
    %3090 = vst [vmem:[#allocation11 + $0xc8] sm:$0xff] %v2256
    %3091 = vst [vmem:[#allocation11 + $0xd0] sm:$0xff] %v2257
    %3092 = vst [vmem:[#allocation11 + $0xd8] sm:$0xff] %v2258
    %3093 = vst [vmem:[#allocation11 + $0xe0] sm:$0xff] %v2259
    %3094 = vst [vmem:[#allocation11 + $0xe8] sm:$0xff] %v2260
    %3095 = vst [vmem:[#allocation11 + $0xf0] sm:$0xff] %v2261
    %3096 = vst [vmem:[#allocation11 + $0xf8] sm:$0xff] %v2262
    %3097 = vst [vmem:[#allocation11 + $0x100] sm:$0xff] %v2263
    %3098 = vst [vmem:[#allocation11 + $0x108] sm:$0xff] %v2264
    %3099 = vst [vmem:[#allocation11 + $0x110] sm:$0xff] %v2265
    %3100 = vst [vmem:[#allocation11 + $0x118] sm:$0xff] %v2266
    %3101 = vst [vmem:[#allocation11 + $0x120] sm:$0xff] %v2267
    %3102 = vst [vmem:[#allocation11 + $0x128] sm:$0xff] %v2268
    %3103 = vst [vmem:[#allocation11 + $0x130] sm:$0xff] %v2269
    %3104 = vst [vmem:[#allocation11 + $0x138] sm:$0xff] %v2270
    %3105 = vst [vmem:[#allocation11 + $0x140] sm:$0xff] %v2271
    %3106 = vst [vmem:[#allocation11 + $0x148] sm:$0xff] %v2272
    %3107 = vst [vmem:[#allocation11 + $0x150] sm:$0xff] %v2273
    %3108 = vst [vmem:[#allocation11 + $0x158] sm:$0xff] %v2274
    %3109 = vst [vmem:[#allocation11 + $0x160] sm:$0xff] %v2275
    %3110 = vst [vmem:[#allocation11 + $0x168] sm:$0xff] %v2276
    %3111 = vst [vmem:[#allocation11 + $0x170] sm:$0xff] %v2277
    %3112 = vst [vmem:[#allocation11 + $0x178] sm:$0xff] %v2278
    %3113 = vst [vmem:[#allocation11 + $0x180] sm:$0xff] %v2279
    %3114 = vst [vmem:[#allocation11 + $0x188] sm:$0xff] %v2280
    %3115 = vst [vmem:[#allocation11 + $0x190] sm:$0xff] %v2281
    %3116 = vst [vmem:[#allocation11 + $0x198] sm:$0xff] %v2282
    %3117 = vst [vmem:[#allocation11 + $0x1a0] sm:$0xff] %v2283
    %3118 = vst [vmem:[#allocation11 + $0x1a8] sm:$0xff] %v2284
    %3119 = vst [vmem:[#allocation11 + $0x1b0] sm:$0xff] %v2285
    %3120 = vst [vmem:[#allocation11 + $0x1b8] sm:$0xff] %v2286
    %3121 = vst [vmem:[#allocation11 + $0x1c0] sm:$0xff] %v2287
    %3122 = vst [vmem:[#allocation11 + $0x1c8] sm:$0xff] %v2288
    %3123 = vst [vmem:[#allocation11 + $0x1d0] sm:$0xff] %v2289
    %3124 = vst [vmem:[#allocation11 + $0x1d8] sm:$0xff] %v2290
    %3125 = vst [vmem:[#allocation11 + $0x1e0] sm:$0xff] %v2291
    %3126 = vst [vmem:[#allocation11 + $0x1e8] sm:$0xff] %v2292
    %3127 = vst [vmem:[#allocation11 + $0x1f0] sm:$0xff] %v2293
    %3128 = vst [vmem:[#allocation11 + $0x1f8] sm:$0xff] %v2294
    %3129 = vst [vmem:[#allocation13] sm:$0xff] %v2394
    %3130 = vst [vmem:[#allocation13 + $0x8] sm:$0xff] %v2397
    %3131 = vst [vmem:[#allocation13 + $0x10] sm:$0xff] %v2402
    %3132 = vst [vmem:[#allocation13 + $0x18] sm:$0xff] %v2405
    %3133 = vst [vmem:[#allocation13 + $0x20] sm:$0xff] %v2410
    %3134 = vst [vmem:[#allocation13 + $0x28] sm:$0xff] %v2413
    %3135 = vst [vmem:[#allocation13 + $0x30] sm:$0xff] %v2418
    %3136 = vst [vmem:[#allocation13 + $0x38] sm:$0xff] %v2421
    %3137 = vst [vmem:[#allocation13 + $0x40] sm:$0xff] %v2426
    %3138 = vst [vmem:[#allocation13 + $0x48] sm:$0xff] %v2429
    %3139 = vst [vmem:[#allocation13 + $0x50] sm:$0xff] %v2434
    %3140 = vst [vmem:[#allocation13 + $0x58] sm:$0xff] %v2437
    %3141 = vst [vmem:[#allocation13 + $0x60] sm:$0xff] %v2442
    %3142 = vst [vmem:[#allocation13 + $0x68] sm:$0xff] %v2445
    %3143 = vst [vmem:[#allocation13 + $0x70] sm:$0xff] %v2450
    %3144 = vst [vmem:[#allocation13 + $0x78] sm:$0xff] %v2453
    %3145 = vst [vmem:[#allocation13 + $0x80] sm:$0xff] %v2458
    %3146 = vst [vmem:[#allocation13 + $0x88] sm:$0xff] %v2461
    %3147 = vst [vmem:[#allocation13 + $0x90] sm:$0xff] %v2466
    %3148 = vst [vmem:[#allocation13 + $0x98] sm:$0xff] %v2469
    %3149 = vst [vmem:[#allocation13 + $0xa0] sm:$0xff] %v2474
    %3150 = vst [vmem:[#allocation13 + $0xa8] sm:$0xff] %v2477
    %3151 = vst [vmem:[#allocation13 + $0xb0] sm:$0xff] %v2482
    %3152 = vst [vmem:[#allocation13 + $0xb8] sm:$0xff] %v2485
    %3153 = vst [vmem:[#allocation13 + $0xc0] sm:$0xff] %v2490
    %3154 = vst [vmem:[#allocation13 + $0xc8] sm:$0xff] %v2493
    %3155 = vst [vmem:[#allocation13 + $0xd0] sm:$0xff] %v2498
    %3156 = vst [vmem:[#allocation13 + $0xd8] sm:$0xff] %v2501
    %3157 = vst [vmem:[#allocation13 + $0xe0] sm:$0xff] %v2506
    %3158 = vst [vmem:[#allocation13 + $0xe8] sm:$0xff] %v2509
    %3159 = vst [vmem:[#allocation13 + $0xf0] sm:$0xff] %v2514
    %3160 = vst [vmem:[#allocation13 + $0xf8] sm:$0xff] %v2517
    %3161 = vst [vmem:[#allocation13 + $0x100] sm:$0xff] %v2522
    %3162 = vst [vmem:[#allocation13 + $0x108] sm:$0xff] %v2525
    %3163 = vst [vmem:[#allocation13 + $0x110] sm:$0xff] %v2530
    %3164 = vst [vmem:[#allocation13 + $0x118] sm:$0xff] %v2533
    %3165 = vst [vmem:[#allocation13 + $0x120] sm:$0xff] %v2538
    %3166 = vst [vmem:[#allocation13 + $0x128] sm:$0xff] %v2541
    %3167 = vst [vmem:[#allocation13 + $0x130] sm:$0xff] %v2546
    %3168 = vst [vmem:[#allocation13 + $0x138] sm:$0xff] %v2549
    %3169 = vst [vmem:[#allocation13 + $0x140] sm:$0xff] %v2554
    %3170 = vst [vmem:[#allocation13 + $0x148] sm:$0xff] %v2557
    %3171 = vst [vmem:[#allocation13 + $0x150] sm:$0xff] %v2562
    %3172 = vst [vmem:[#allocation13 + $0x158] sm:$0xff] %v2565
    %3173 = vst [vmem:[#allocation13 + $0x160] sm:$0xff] %v2570
    %3174 = vst [vmem:[#allocation13 + $0x168] sm:$0xff] %v2573
    %3175 = vst [vmem:[#allocation13 + $0x170] sm:$0xff] %v2578
    %3176 = vst [vmem:[#allocation13 + $0x178] sm:$0xff] %v2581
    %3177 = vst [vmem:[#allocation13 + $0x180] sm:$0xff] %v2586
    %3178 = vst [vmem:[#allocation13 + $0x188] sm:$0xff] %v2589
    %3179 = vst [vmem:[#allocation13 + $0x190] sm:$0xff] %v2594
    %3180 = vst [vmem:[#allocation13 + $0x198] sm:$0xff] %v2597
    %3181 = vst [vmem:[#allocation13 + $0x1a0] sm:$0xff] %v2602
    %3182 = vst [vmem:[#allocation13 + $0x1a8] sm:$0xff] %v2605
    %3183 = vst [vmem:[#allocation13 + $0x1b0] sm:$0xff] %v2610
    %3184 = vst [vmem:[#allocation13 + $0x1b8] sm:$0xff] %v2613
    %3185 = vst [vmem:[#allocation13 + $0x1c0] sm:$0xff] %v2618
    %3186 = vst [vmem:[#allocation13 + $0x1c8] sm:$0xff] %v2621
    %3187 = vst [vmem:[#allocation13 + $0x1d0] sm:$0xff] %v2626
    %3188 = vst [vmem:[#allocation13 + $0x1d8] sm:$0xff] %v2629
    %3189 = vst [vmem:[#allocation13 + $0x1e0] sm:$0xff] %v2634
    %3190 = vst [vmem:[#allocation13 + $0x1e8] sm:$0xff] %v2637
    %3191 = vst [vmem:[#allocation13 + $0x1f0] sm:$0xff] %v2642
    %3192 = vst [vmem:[#allocation13 + $0x1f8] sm:$0xff] %v2645
    %3193 = vst [vmem:[#allocation14] sm:$0xff] %v2747
    %3194 = vst [vmem:[#allocation14 + $0x8] sm:$0xff] %v2750
    %3195 = vst [vmem:[#allocation14 + $0x10] sm:$0xff] %v2755
    %3196 = vst [vmem:[#allocation14 + $0x18] sm:$0xff] %v2758
    %3197 = vst [vmem:[#allocation14 + $0x20] sm:$0xff] %v2763
    %3198 = vst [vmem:[#allocation14 + $0x28] sm:$0xff] %v2766
    %3199 = vst [vmem:[#allocation14 + $0x30] sm:$0xff] %v2771
    %3200 = vst [vmem:[#allocation14 + $0x38] sm:$0xff] %v2774
    %3201 = vst [vmem:[#allocation14 + $0x40] sm:$0xff] %v2779
    %3202 = vst [vmem:[#allocation14 + $0x48] sm:$0xff] %v2782
    %3203 = vst [vmem:[#allocation14 + $0x50] sm:$0xff] %v2787
    %3204 = vst [vmem:[#allocation14 + $0x58] sm:$0xff] %v2790
    %3205 = vst [vmem:[#allocation14 + $0x60] sm:$0xff] %v2795
    %3206 = vst [vmem:[#allocation14 + $0x68] sm:$0xff] %v2798
    %3207 = vst [vmem:[#allocation14 + $0x70] sm:$0xff] %v2803
    %3208 = vst [vmem:[#allocation14 + $0x78] sm:$0xff] %v2806
    %3209 = vst [vmem:[#allocation14 + $0x80] sm:$0xff] %v2811
    %3210 = vst [vmem:[#allocation14 + $0x88] sm:$0xff] %v2814
    %3211 = vst [vmem:[#allocation14 + $0x90] sm:$0xff] %v2819
    %3212 = vst [vmem:[#allocation14 + $0x98] sm:$0xff] %v2822
    %3213 = vst [vmem:[#allocation14 + $0xa0] sm:$0xff] %v2827
    %3214 = vst [vmem:[#allocation14 + $0xa8] sm:$0xff] %v2830
    %3215 = vst [vmem:[#allocation14 + $0xb0] sm:$0xff] %v2835
    %3216 = vst [vmem:[#allocation14 + $0xb8] sm:$0xff] %v2838
    %3217 = vst [vmem:[#allocation14 + $0xc0] sm:$0xff] %v2843
    %3218 = vst [vmem:[#allocation14 + $0xc8] sm:$0xff] %v2846
    %3219 = vst [vmem:[#allocation14 + $0xd0] sm:$0xff] %v2851
    %3220 = vst [vmem:[#allocation14 + $0xd8] sm:$0xff] %v2854
    %3221 = vst [vmem:[#allocation14 + $0xe0] sm:$0xff] %v2859
    %3222 = vst [vmem:[#allocation14 + $0xe8] sm:$0xff] %v2862
    %3223 = vst [vmem:[#allocation14 + $0xf0] sm:$0xff] %v2867
    %3224 = vst [vmem:[#allocation14 + $0xf8] sm:$0xff] %v2870
    %3225 = vst [vmem:[#allocation14 + $0x100] sm:$0xff] %v2875
    %3226 = vst [vmem:[#allocation14 + $0x108] sm:$0xff] %v2878
    %3227 = vst [vmem:[#allocation14 + $0x110] sm:$0xff] %v2883
    %3228 = vst [vmem:[#allocation14 + $0x118] sm:$0xff] %v2886
    %3229 = vst [vmem:[#allocation14 + $0x120] sm:$0xff] %v2891
    %3230 = vst [vmem:[#allocation14 + $0x128] sm:$0xff] %v2894
    %3231 = vst [vmem:[#allocation14 + $0x130] sm:$0xff] %v2899
    %3232 = vst [vmem:[#allocation14 + $0x138] sm:$0xff] %v2902
    %3233 = vst [vmem:[#allocation14 + $0x140] sm:$0xff] %v2907
    %3234 = vst [vmem:[#allocation14 + $0x148] sm:$0xff] %v2910
    %3235 = vst [vmem:[#allocation14 + $0x150] sm:$0xff] %v2915
    %3236 = vst [vmem:[#allocation14 + $0x158] sm:$0xff] %v2918
    %3237 = vst [vmem:[#allocation14 + $0x160] sm:$0xff] %v2923
    %3238 = vst [vmem:[#allocation14 + $0x168] sm:$0xff] %v2926
    %3239 = vst [vmem:[#allocation14 + $0x170] sm:$0xff] %v2931
    %3240 = vst [vmem:[#allocation14 + $0x178] sm:$0xff] %v2934
    %3241 = vst [vmem:[#allocation14 + $0x180] sm:$0xff] %v2939
    %3242 = vst [vmem:[#allocation14 + $0x188] sm:$0xff] %v2942
    %3243 = vst [vmem:[#allocation14 + $0x190] sm:$0xff] %v2947
    %3244 = vst [vmem:[#allocation14 + $0x198] sm:$0xff] %v2950
    %3245 = vst [vmem:[#allocation14 + $0x1a0] sm:$0xff] %v2955
    %3246 = vst [vmem:[#allocation14 + $0x1a8] sm:$0xff] %v2958
    %3247 = vst [vmem:[#allocation14 + $0x1b0] sm:$0xff] %v2963
    %3248 = vst [vmem:[#allocation14 + $0x1b8] sm:$0xff] %v2966
    %3249 = vst [vmem:[#allocation14 + $0x1c0] sm:$0xff] %v2971
    %3250 = vst [vmem:[#allocation14 + $0x1c8] sm:$0xff] %v2974
    %3251 = vst [vmem:[#allocation14 + $0x1d0] sm:$0xff] %v2979
    %3252 = vst [vmem:[#allocation14 + $0x1d8] sm:$0xff] %v2982
    %3253 = vst [vmem:[#allocation14 + $0x1e0] sm:$0xff] %v2987
    %3254 = vst [vmem:[#allocation14 + $0x1e8] sm:$0xff] %v2990
    %3255 = vst [vmem:[#allocation14 + $0x1f0] sm:$0xff] %v2995
    %3256 = vst [vmem:[#allocation14 + $0x1f8] sm:$0xff] %v2998
    // Predicated region
    $region54: #{tpu_custom_call.1} parent=1 // pred_check
      _
    $region55: #{tpu_custom_call.1} parent=1 // pred_check_branch
      %3258 = sbr.rel (0) target = $region57
    $region56: #{tpu_custom_call.1} parent=1 // pred_region
      %s3260 = ssub.s32 8192, 8192
      %3261 = vsyncadd [#allocation4], %s3260
      %s3262 = sshll.u32 [#allocation10], 4
      %s3263 = int_to_ptr.vmem [resolvable:$true] %s3262
      %3268 = dma.vmem_to_hbm [thread:$0]  %s3263, 8192, %s9, [#allocation4], 128, 128, 8
    $region57: #{tpu_custom_call.1} parent=1 // pred_fallthru
      _
    // Predicated region
    $region58: #{tpu_custom_call.1} parent=1 // pred_check
      _
    $region59: #{tpu_custom_call.1} parent=1 // pred_check_branch
      %3270 = sbr.rel (0) target = $region61
    $region60: #{tpu_custom_call.1} parent=1 // pred_region
      %s3272 = ssub.s32 8192, 8192
      %3273 = vsyncadd [#allocation12], %s3272
      %s3274 = sshll.u32 [#allocation11], 4
      %s3275 = int_to_ptr.vmem [resolvable:$true] %s3274
      %3280 = dma.vmem_to_hbm [thread:$0]  %s3275, 8192, %s10, [#allocation12], 128, 128, 8
    $region61: #{tpu_custom_call.1} parent=1 // pred_fallthru
      _
    // Predicated region
    $region62: #{tpu_custom_call.1} parent=1 // pred_check
      _
    $region63: #{tpu_custom_call.1} parent=1 // pred_check_branch
      %3282 = sbr.rel (0) target = $region65
    $region64: #{tpu_custom_call.1} parent=1 // pred_region
      %s3284 = ssub.s32 8192, 8192
      %3285 = vsyncadd [#allocation12], %s3284
      %s3286 = sshll.u32 [#allocation13], 4
      %s3287 = int_to_ptr.vmem [resolvable:$true] %s3286
      %3292 = dma.vmem_to_hbm [thread:$0]  %s3287, 8192, %s11, [#allocation12], 128, 128, 8
    $region65: #{tpu_custom_call.1} parent=1 // pred_fallthru
      _
    // Predicated region
    $region66: #{tpu_custom_call.1} parent=1 // pred_check
      _
    $region67: #{tpu_custom_call.1} parent=1 // pred_check_branch
      %3294 = sbr.rel (0) target = $region69
    $region68: #{tpu_custom_call.1} parent=1 // pred_region
      %s3296 = ssub.s32 8192, 8192
      %3297 = vsyncadd [#allocation15], %s3296
      %s3298 = sshll.u32 [#allocation14], 4
      %s3299 = int_to_ptr.vmem [resolvable:$true] %s3298
      %3304 = dma.vmem_to_hbm [thread:$0]  %s3299, 8192, %s12, [#allocation15], 128, 128, 8
    $region69: #{tpu_custom_call.1} parent=1 // pred_fallthru
      _
    // Predicated region
    $region70: #{tpu_custom_call.1} parent=1 // pred_check
      _
    $region71: #{tpu_custom_call.1} parent=1 // pred_check_branch
      %3306 = sbr.rel (0) target = $region73
    $region72: #{tpu_custom_call.1} parent=1 // pred_region
      %3307 = dma.done [#allocation4], 8192
    $region73: #{tpu_custom_call.1} parent=1 // pred_fallthru
      _
    // Predicated region
    $region74: #{tpu_custom_call.1} parent=1 // pred_check
      _
    $region75: #{tpu_custom_call.1} parent=1 // pred_check_branch
      %3309 = sbr.rel (0) target = $region77
    $region76: #{tpu_custom_call.1} parent=1 // pred_region
      %3310 = dma.done [#allocation12], 8192
    $region77: #{tpu_custom_call.1} parent=1 // pred_fallthru
      _
    // Predicated region
    $region78: #{tpu_custom_call.1} parent=1 // pred_check
      _
    $region79: #{tpu_custom_call.1} parent=1 // pred_check_branch
      %3312 = sbr.rel (0) target = $region81
    $region80: #{tpu_custom_call.1} parent=1 // pred_region
      %3313 = dma.done [#allocation12], 8192
    $region81: #{tpu_custom_call.1} parent=1 // pred_fallthru
      _
    // Predicated region
    $region82: #{tpu_custom_call.1} parent=1 // pred_check
      _
    $region83: #{tpu_custom_call.1} parent=1 // pred_check_branch
      %3315 = sbr.rel (0) target = $region85
    $region84: #{tpu_custom_call.1} parent=1 // pred_region
      %3316 = dma.done [#allocation15], 8192
    $region85: #{tpu_custom_call.1} parent=1 // pred_fallthru
      _
    %3317 = vsyncpa [#allocation3], 1
    %3318 = vsyncpa [#allocation6], 1
    %3319 = vsyncpa [#allocation9], 1
    %3320 = vsyncpa [#allocation4], 1
    %3321 = vsyncpa [#allocation12], 1
    %3322 = vsyncpa [#allocation15], 1

</llo_original>
